<compile_context>
chip_gen: v6e
topology: v6e:2x2x1
jax: 0.10.0
libtpu: 0.0.40
codegen_flags: <defaults>
</compile_context>

<pallas_src>
import functools

import jax
import jax.numpy as jnp
from jax import lax
from jax.experimental import pallas as pl
from jax.experimental.pallas import tpu as pltpu

VMEM = pltpu.MemorySpace.VMEM


def _round_up(x, m):
    return ((x + m - 1) // m) * m


def _pad_to(a, shape):
    pads = [(0, s - d) for d, s in zip(a.shape, shape)]
    return jnp.pad(a, pads)


def fold_bias_bn(bias, bn):
    # y = ((x + bias) - mean) * gamma / sqrt(var + 1e-5) + beta = x*scale + shift
    scale = bn["gamma"] / jnp.sqrt(bn["var"] + 1e-5)
    shift = (bias - bn["mean"]) * scale + bn["beta"]
    return scale, shift


# ---------------------------------------------------------------------------
# Fully fused Pallas kernel (entire forward pass)
# ---------------------------------------------------------------------------
def _fused_gnn_kernel(*refs, num_layer, num_graphs, num_atom_feat,
                      num_bond_feat, eps_list):
    f32 = jnp.float32
    bf16 = jnp.bfloat16

    it = iter(refs)
    atom_idx_ref = next(it)      # [N, Fa] int32 (already offset per feature)
    bond_idx_ref = next(it)      # [E, Fb] int32 (already offset per feature)
    batch_col_ref = next(it)     # [N, 1]  int32
    batch_row_ref = next(it)     # [1, N]  int32
    src_col_ref = next(it)       # [E, 1]  int32
    dst_row_ref = next(it)       # [1, E]  int32
    atom_emb_ref = next(it)      # [FVa, Dp] bf16
    conv_p = [{k: next(it) for k in
               ("bond_emb", "w1", "s1", "c1", "w2", "s2", "c2")}
              for _ in range(num_layer)]
    vn_p = [{k: next(it) for k in ("w1", "s1", "c1", "w2", "s2", "c2")}
            for _ in range(num_layer - 1)]
    out_ref = next(it)           # [N, Dp] f32

    N = batch_col_ref.shape[0]
    E = src_col_ref.shape[0]
    G = num_graphs
    Dp = atom_emb_ref.shape[1]

    # --- AtomEncoder: multi-hot(x) @ concatenated embedding table ------------
    FVa = atom_emb_ref.shape[0]
    ai = atom_idx_ref[...]
    iota_a = lax.broadcasted_iota(jnp.int32, (N, FVa), 1)
    mh_a = jnp.zeros((N, FVa), f32)
    for k in range(num_atom_feat):
        mh_a = mh_a + (iota_a == ai[:, k:k + 1]).astype(f32)
    h = jnp.dot(mh_a.astype(bf16), atom_emb_ref[...],
                preferred_element_type=f32)                         # [N, Dp]

    # --- layer-invariant structure one-hots (built once, reused) -------------
    g_iota = lax.broadcasted_iota(jnp.int32, (N, G), 1)
    batch_oh = (g_iota == batch_col_ref[...]).astype(bf16)          # [N, G]
    gn_iota = lax.broadcasted_iota(jnp.int32, (G, N), 0)
    pool_oh = (gn_iota == batch_row_ref[...]).astype(bf16)          # [G, N]
    en_iota = lax.broadcasted_iota(jnp.int32, (E, N), 1)
    src_oh = (en_iota == src_col_ref[...]).astype(bf16)             # [E, N]
    ne_iota = lax.broadcasted_iota(jnp.int32, (N, E), 0)
    dst_oh_t = (ne_iota == dst_row_ref[...]).astype(bf16)           # [N, E]

    FVb = conv_p[0]["bond_emb"].shape[0]
    bi = bond_idx_ref[...]
    iota_b = lax.broadcasted_iota(jnp.int32, (E, FVb), 1)
    mh_b = jnp.zeros((E, FVb), f32)
    for k in range(num_bond_feat):
        mh_b = mh_b + (iota_b == bi[:, k:k + 1]).astype(f32)
    mh_b = mh_b.astype(bf16)                                        # [E, FVb]

    # --- virtual-node embedding initialized to zero ---------------------------
    vne = jnp.zeros((G, Dp), f32)

    # --- unrolled layer loop: everything stays in VMEM/vregs -----------------
    for layer in range(num_layer):
        cp = conv_p[layer]

        # h_list[layer] = h + virtualnode_embedding[batch]
        hl = h + jnp.dot(batch_oh, vne.astype(bf16),
                         preferred_element_type=f32)                # [N, Dp]
        hl_b = hl.astype(bf16)

        # BondEncoder
        eemb = jnp.dot(mh_b, cp["bond_emb"][...],
                       preferred_element_type=f32)                  # [E, Dp]

        # gather x_j, message = relu(x_j + e), scatter-add to dst
        xj = jnp.dot(src_oh, hl_b, preferred_element_type=f32)      # [E, Dp]
        msg = jnp.maximum(xj + eemb, 0.0).astype(bf16)
        aggr = jnp.dot(dst_oh_t, msg, preferred_element_type=f32)   # [N, Dp]

        # GIN combine + MLP (lin1 + BN1 + ReLU + lin2) + outer BN (+ReLU)
        pre = (1.0 + eps_list[layer]) * hl + aggr
        z = jnp.dot(pre.astype(bf16), cp["w1"][...],
                    preferred_element_type=f32)
        z = jnp.maximum(z * cp["s1"][...] + cp["c1"][...], 0.0)
        h2 = jnp.dot(z.astype(bf16), cp["w2"][...],
                     preferred_element_type=f32)
        h2 = h2 * cp["s2"][...] + cp["c2"][...]
        if layer != num_layer - 1:
            h2 = jnp.maximum(h2, 0.0)
        h = h2                                       # dropout == identity (eval)

        # virtual-node update
        if layer < num_layer - 1:
            pooled = jnp.dot(pool_oh, hl_b, preferred_element_type=f32)  # [G,Dp]
            vtemp = pooled + vne
            vp = vn_p[layer]
            zv = jnp.dot(vtemp.astype(bf16), vp["w1"][...],
                         preferred_element_type=f32)
            zv = jnp.maximum(zv * vp["s1"][...] + vp["c1"][...], 0.0)
            vv = jnp.dot(zv.astype(bf16), vp["w2"][...],
                         preferred_element_type=f32)
            vne = jnp.maximum(vv * vp["s2"][...] + vp["c2"][...], 0.0)

    out_ref[...] = h


# ---------------------------------------------------------------------------
# Parameter initialization (deterministic, synthetic) + trace-time preparation
# ---------------------------------------------------------------------------
def init_params(key, emb_dim, num_layer, num_atom_feat, atom_vocab,
                num_bond_feat, bond_vocab):
    kit = iter(jax.random.split(key, 512))

    def nrm(shape, scale=0.1):
        return scale * jax.random.normal(next(kit), shape, jnp.float32)

    def dense(i, o):
        return {"w": nrm((i, o)), "b": nrm((1, o))}

    def bn(c):
        return {
            "gamma": 1.0 + nrm((1, c)),
            "beta": nrm((1, c)),
            "mean": nrm((1, c)),
            "var": 0.5 + jax.random.uniform(next(kit), (1, c), jnp.float32),
        }

    params = {
        "atom_emb": nrm((num_atom_feat * atom_vocab, emb_dim), 0.2),
        "convs": [],
        "bns": [],
        "vn_mlps": [],
    }
    for _ in range(num_layer):
        params["convs"].append({
            "bond_emb": nrm((num_bond_feat * bond_vocab, emb_dim), 0.2),
            "lin1": dense(emb_dim, 2 * emb_dim),
            "bn1": bn(2 * emb_dim),
            "lin2": dense(2 * emb_dim, emb_dim),
            "eps": 0.0,  # torch.nn.Parameter(torch.Tensor([0]))
        })
        params["bns"].append(bn(emb_dim))
    for _ in range(num_layer - 1):
        params["vn_mlps"].append({
            "lin1": dense(emb_dim, 2 * emb_dim),
            "bn1": bn(2 * emb_dim),
            "lin2": dense(2 * emb_dim, emb_dim),
            "bn2": bn(emb_dim),
        })
    return params


def prepare_params(params, emb_dim, num_layer):
    """Fold bias+BN into scale/shift, pad to lane-dense shapes, cast to bf16."""
    D, H = emb_dim, 2 * emb_dim
    Dp, Hp = _round_up(D, 128), _round_up(H, 128)
    prep = {"Dp": Dp, "Hp": Hp, "convs": [], "vn_mlps": []}
    prep["atom_emb"] = _pad_to(
        params["atom_emb"], (params["atom_emb"].shape[0], Dp)).astype(jnp.bfloat16)
    for layer in range(num_layer):
        cp = params["convs"][layer]
        s1, c1 = fold_bias_bn(cp["lin1"]["b"], cp["bn1"])
        s2, c2 = fold_bias_bn(cp["lin2"]["b"], params["bns"][layer])
        prep["convs"].append({
            "bond_emb": _pad_to(cp["bond_emb"],
                                (cp["bond_emb"].shape[0], Dp)).astype(jnp.bfloat16),
            "w1": _pad_to(cp["lin1"]["w"], (Dp, Hp)).astype(jnp.bfloat16),
            "s1": _pad_to(s1, (1, Hp)).astype(jnp.float32),
            "c1": _pad_to(c1, (1, Hp)).astype(jnp.float32),
            "w2": _pad_to(cp["lin2"]["w"], (Hp, Dp)).astype(jnp.bfloat16),
            "s2": _pad_to(s2, (1, Dp)).astype(jnp.float32),
            "c2": _pad_to(c2, (1, Dp)).astype(jnp.float32),
            "eps": float(cp["eps"]),
        })
    for layer in range(num_layer - 1):
        vp = params["vn_mlps"][layer]
        sa, ca = fold_bias_bn(vp["lin1"]["b"], vp["bn1"])
        sb, cb = fold_bias_bn(vp["lin2"]["b"], vp["bn2"])
        prep["vn_mlps"].append({
            "w1": _pad_to(vp["lin1"]["w"], (Dp, Hp)).astype(jnp.bfloat16),
            "s1": _pad_to(sa, (1, Hp)).astype(jnp.float32),
            "c1": _pad_to(ca, (1, Hp)).astype(jnp.float32),
            "w2": _pad_to(vp["lin2"]["w"], (Hp, Dp)).astype(jnp.bfloat16),
            "s2": _pad_to(sb, (1, Dp)).astype(jnp.float32),
            "c2": _pad_to(cb, (1, Dp)).astype(jnp.float32),
        })
    return prep


# ---------------------------------------------------------------------------
# Pallas-based forward (mirrors GNN_node_Virtualnode.forward, eval mode)
# ---------------------------------------------------------------------------
def gnn_virtualnode_forward(params, x_cat, edge_index, edge_attr, batch,
                            num_graphs, num_layer, emb_dim, atom_vocab,
                            bond_vocab):
    prep = prepare_params(params, emb_dim, num_layer)
    Dp = prep["Dp"]
    N = x_cat.shape[0]
    F_a = x_cat.shape[1]
    F_b = edge_attr.shape[1]

    # Index preprocessing (O(N+E) int32, the only "graph structure" traffic).
    atom_adj = (x_cat.astype(jnp.int32)
                + jnp.arange(F_a, dtype=jnp.int32)[None, :] * atom_vocab)
    bond_adj = (edge_attr.astype(jnp.int32)
                + jnp.arange(F_b, dtype=jnp.int32)[None, :] * bond_vocab)
    batch_col = batch.astype(jnp.int32)[:, None]        # [N,1]
    batch_row = batch.astype(jnp.int32)[None, :]        # [1,N]
    src_col = edge_index[0].astype(jnp.int32)[:, None]  # [E,1]
    dst_row = edge_index[1].astype(jnp.int32)[None, :]  # [1,E]

    inputs = [atom_adj, bond_adj, batch_col, batch_row, src_col, dst_row,
              prep["atom_emb"]]
    eps_list = []
    for cp in prep["convs"]:
        inputs += [cp["bond_emb"], cp["w1"], cp["s1"], cp["c1"],
                   cp["w2"], cp["s2"], cp["c2"]]
        eps_list.append(cp["eps"])
    for vp in prep["vn_mlps"]:
        inputs += [vp["w1"], vp["s1"], vp["c1"], vp["w2"], vp["s2"], vp["c2"]]

    kernel = functools.partial(
        _fused_gnn_kernel, num_layer=num_layer, num_graphs=num_graphs,
        num_atom_feat=F_a, num_bond_feat=F_b, eps_list=tuple(eps_list))

    h = pl.pallas_call(
        kernel,
        out_shape=jax.ShapeDtypeStruct((N, Dp), jnp.float32),
        in_specs=[pl.BlockSpec(memory_space=VMEM)] * len(inputs),
        out_specs=pl.BlockSpec(memory_space=VMEM),
    )(*inputs)

    # JK == 'last'; slice lane padding only at the boundary.
    return h[:, :emb_dim]


# ---------------------------------------------------------------------------
# Pure-JAX reference (mirrors the kernel's bf16-operand / f32-accumulate math)
# ---------------------------------------------------------------------------
def ref_forward(params, x_cat, edge_index, edge_attr, batch, num_graphs,
                num_layer, emb_dim, atom_vocab, bond_vocab):
    f32 = jnp.float32
    bf = lambda a: a.astype(jnp.bfloat16)

    def mm(a, b):
        return jnp.dot(bf(a), bf(b), preferred_element_type=f32)

    N = x_cat.shape[0]
    G = num_graphs
    src, dst = edge_index[0], edge_index[1]

    h = jnp.zeros((N, emb_dim), f32)
    for k in range(x_cat.shape[1]):
        tab = bf(params["atom_emb"][k * atom_vocab:(k + 1) * atom_vocab])
        h = h + tab[x_cat[:, k]].astype(f32)
    vne = jnp.zeros((G, emb_dim), f32)
    h_list = [h]
    for layer in range(num_layer):
        cp = params["convs"][layer]
        hl = h_list[layer] + bf(vne)[batch].astype(f32)
        h_list[layer] = hl
        eemb = jnp.zeros((edge_attr.shape[0], emb_dim), f32)
        for k in range(edge_attr.shape[1]):
            tab = bf(cp["bond_emb"][k * bond_vocab:(k + 1) * bond_vocab])
            eemb = eemb + tab[edge_attr[:, k]].astype(f32)
        msg = jnp.maximum(bf(hl)[src].astype(f32) + eemb, 0.0)
        aggr = jnp.zeros((N, emb_dim), f32).at[dst].add(bf(msg).astype(f32))
        pre = (1.0 + cp["eps"]) * hl + aggr
        s1, c1 = fold_bias_bn(cp["lin1"]["b"], cp["bn1"])
        s2, c2 = fold_bias_bn(cp["lin2"]["b"], params["bns"][layer])
        z = jnp.maximum(mm(pre, cp["lin1"]["w"]) * s1 + c1, 0.0)
        hout = mm(z, cp["lin2"]["w"]) * s2 + c2
        if layer != num_layer - 1:
            hout = jnp.maximum(hout, 0.0)
        h_list.append(hout)
        if layer < num_layer - 1:
            pooled = jnp.zeros((G, emb_dim), f32).at[batch].add(
                bf(hl).astype(f32))
            vtemp = pooled + vne
            vp = params["vn_mlps"][layer]
            sa, ca = fold_bias_bn(vp["lin1"]["b"], vp["bn1"])
            sb, cb = fold_bias_bn(vp["lin2"]["b"], vp["bn2"])
            z = jnp.maximum(mm(vtemp, vp["lin1"]["w"]) * sa + ca, 0.0)
            vne = jnp.maximum(mm(z, vp["lin2"]["w"]) * sb + cb, 0.0)
    return h_list[-1]


# ---------------------------------------------------------------------------
if __name__ == "__main__":
    key = jax.random.PRNGKey(0)
    k1, k2, k3, k4, k5 = jax.random.split(key, 5)

    emb_dim = 32
    num_layer = 3
    atom_vocab, bond_vocab = 8, 4
    num_atom_feat, num_bond_feat = 2, 2
    N0, N1 = 10, 14           # two graphs in the batch
    N = N0 + N1
    E = 40
    num_graphs = 2            # static (avoids host sync on batch[-1])

    x_cat = jax.random.randint(k1, (N, num_atom_feat), 0, atom_vocab,
                               dtype=jnp.int32)
    edge_attr = jax.random.randint(k2, (E, num_bond_feat), 0, bond_vocab,
                                   dtype=jnp.int32)
    src0 = jax.random.randint(k3, (E // 2,), 0, N0, dtype=jnp.int32)
    dst0 = jax.random.randint(k4, (E // 2,), 0, N0, dtype=jnp.int32)
    src1 = jax.random.randint(k5, (E // 2,), N0, N, dtype=jnp.int32)
    dst1 = jax.random.randint(jax.random.fold_in(key, 7), (E // 2,), N0, N,
                              dtype=jnp.int32)
    edge_index = jnp.stack([jnp.concatenate([src0, src1]),
                            jnp.concatenate([dst0, dst1])])
    batch = jnp.concatenate([jnp.zeros((N0,), jnp.int32),
                             jnp.ones((N1,), jnp.int32)])

    params = init_params(jax.random.fold_in(key, 99), emb_dim, num_layer,
                         num_atom_feat, atom_vocab, num_bond_feat, bond_vocab)

    out = gnn_virtualnode_forward(params, x_cat, edge_index, edge_attr, batch,
                                  num_graphs, num_layer, emb_dim,
                                  atom_vocab, bond_vocab)
    out = jax.block_until_ready(out)

    ref = ref_forward(params, x_cat, edge_index, edge_attr, batch, num_graphs,
                      num_layer, emb_dim, atom_vocab, bond_vocab)

    assert out.shape == (N, emb_dim), out.shape
    assert jnp.allclose(out, ref, atol=1e-2, rtol=1e-2), float(
        jnp.max(jnp.abs(out - ref)))
    print("KERNEL_OK")
</pallas_src>

<mosaic_0001>
module attributes {stable_mosaic.version = 11 : i64} {
  func.func @_fused_gnn_kernel(%arg0: memref<24x2xi32, #tpu.memory_space<vmem>>, %arg1: memref<40x2xi32, #tpu.memory_space<vmem>>, %arg2: memref<24x1xi32, #tpu.memory_space<vmem>>, %arg3: memref<1x24xi32, #tpu.memory_space<vmem>>, %arg4: memref<40x1xi32, #tpu.memory_space<vmem>>, %arg5: memref<1x40xi32, #tpu.memory_space<vmem>>, %arg6: memref<16x128xbf16, #tpu.memory_space<vmem>>, %arg7: memref<8x128xbf16, #tpu.memory_space<vmem>>, %arg8: memref<128x128xbf16, #tpu.memory_space<vmem>>, %arg9: memref<1x128xf32, #tpu.memory_space<vmem>>, %arg10: memref<1x128xf32, #tpu.memory_space<vmem>>, %arg11: memref<128x128xbf16, #tpu.memory_space<vmem>>, %arg12: memref<1x128xf32, #tpu.memory_space<vmem>>, %arg13: memref<1x128xf32, #tpu.memory_space<vmem>>, %arg14: memref<8x128xbf16, #tpu.memory_space<vmem>>, %arg15: memref<128x128xbf16, #tpu.memory_space<vmem>>, %arg16: memref<1x128xf32, #tpu.memory_space<vmem>>, %arg17: memref<1x128xf32, #tpu.memory_space<vmem>>, %arg18: memref<128x128xbf16, #tpu.memory_space<vmem>>, %arg19: memref<1x128xf32, #tpu.memory_space<vmem>>, %arg20: memref<1x128xf32, #tpu.memory_space<vmem>>, %arg21: memref<8x128xbf16, #tpu.memory_space<vmem>>, %arg22: memref<128x128xbf16, #tpu.memory_space<vmem>>, %arg23: memref<1x128xf32, #tpu.memory_space<vmem>>, %arg24: memref<1x128xf32, #tpu.memory_space<vmem>>, %arg25: memref<128x128xbf16, #tpu.memory_space<vmem>>, %arg26: memref<1x128xf32, #tpu.memory_space<vmem>>, %arg27: memref<1x128xf32, #tpu.memory_space<vmem>>, %arg28: memref<128x128xbf16, #tpu.memory_space<vmem>>, %arg29: memref<1x128xf32, #tpu.memory_space<vmem>>, %arg30: memref<1x128xf32, #tpu.memory_space<vmem>>, %arg31: memref<128x128xbf16, #tpu.memory_space<vmem>>, %arg32: memref<1x128xf32, #tpu.memory_space<vmem>>, %arg33: memref<1x128xf32, #tpu.memory_space<vmem>>, %arg34: memref<128x128xbf16, #tpu.memory_space<vmem>>, %arg35: memref<1x128xf32, #tpu.memory_space<vmem>>, %arg36: memref<1x128xf32, #tpu.memory_space<vmem>>, %arg37: memref<128x128xbf16, #tpu.memory_space<vmem>>, %arg38: memref<1x128xf32, #tpu.memory_space<vmem>>, %arg39: memref<1x128xf32, #tpu.memory_space<vmem>>, %arg40: memref<24x128xf32, #tpu.memory_space<vmem>>) attributes {dimension_semantics = [], scalar_prefetch = 0 : i64, scratch_operands = 0 : i64, tpu.core_type = #tpu.core_type<tc>} {
    %c0 = arith.constant 0 : index
    %c0_0 = arith.constant 0 : index
    %0 = vector.load %arg0[%c0, %c0_0] : memref<24x2xi32, #tpu.memory_space<vmem>>, vector<24x2xi32>
    %1 = tpu.iota {dimensions = array<i32: 1>} : vector<24x16xi32>
    %cst = arith.constant 0.000000e+00 : f32
    %2 = vector.broadcast %cst : f32 to vector<24x16xf32>
    %3 = vector.extract_strided_slice %0 {offsets = [0, 0], sizes = [24, 1], strides = [1, 1]} : vector<24x2xi32> to vector<24x1xi32>
    %4 = vector.broadcast %3 : vector<24x1xi32> to vector<24x16xi32>
    %5 = arith.cmpi eq, %1, %4 : vector<24x16xi32>
    %6 = arith.extui %5 : vector<24x16xi1> to vector<24x16xi32>
    %7 = arith.sitofp %6 : vector<24x16xi32> to vector<24x16xf32>
    %8 = arith.addf %2, %7 : vector<24x16xf32>
    %9 = vector.extract_strided_slice %0 {offsets = [0, 1], sizes = [24, 1], strides = [1, 1]} : vector<24x2xi32> to vector<24x1xi32>
    %10 = vector.broadcast %9 : vector<24x1xi32> to vector<24x16xi32>
    %11 = arith.cmpi eq, %1, %10 : vector<24x16xi32>
    %12 = arith.extui %11 : vector<24x16xi1> to vector<24x16xi32>
    %13 = arith.sitofp %12 : vector<24x16xi32> to vector<24x16xf32>
    %14 = arith.addf %8, %13 : vector<24x16xf32>
    %15 = arith.truncf %14 : vector<24x16xf32> to vector<24x16xbf16>
    %c0_1 = arith.constant 0 : index
    %c0_2 = arith.constant 0 : index
    %16 = vector.load %arg6[%c0_1, %c0_2] : memref<16x128xbf16, #tpu.memory_space<vmem>>, vector<16x128xbf16>
    %cst_3 = arith.constant dense<0.000000e+00> : vector<24x128xf32>
    %17 = tpu.matmul %15, %16, %cst_3 {dimension_numbers = #tpu.dot_dimension_numbers<[1], [0], [0], [1], [0, 0, 1, 1], [], []>} : vector<24x16xbf16>, vector<16x128xbf16>, vector<24x128xf32> -> vector<24x128xf32>
    %18 = tpu.iota {dimensions = array<i32: 1>} : vector<24x2xi32>
    %c0_4 = arith.constant 0 : index
    %c0_5 = arith.constant 0 : index
    %19 = vector.load %arg2[%c0_4, %c0_5] : memref<24x1xi32, #tpu.memory_space<vmem>>, vector<24x1xi32>
    %20 = vector.broadcast %19 : vector<24x1xi32> to vector<24x2xi32>
    %21 = arith.cmpi eq, %18, %20 : vector<24x2xi32>
    %22 = arith.extui %21 : vector<24x2xi1> to vector<24x2xi32>
    %23 = arith.sitofp %22 : vector<24x2xi32> to vector<24x2xf32>
    %24 = arith.truncf %23 : vector<24x2xf32> to vector<24x2xbf16>
    %25 = tpu.iota {dimensions = array<i32: 0>} : vector<2x24xi32>
    %c0_6 = arith.constant 0 : index
    %c0_7 = arith.constant 0 : index
    %26 = vector.load %arg3[%c0_6, %c0_7] : memref<1x24xi32, #tpu.memory_space<vmem>>, vector<1x24xi32>
    %27 = vector.broadcast %26 : vector<1x24xi32> to vector<2x24xi32>
    %28 = arith.cmpi eq, %25, %27 : vector<2x24xi32>
    %29 = arith.extui %28 : vector<2x24xi1> to vector<2x24xi32>
    %30 = arith.sitofp %29 : vector<2x24xi32> to vector<2x24xf32>
    %31 = arith.truncf %30 : vector<2x24xf32> to vector<2x24xbf16>
    %32 = tpu.iota {dimensions = array<i32: 1>} : vector<40x24xi32>
    %c0_8 = arith.constant 0 : index
    %c0_9 = arith.constant 0 : index
    %33 = vector.load %arg4[%c0_8, %c0_9] : memref<40x1xi32, #tpu.memory_space<vmem>>, vector<40x1xi32>
    %34 = vector.broadcast %33 : vector<40x1xi32> to vector<40x24xi32>
    %35 = arith.cmpi eq, %32, %34 : vector<40x24xi32>
    %36 = arith.extui %35 : vector<40x24xi1> to vector<40x24xi32>
    %37 = arith.sitofp %36 : vector<40x24xi32> to vector<40x24xf32>
    %38 = arith.truncf %37 : vector<40x24xf32> to vector<40x24xbf16>
    %39 = tpu.iota {dimensions = array<i32: 0>} : vector<24x40xi32>
    %c0_10 = arith.constant 0 : index
    %c0_11 = arith.constant 0 : index
    %40 = vector.load %arg5[%c0_10, %c0_11] : memref<1x40xi32, #tpu.memory_space<vmem>>, vector<1x40xi32>
    %41 = vector.broadcast %40 : vector<1x40xi32> to vector<24x40xi32>
    %42 = arith.cmpi eq, %39, %41 : vector<24x40xi32>
    %43 = arith.extui %42 : vector<24x40xi1> to vector<24x40xi32>
    %44 = arith.sitofp %43 : vector<24x40xi32> to vector<24x40xf32>
    %45 = arith.truncf %44 : vector<24x40xf32> to vector<24x40xbf16>
    %c0_12 = arith.constant 0 : index
    %c0_13 = arith.constant 0 : index
    %46 = vector.load %arg1[%c0_12, %c0_13] : memref<40x2xi32, #tpu.memory_space<vmem>>, vector<40x2xi32>
    %47 = tpu.iota {dimensions = array<i32: 1>} : vector<40x8xi32>
    %cst_14 = arith.constant 0.000000e+00 : f32
    %48 = vector.broadcast %cst_14 : f32 to vector<40x8xf32>
    %49 = vector.extract_strided_slice %46 {offsets = [0, 0], sizes = [40, 1], strides = [1, 1]} : vector<40x2xi32> to vector<40x1xi32>
    %50 = vector.broadcast %49 : vector<40x1xi32> to vector<40x8xi32>
    %51 = arith.cmpi eq, %47, %50 : vector<40x8xi32>
    %52 = arith.extui %51 : vector<40x8xi1> to vector<40x8xi32>
    %53 = arith.sitofp %52 : vector<40x8xi32> to vector<40x8xf32>
    %54 = arith.addf %48, %53 : vector<40x8xf32>
    %55 = vector.extract_strided_slice %46 {offsets = [0, 1], sizes = [40, 1], strides = [1, 1]} : vector<40x2xi32> to vector<40x1xi32>
    %56 = vector.broadcast %55 : vector<40x1xi32> to vector<40x8xi32>
    %57 = arith.cmpi eq, %47, %56 : vector<40x8xi32>
    %58 = arith.extui %57 : vector<40x8xi1> to vector<40x8xi32>
    %59 = arith.sitofp %58 : vector<40x8xi32> to vector<40x8xf32>
    %60 = arith.addf %54, %59 : vector<40x8xf32>
    %61 = arith.truncf %60 : vector<40x8xf32> to vector<40x8xbf16>
    %cst_15 = arith.constant 0.000000e+00 : f32
    %62 = vector.broadcast %cst_15 : f32 to vector<2x128xf32>
    %63 = arith.truncf %62 : vector<2x128xf32> to vector<2x128xbf16>
    %cst_16 = arith.constant dense<0.000000e+00> : vector<24x128xf32>
    %64 = tpu.matmul %24, %63, %cst_16 {dimension_numbers = #tpu.dot_dimension_numbers<[1], [0], [0], [1], [0, 0, 1, 1], [], []>} : vector<24x2xbf16>, vector<2x128xbf16>, vector<24x128xf32> -> vector<24x128xf32>
    %65 = arith.addf %17, %64 : vector<24x128xf32>
    %66 = arith.truncf %65 : vector<24x128xf32> to vector<24x128xbf16>
    %c0_17 = arith.constant 0 : index
    %c0_18 = arith.constant 0 : index
    %67 = vector.load %arg7[%c0_17, %c0_18] : memref<8x128xbf16, #tpu.memory_space<vmem>>, vector<8x128xbf16>
    %cst_19 = arith.constant dense<0.000000e+00> : vector<40x128xf32>
    %68 = tpu.matmul %61, %67, %cst_19 {dimension_numbers = #tpu.dot_dimension_numbers<[1], [0], [0], [1], [0, 0, 1, 1], [], []>} : vector<40x8xbf16>, vector<8x128xbf16>, vector<40x128xf32> -> vector<40x128xf32>
    %cst_20 = arith.constant dense<0.000000e+00> : vector<40x128xf32>
    %69 = tpu.matmul %38, %66, %cst_20 {dimension_numbers = #tpu.dot_dimension_numbers<[1], [0], [0], [1], [0, 0, 1, 1], [], []>} : vector<40x24xbf16>, vector<24x128xbf16>, vector<40x128xf32> -> vector<40x128xf32>
    %70 = arith.addf %69, %68 : vector<40x128xf32>
    %cst_21 = arith.constant 0.000000e+00 : f32
    %71 = vector.broadcast %cst_21 : f32 to vector<40x128xf32>
    %72 = arith.maximumf %70, %71 : vector<40x128xf32>
    %73 = arith.truncf %72 : vector<40x128xf32> to vector<40x128xbf16>
    %cst_22 = arith.constant dense<0.000000e+00> : vector<24x128xf32>
    %74 = tpu.matmul %45, %73, %cst_22 {dimension_numbers = #tpu.dot_dimension_numbers<[1], [0], [0], [1], [0, 0, 1, 1], [], []>} : vector<24x40xbf16>, vector<40x128xbf16>, vector<24x128xf32> -> vector<24x128xf32>
    %cst_23 = arith.constant 1.000000e+00 : f32
    %75 = vector.broadcast %cst_23 : f32 to vector<24x128xf32>
    %76 = arith.mulf %75, %65 : vector<24x128xf32>
    %77 = arith.addf %76, %74 : vector<24x128xf32>
    %78 = arith.truncf %77 : vector<24x128xf32> to vector<24x128xbf16>
    %c0_24 = arith.constant 0 : index
    %c0_25 = arith.constant 0 : index
    %79 = vector.load %arg8[%c0_24, %c0_25] : memref<128x128xbf16, #tpu.memory_space<vmem>>, vector<128x128xbf16>
    %cst_26 = arith.constant dense<0.000000e+00> : vector<24x128xf32>
    %80 = tpu.matmul %78, %79, %cst_26 {dimension_numbers = #tpu.dot_dimension_numbers<[1], [0], [0], [1], [0, 0, 1, 1], [], []>} : vector<24x128xbf16>, vector<128x128xbf16>, vector<24x128xf32> -> vector<24x128xf32>
    %c0_27 = arith.constant 0 : index
    %c0_28 = arith.constant 0 : index
    %81 = vector.load %arg9[%c0_27, %c0_28] : memref<1x128xf32, #tpu.memory_space<vmem>>, vector<1x128xf32>
    %82 = vector.broadcast %81 : vector<1x128xf32> to vector<24x128xf32>
    %83 = arith.mulf %80, %82 : vector<24x128xf32>
    %c0_29 = arith.constant 0 : index
    %c0_30 = arith.constant 0 : index
    %84 = vector.load %arg10[%c0_29, %c0_30] : memref<1x128xf32, #tpu.memory_space<vmem>>, vector<1x128xf32>
    %85 = vector.broadcast %84 : vector<1x128xf32> to vector<24x128xf32>
    %86 = arith.addf %83, %85 : vector<24x128xf32>
    %cst_31 = arith.constant 0.000000e+00 : f32
    %87 = vector.broadcast %cst_31 : f32 to vector<24x128xf32>
    %88 = arith.maximumf %86, %87 : vector<24x128xf32>
    %89 = arith.truncf %88 : vector<24x128xf32> to vector<24x128xbf16>
    %c0_32 = arith.constant 0 : index
    %c0_33 = arith.constant 0 : index
    %90 = vector.load %arg11[%c0_32, %c0_33] : memref<128x128xbf16, #tpu.memory_space<vmem>>, vector<128x128xbf16>
    %cst_34 = arith.constant dense<0.000000e+00> : vector<24x128xf32>
    %91 = tpu.matmul %89, %90, %cst_34 {dimension_numbers = #tpu.dot_dimension_numbers<[1], [0], [0], [1], [0, 0, 1, 1], [], []>} : vector<24x128xbf16>, vector<128x128xbf16>, vector<24x128xf32> -> vector<24x128xf32>
    %c0_35 = arith.constant 0 : index
    %c0_36 = arith.constant 0 : index
    %92 = vector.load %arg12[%c0_35, %c0_36] : memref<1x128xf32, #tpu.memory_space<vmem>>, vector<1x128xf32>
    %93 = vector.broadcast %92 : vector<1x128xf32> to vector<24x128xf32>
    %94 = arith.mulf %91, %93 : vector<24x128xf32>
    %c0_37 = arith.constant 0 : index
    %c0_38 = arith.constant 0 : index
    %95 = vector.load %arg13[%c0_37, %c0_38] : memref<1x128xf32, #tpu.memory_space<vmem>>, vector<1x128xf32>
    %96 = vector.broadcast %95 : vector<1x128xf32> to vector<24x128xf32>
    %97 = arith.addf %94, %96 : vector<24x128xf32>
    %cst_39 = arith.constant 0.000000e+00 : f32
    %98 = vector.broadcast %cst_39 : f32 to vector<24x128xf32>
    %99 = arith.maximumf %97, %98 : vector<24x128xf32>
    %cst_40 = arith.constant dense<0.000000e+00> : vector<2x128xf32>
    %100 = tpu.matmul %31, %66, %cst_40 {dimension_numbers = #tpu.dot_dimension_numbers<[1], [0], [0], [1], [0, 0, 1, 1], [], []>} : vector<2x24xbf16>, vector<24x128xbf16>, vector<2x128xf32> -> vector<2x128xf32>
    %101 = arith.addf %100, %62 : vector<2x128xf32>
    %102 = arith.truncf %101 : vector<2x128xf32> to vector<2x128xbf16>
    %c0_41 = arith.constant 0 : index
    %c0_42 = arith.constant 0 : index
    %103 = vector.load %arg28[%c0_41, %c0_42] : memref<128x128xbf16, #tpu.memory_space<vmem>>, vector<128x128xbf16>
    %cst_43 = arith.constant dense<0.000000e+00> : vector<2x128xf32>
    %104 = tpu.matmul %102, %103, %cst_43 {dimension_numbers = #tpu.dot_dimension_numbers<[1], [0], [0], [1], [0, 0, 1, 1], [], []>} : vector<2x128xbf16>, vector<128x128xbf16>, vector<2x128xf32> -> vector<2x128xf32>
    %c0_44 = arith.constant 0 : index
    %c0_45 = arith.constant 0 : index
    %105 = vector.load %arg29[%c0_44, %c0_45] : memref<1x128xf32, #tpu.memory_space<vmem>>, vector<1x128xf32>
    %106 = vector.broadcast %105 : vector<1x128xf32> to vector<2x128xf32>
    %107 = arith.mulf %104, %106 : vector<2x128xf32>
    %c0_46 = arith.constant 0 : index
    %c0_47 = arith.constant 0 : index
    %108 = vector.load %arg30[%c0_46, %c0_47] : memref<1x128xf32, #tpu.memory_space<vmem>>, vector<1x128xf32>
    %109 = vector.broadcast %108 : vector<1x128xf32> to vector<2x128xf32>
    %110 = arith.addf %107, %109 : vector<2x128xf32>
    %cst_48 = arith.constant 0.000000e+00 : f32
    %111 = vector.broadcast %cst_48 : f32 to vector<2x128xf32>
    %112 = arith.maximumf %110, %111 : vector<2x128xf32>
    %113 = arith.truncf %112 : vector<2x128xf32> to vector<2x128xbf16>
    %c0_49 = arith.constant 0 : index
    %c0_50 = arith.constant 0 : index
    %114 = vector.load %arg31[%c0_49, %c0_50] : memref<128x128xbf16, #tpu.memory_space<vmem>>, vector<128x128xbf16>
    %cst_51 = arith.constant dense<0.000000e+00> : vector<2x128xf32>
    %115 = tpu.matmul %113, %114, %cst_51 {dimension_numbers = #tpu.dot_dimension_numbers<[1], [0], [0], [1], [0, 0, 1, 1], [], []>} : vector<2x128xbf16>, vector<128x128xbf16>, vector<2x128xf32> -> vector<2x128xf32>
    %c0_52 = arith.constant 0 : index
    %c0_53 = arith.constant 0 : index
    %116 = vector.load %arg32[%c0_52, %c0_53] : memref<1x128xf32, #tpu.memory_space<vmem>>, vector<1x128xf32>
    %117 = vector.broadcast %116 : vector<1x128xf32> to vector<2x128xf32>
    %118 = arith.mulf %115, %117 : vector<2x128xf32>
    %c0_54 = arith.constant 0 : index
    %c0_55 = arith.constant 0 : index
    %119 = vector.load %arg33[%c0_54, %c0_55] : memref<1x128xf32, #tpu.memory_space<vmem>>, vector<1x128xf32>
    %120 = vector.broadcast %119 : vector<1x128xf32> to vector<2x128xf32>
    %121 = arith.addf %118, %120 : vector<2x128xf32>
    %cst_56 = arith.constant 0.000000e+00 : f32
    %122 = vector.broadcast %cst_56 : f32 to vector<2x128xf32>
    %123 = arith.maximumf %121, %122 : vector<2x128xf32>
    %124 = arith.truncf %123 : vector<2x128xf32> to vector<2x128xbf16>
    %cst_57 = arith.constant dense<0.000000e+00> : vector<24x128xf32>
    %125 = tpu.matmul %24, %124, %cst_57 {dimension_numbers = #tpu.dot_dimension_numbers<[1], [0], [0], [1], [0, 0, 1, 1], [], []>} : vector<24x2xbf16>, vector<2x128xbf16>, vector<24x128xf32> -> vector<24x128xf32>
    %126 = arith.addf %99, %125 : vector<24x128xf32>
    %127 = arith.truncf %126 : vector<24x128xf32> to vector<24x128xbf16>
    %c0_58 = arith.constant 0 : index
    %c0_59 = arith.constant 0 : index
    %128 = vector.load %arg14[%c0_58, %c0_59] : memref<8x128xbf16, #tpu.memory_space<vmem>>, vector<8x128xbf16>
    %cst_60 = arith.constant dense<0.000000e+00> : vector<40x128xf32>
    %129 = tpu.matmul %61, %128, %cst_60 {dimension_numbers = #tpu.dot_dimension_numbers<[1], [0], [0], [1], [0, 0, 1, 1], [], []>} : vector<40x8xbf16>, vector<8x128xbf16>, vector<40x128xf32> -> vector<40x128xf32>
    %cst_61 = arith.constant dense<0.000000e+00> : vector<40x128xf32>
    %130 = tpu.matmul %38, %127, %cst_61 {dimension_numbers = #tpu.dot_dimension_numbers<[1], [0], [0], [1], [0, 0, 1, 1], [], []>} : vector<40x24xbf16>, vector<24x128xbf16>, vector<40x128xf32> -> vector<40x128xf32>
    %131 = arith.addf %130, %129 : vector<40x128xf32>
    %cst_62 = arith.constant 0.000000e+00 : f32
    %132 = vector.broadcast %cst_62 : f32 to vector<40x128xf32>
    %133 = arith.maximumf %131, %132 : vector<40x128xf32>
    %134 = arith.truncf %133 : vector<40x128xf32> to vector<40x128xbf16>
    %cst_63 = arith.constant dense<0.000000e+00> : vector<24x128xf32>
    %135 = tpu.matmul %45, %134, %cst_63 {dimension_numbers = #tpu.dot_dimension_numbers<[1], [0], [0], [1], [0, 0, 1, 1], [], []>} : vector<24x40xbf16>, vector<40x128xbf16>, vector<24x128xf32> -> vector<24x128xf32>
    %cst_64 = arith.constant 1.000000e+00 : f32
    %136 = vector.broadcast %cst_64 : f32 to vector<24x128xf32>
    %137 = arith.mulf %136, %126 : vector<24x128xf32>
    %138 = arith.addf %137, %135 : vector<24x128xf32>
    %139 = arith.truncf %138 : vector<24x128xf32> to vector<24x128xbf16>
    %c0_65 = arith.constant 0 : index
    %c0_66 = arith.constant 0 : index
    %140 = vector.load %arg15[%c0_65, %c0_66] : memref<128x128xbf16, #tpu.memory_space<vmem>>, vector<128x128xbf16>
    %cst_67 = arith.constant dense<0.000000e+00> : vector<24x128xf32>
    %141 = tpu.matmul %139, %140, %cst_67 {dimension_numbers = #tpu.dot_dimension_numbers<[1], [0], [0], [1], [0, 0, 1, 1], [], []>} : vector<24x128xbf16>, vector<128x128xbf16>, vector<24x128xf32> -> vector<24x128xf32>
    %c0_68 = arith.constant 0 : index
    %c0_69 = arith.constant 0 : index
    %142 = vector.load %arg16[%c0_68, %c0_69] : memref<1x128xf32, #tpu.memory_space<vmem>>, vector<1x128xf32>
    %143 = vector.broadcast %142 : vector<1x128xf32> to vector<24x128xf32>
    %144 = arith.mulf %141, %143 : vector<24x128xf32>
    %c0_70 = arith.constant 0 : index
    %c0_71 = arith.constant 0 : index
    %145 = vector.load %arg17[%c0_70, %c0_71] : memref<1x128xf32, #tpu.memory_space<vmem>>, vector<1x128xf32>
    %146 = vector.broadcast %145 : vector<1x128xf32> to vector<24x128xf32>
    %147 = arith.addf %144, %146 : vector<24x128xf32>
    %cst_72 = arith.constant 0.000000e+00 : f32
    %148 = vector.broadcast %cst_72 : f32 to vector<24x128xf32>
    %149 = arith.maximumf %147, %148 : vector<24x128xf32>
    %150 = arith.truncf %149 : vector<24x128xf32> to vector<24x128xbf16>
    %c0_73 = arith.constant 0 : index
    %c0_74 = arith.constant 0 : index
    %151 = vector.load %arg18[%c0_73, %c0_74] : memref<128x128xbf16, #tpu.memory_space<vmem>>, vector<128x128xbf16>
    %cst_75 = arith.constant dense<0.000000e+00> : vector<24x128xf32>
    %152 = tpu.matmul %150, %151, %cst_75 {dimension_numbers = #tpu.dot_dimension_numbers<[1], [0], [0], [1], [0, 0, 1, 1], [], []>} : vector<24x128xbf16>, vector<128x128xbf16>, vector<24x128xf32> -> vector<24x128xf32>
    %c0_76 = arith.constant 0 : index
    %c0_77 = arith.constant 0 : index
    %153 = vector.load %arg19[%c0_76, %c0_77] : memref<1x128xf32, #tpu.memory_space<vmem>>, vector<1x128xf32>
    %154 = vector.broadcast %153 : vector<1x128xf32> to vector<24x128xf32>
    %155 = arith.mulf %152, %154 : vector<24x128xf32>
    %c0_78 = arith.constant 0 : index
    %c0_79 = arith.constant 0 : index
    %156 = vector.load %arg20[%c0_78, %c0_79] : memref<1x128xf32, #tpu.memory_space<vmem>>, vector<1x128xf32>
    %157 = vector.broadcast %156 : vector<1x128xf32> to vector<24x128xf32>
    %158 = arith.addf %155, %157 : vector<24x128xf32>
    %cst_80 = arith.constant 0.000000e+00 : f32
    %159 = vector.broadcast %cst_80 : f32 to vector<24x128xf32>
    %160 = arith.maximumf %158, %159 : vector<24x128xf32>
    %cst_81 = arith.constant dense<0.000000e+00> : vector<2x128xf32>
    %161 = tpu.matmul %31, %127, %cst_81 {dimension_numbers = #tpu.dot_dimension_numbers<[1], [0], [0], [1], [0, 0, 1, 1], [], []>} : vector<2x24xbf16>, vector<24x128xbf16>, vector<2x128xf32> -> vector<2x128xf32>
    %162 = arith.addf %161, %123 : vector<2x128xf32>
    %163 = arith.truncf %162 : vector<2x128xf32> to vector<2x128xbf16>
    %c0_82 = arith.constant 0 : index
    %c0_83 = arith.constant 0 : index
    %164 = vector.load %arg34[%c0_82, %c0_83] : memref<128x128xbf16, #tpu.memory_space<vmem>>, vector<128x128xbf16>
    %cst_84 = arith.constant dense<0.000000e+00> : vector<2x128xf32>
    %165 = tpu.matmul %163, %164, %cst_84 {dimension_numbers = #tpu.dot_dimension_numbers<[1], [0], [0], [1], [0, 0, 1, 1], [], []>} : vector<2x128xbf16>, vector<128x128xbf16>, vector<2x128xf32> -> vector<2x128xf32>
    %c0_85 = arith.constant 0 : index
    %c0_86 = arith.constant 0 : index
    %166 = vector.load %arg35[%c0_85, %c0_86] : memref<1x128xf32, #tpu.memory_space<vmem>>, vector<1x128xf32>
    %167 = vector.broadcast %166 : vector<1x128xf32> to vector<2x128xf32>
    %168 = arith.mulf %165, %167 : vector<2x128xf32>
    %c0_87 = arith.constant 0 : index
    %c0_88 = arith.constant 0 : index
    %169 = vector.load %arg36[%c0_87, %c0_88] : memref<1x128xf32, #tpu.memory_space<vmem>>, vector<1x128xf32>
    %170 = vector.broadcast %169 : vector<1x128xf32> to vector<2x128xf32>
    %171 = arith.addf %168, %170 : vector<2x128xf32>
    %cst_89 = arith.constant 0.000000e+00 : f32
    %172 = vector.broadcast %cst_89 : f32 to vector<2x128xf32>
    %173 = arith.maximumf %171, %172 : vector<2x128xf32>
    %174 = arith.truncf %173 : vector<2x128xf32> to vector<2x128xbf16>
    %c0_90 = arith.constant 0 : index
    %c0_91 = arith.constant 0 : index
    %175 = vector.load %arg37[%c0_90, %c0_91] : memref<128x128xbf16, #tpu.memory_space<vmem>>, vector<128x128xbf16>
    %cst_92 = arith.constant dense<0.000000e+00> : vector<2x128xf32>
    %176 = tpu.matmul %174, %175, %cst_92 {dimension_numbers = #tpu.dot_dimension_numbers<[1], [0], [0], [1], [0, 0, 1, 1], [], []>} : vector<2x128xbf16>, vector<128x128xbf16>, vector<2x128xf32> -> vector<2x128xf32>
    %c0_93 = arith.constant 0 : index
    %c0_94 = arith.constant 0 : index
    %177 = vector.load %arg38[%c0_93, %c0_94] : memref<1x128xf32, #tpu.memory_space<vmem>>, vector<1x128xf32>
    %178 = vector.broadcast %177 : vector<1x128xf32> to vector<2x128xf32>
    %179 = arith.mulf %176, %178 : vector<2x128xf32>
    %c0_95 = arith.constant 0 : index
    %c0_96 = arith.constant 0 : index
    %180 = vector.load %arg39[%c0_95, %c0_96] : memref<1x128xf32, #tpu.memory_space<vmem>>, vector<1x128xf32>
    %181 = vector.broadcast %180 : vector<1x128xf32> to vector<2x128xf32>
    %182 = arith.addf %179, %181 : vector<2x128xf32>
    %cst_97 = arith.constant 0.000000e+00 : f32
    %183 = vector.broadcast %cst_97 : f32 to vector<2x128xf32>
    %184 = arith.maximumf %182, %183 : vector<2x128xf32>
    %185 = arith.truncf %184 : vector<2x128xf32> to vector<2x128xbf16>
    %cst_98 = arith.constant dense<0.000000e+00> : vector<24x128xf32>
    %186 = tpu.matmul %24, %185, %cst_98 {dimension_numbers = #tpu.dot_dimension_numbers<[1], [0], [0], [1], [0, 0, 1, 1], [], []>} : vector<24x2xbf16>, vector<2x128xbf16>, vector<24x128xf32> -> vector<24x128xf32>
    %187 = arith.addf %160, %186 : vector<24x128xf32>
    %188 = arith.truncf %187 : vector<24x128xf32> to vector<24x128xbf16>
    %c0_99 = arith.constant 0 : index
    %c0_100 = arith.constant 0 : index
    %189 = vector.load %arg21[%c0_99, %c0_100] : memref<8x128xbf16, #tpu.memory_space<vmem>>, vector<8x128xbf16>
    %cst_101 = arith.constant dense<0.000000e+00> : vector<40x128xf32>
    %190 = tpu.matmul %61, %189, %cst_101 {dimension_numbers = #tpu.dot_dimension_numbers<[1], [0], [0], [1], [0, 0, 1, 1], [], []>} : vector<40x8xbf16>, vector<8x128xbf16>, vector<40x128xf32> -> vector<40x128xf32>
    %cst_102 = arith.constant dense<0.000000e+00> : vector<40x128xf32>
    %191 = tpu.matmul %38, %188, %cst_102 {dimension_numbers = #tpu.dot_dimension_numbers<[1], [0], [0], [1], [0, 0, 1, 1], [], []>} : vector<40x24xbf16>, vector<24x128xbf16>, vector<40x128xf32> -> vector<40x128xf32>
    %192 = arith.addf %191, %190 : vector<40x128xf32>
    %cst_103 = arith.constant 0.000000e+00 : f32
    %193 = vector.broadcast %cst_103 : f32 to vector<40x128xf32>
    %194 = arith.maximumf %192, %193 : vector<40x128xf32>
    %195 = arith.truncf %194 : vector<40x128xf32> to vector<40x128xbf16>
    %cst_104 = arith.constant dense<0.000000e+00> : vector<24x128xf32>
    %196 = tpu.matmul %45, %195, %cst_104 {dimension_numbers = #tpu.dot_dimension_numbers<[1], [0], [0], [1], [0, 0, 1, 1], [], []>} : vector<24x40xbf16>, vector<40x128xbf16>, vector<24x128xf32> -> vector<24x128xf32>
    %cst_105 = arith.constant 1.000000e+00 : f32
    %197 = vector.broadcast %cst_105 : f32 to vector<24x128xf32>
    %198 = arith.mulf %197, %187 : vector<24x128xf32>
    %199 = arith.addf %198, %196 : vector<24x128xf32>
    %200 = arith.truncf %199 : vector<24x128xf32> to vector<24x128xbf16>
    %c0_106 = arith.constant 0 : index
    %c0_107 = arith.constant 0 : index
    %201 = vector.load %arg22[%c0_106, %c0_107] : memref<128x128xbf16, #tpu.memory_space<vmem>>, vector<128x128xbf16>
    %cst_108 = arith.constant dense<0.000000e+00> : vector<24x128xf32>
    %202 = tpu.matmul %200, %201, %cst_108 {dimension_numbers = #tpu.dot_dimension_numbers<[1], [0], [0], [1], [0, 0, 1, 1], [], []>} : vector<24x128xbf16>, vector<128x128xbf16>, vector<24x128xf32> -> vector<24x128xf32>
    %c0_109 = arith.constant 0 : index
    %c0_110 = arith.constant 0 : index
    %203 = vector.load %arg23[%c0_109, %c0_110] : memref<1x128xf32, #tpu.memory_space<vmem>>, vector<1x128xf32>
    %204 = vector.broadcast %203 : vector<1x128xf32> to vector<24x128xf32>
    %205 = arith.mulf %202, %204 : vector<24x128xf32>
    %c0_111 = arith.constant 0 : index
    %c0_112 = arith.constant 0 : index
    %206 = vector.load %arg24[%c0_111, %c0_112] : memref<1x128xf32, #tpu.memory_space<vmem>>, vector<1x128xf32>
    %207 = vector.broadcast %206 : vector<1x128xf32> to vector<24x128xf32>
    %208 = arith.addf %205, %207 : vector<24x128xf32>
    %cst_113 = arith.constant 0.000000e+00 : f32
    %209 = vector.broadcast %cst_113 : f32 to vector<24x128xf32>
    %210 = arith.maximumf %208, %209 : vector<24x128xf32>
    %211 = arith.truncf %210 : vector<24x128xf32> to vector<24x128xbf16>
    %c0_114 = arith.constant 0 : index
    %c0_115 = arith.constant 0 : index
    %212 = vector.load %arg25[%c0_114, %c0_115] : memref<128x128xbf16, #tpu.memory_space<vmem>>, vector<128x128xbf16>
    %cst_116 = arith.constant dense<0.000000e+00> : vector<24x128xf32>
    %213 = tpu.matmul %211, %212, %cst_116 {dimension_numbers = #tpu.dot_dimension_numbers<[1], [0], [0], [1], [0, 0, 1, 1], [], []>} : vector<24x128xbf16>, vector<128x128xbf16>, vector<24x128xf32> -> vector<24x128xf32>
    %c0_117 = arith.constant 0 : index
    %c0_118 = arith.constant 0 : index
    %214 = vector.load %arg26[%c0_117, %c0_118] : memref<1x128xf32, #tpu.memory_space<vmem>>, vector<1x128xf32>
    %215 = vector.broadcast %214 : vector<1x128xf32> to vector<24x128xf32>
    %216 = arith.mulf %213, %215 : vector<24x128xf32>
    %c0_119 = arith.constant 0 : index
    %c0_120 = arith.constant 0 : index
    %217 = vector.load %arg27[%c0_119, %c0_120] : memref<1x128xf32, #tpu.memory_space<vmem>>, vector<1x128xf32>
    %218 = vector.broadcast %217 : vector<1x128xf32> to vector<24x128xf32>
    %219 = arith.addf %216, %218 : vector<24x128xf32>
    %c0_121 = arith.constant 0 : index
    %c0_122 = arith.constant 0 : index
    %220 = vector.load %arg40[%c0_121, %c0_122] : memref<24x128xf32, #tpu.memory_space<vmem>>, vector<24x128xf32>
    tpu.vector_store %arg40[%c0_121, %c0_122], %219 {strides = array<i32>} : memref<24x128xf32, #tpu.memory_space<vmem>>, vector<24x128xf32>,
    return
  }
}

</mosaic_0001>

<llo_original>
// kernel: tpu_custom_call.1
$region0: #{tpu_custom_call.1}
  #allocation0 [shape = 'u32[]', space=smem, size = 0x4, offset = 0x4, fixed_abs, tag = 'smem constant byte address 0x4 - core index']
  #allocation1 [shape = 'u32[144,128]{1,0:T(1,128)}', space=vmem, size = 0x12000, scoped, tag = 'internal scratch']
  %s0 = inlined_call_operand.smem [shape: u32[41], index: -1, kind: input, shape index: {}]
  %s1 = sld [smem:[%s0]]
  %s2 = scalar_lea.smem %s0, 1
  %s3 = sld [smem:[%s2]]
  %s4 = scalar_lea.smem %s0, 2
  %s5 = sld [smem:[%s4]]
  %s6 = scalar_lea.smem %s0, 3
  %s7 = sld [smem:[%s6]]
  %s8 = scalar_lea.smem %s0, 4
  %s9 = sld [smem:[%s8]]
  %s10 = scalar_lea.smem %s0, 5
  %s11 = sld [smem:[%s10]]
  %s12 = scalar_lea.smem %s0, 6
  %s13 = sld [smem:[%s12]]
  %s14 = scalar_lea.smem %s0, 7
  %s15 = sld [smem:[%s14]]
  %s16 = scalar_lea.smem %s0, 8
  %s17 = sld [smem:[%s16]]
  %s18 = scalar_lea.smem %s0, 9
  %s19 = sld [smem:[%s18]]
  %s20 = scalar_lea.smem %s0, 10
  %s21 = sld [smem:[%s20]]
  %s22 = scalar_lea.smem %s0, 11
  %s23 = sld [smem:[%s22]]
  %s24 = scalar_lea.smem %s0, 12
  %s25 = sld [smem:[%s24]]
  %s26 = scalar_lea.smem %s0, 13
  %s27 = sld [smem:[%s26]]
  %s28 = scalar_lea.smem %s0, 14
  %s29 = sld [smem:[%s28]]
  %s30 = scalar_lea.smem %s0, 15
  %s31 = sld [smem:[%s30]]
  %s32 = scalar_lea.smem %s0, 16
  %s33 = sld [smem:[%s32]]
  %s34 = scalar_lea.smem %s0, 17
  %s35 = sld [smem:[%s34]]
  %s36 = scalar_lea.smem %s0, 18
  %s37 = sld [smem:[%s36]]
  %s38 = scalar_lea.smem %s0, 19
  %s39 = sld [smem:[%s38]]
  %s40 = scalar_lea.smem %s0, 20
  %s41 = sld [smem:[%s40]]
  %s42 = scalar_lea.smem %s0, 21
  %s43 = sld [smem:[%s42]]
  %s44 = scalar_lea.smem %s0, 22
  %s45 = sld [smem:[%s44]]
  %s46 = scalar_lea.smem %s0, 23
  %s47 = sld [smem:[%s46]]
  %s48 = scalar_lea.smem %s0, 24
  %s49 = sld [smem:[%s48]]
  %s50 = scalar_lea.smem %s0, 25
  %s51 = sld [smem:[%s50]]
  %s52 = scalar_lea.smem %s0, 26
  %s53 = sld [smem:[%s52]]
  %s54 = scalar_lea.smem %s0, 27
  %s55 = sld [smem:[%s54]]
  %s56 = scalar_lea.smem %s0, 28
  %s57 = sld [smem:[%s56]]
  %s58 = scalar_lea.smem %s0, 29
  %s59 = sld [smem:[%s58]]
  %s60 = scalar_lea.smem %s0, 30
  %s61 = sld [smem:[%s60]]
  %s62 = scalar_lea.smem %s0, 31
  %s63 = sld [smem:[%s62]]
  %s64 = scalar_lea.smem %s0, 32
  %s65 = sld [smem:[%s64]]
  %s66 = scalar_lea.smem %s0, 33
  %s67 = sld [smem:[%s66]]
  %s68 = scalar_lea.smem %s0, 34
  %s69 = sld [smem:[%s68]]
  %s70 = scalar_lea.smem %s0, 35
  %s71 = sld [smem:[%s70]]
  %s72 = scalar_lea.smem %s0, 36
  %s73 = sld [smem:[%s72]]
  %s74 = scalar_lea.smem %s0, 37
  %s75 = sld [smem:[%s74]]
  %s76 = scalar_lea.smem %s0, 38
  %s77 = sld [smem:[%s76]]
  %s78 = scalar_lea.smem %s0, 39
  %s79 = sld [smem:[%s78]]
  %s80 = scalar_lea.smem %s0, 40
  %s81 = sld [smem:[%s80]]
  %s82 = sld [smem:[#allocation0]]
  $region286: #{tpu_custom_call.1} parent=0
    _
  %s84 = ssub.s32 1, %s82
  %s85 = scalar_select 0, %s84, %s82
  $region1: #{tpu_custom_call.1} parent=0
    #allocation2 [shape = 'u8[512]{0}', space=vmem, size = 0x400, scoped, tag = 'input window, operand 3, single buffered']
    #allocation3 [shape = 's32[1]{0}', space=sflag, size = 0x4, scoped, tag = 'scoped memory for tpu_custom_call.1']
    #allocation4 [shape = 's32[1]{0}', space=sflag, size = 0x4, scoped, tag = 'scoped memory for tpu_custom_call.1']
    #allocation5 [shape = 'u8[512]{0}', space=vmem, size = 0x400, scoped, tag = 'input window, operand 5, single buffered']
    #allocation6 [shape = 's32[1]{0}', space=sflag, size = 0x4, scoped, tag = 'scoped memory for tpu_custom_call.1']
    #allocation7 [shape = 'u8[4096]{0}', space=vmem, size = 0x1000, scoped, tag = 'input window, operand 6, single buffered']
    #allocation8 [shape = 'u8[2048]{0}', space=vmem, size = 0x800, scoped, tag = 'input window, operand 7, single buffered']
    #allocation9 [shape = 's32[1]{0}', space=sflag, size = 0x4, scoped, tag = 'scoped memory for tpu_custom_call.1']
    #allocation10 [shape = 'u8[512]{0}', space=vmem, size = 0x400, scoped, tag = 'input window, operand 9, single buffered']
    #allocation11 [shape = 'u8[512]{0}', space=vmem, size = 0x400, scoped, tag = 'input window, operand 10, single buffered']
    #allocation12 [shape = 's32[1]{0}', space=sflag, size = 0x4, scoped, tag = 'scoped memory for tpu_custom_call.1']
    #allocation13 [shape = 'u8[512]{0}', space=vmem, size = 0x400, scoped, tag = 'input window, operand 12, single buffered']
    #allocation14 [shape = 'u8[512]{0}', space=vmem, size = 0x400, scoped, tag = 'input window, operand 13, single buffered']
    #allocation15 [shape = 's32[1]{0}', space=sflag, size = 0x4, scoped, tag = 'scoped memory for tpu_custom_call.1']
    #allocation16 [shape = 'u8[2048]{0}', space=vmem, size = 0x800, scoped, tag = 'input window, operand 14, single buffered']
    #allocation17 [shape = 'u8[32768]{0}', space=vmem, size = 0x8000, scoped, tag = 'input window, operand 15, single buffered']
    #allocation18 [shape = 's32[1]{0}', space=sflag, size = 0x4, scoped, tag = 'scoped memory for tpu_custom_call.1']
    #allocation19 [shape = 'u8[512]{0}', space=vmem, size = 0x400, scoped, tag = 'input window, operand 16, single buffered']
    #allocation20 [shape = 'u8[512]{0}', space=vmem, size = 0x400, scoped, tag = 'input window, operand 17, single buffered']
    #allocation21 [shape = 's32[1]{0}', space=sflag, size = 0x4, scoped, tag = 'scoped memory for tpu_custom_call.1']
    #allocation22 [shape = 'u8[32768]{0}', space=vmem, size = 0x8000, scoped, tag = 'input window, operand 18, single buffered']
    #allocation23 [shape = 'u8[512]{0}', space=vmem, size = 0x400, scoped, tag = 'input window, operand 19, single buffered']
    #allocation24 [shape = 's32[1]{0}', space=sflag, size = 0x4, scoped, tag = 'scoped memory for tpu_custom_call.1']
    #allocation25 [shape = 'u8[512]{0}', space=vmem, size = 0x400, scoped, tag = 'input window, operand 20, single buffered']
    #allocation26 [shape = 'u8[2048]{0}', space=vmem, size = 0x800, scoped, tag = 'input window, operand 21, single buffered']
    #allocation27 [shape = 's32[1]{0}', space=sflag, size = 0x4, scoped, tag = 'scoped memory for tpu_custom_call.1']
    #allocation28 [shape = 'u8[32768]{0}', space=vmem, size = 0x8000, scoped, tag = 'input window, operand 22, single buffered']
    #allocation29 [shape = 'u8[512]{0}', space=vmem, size = 0x400, scoped, tag = 'input window, operand 23, single buffered']
    #allocation30 [shape = 's32[1]{0}', space=sflag, size = 0x4, scoped, tag = 'scoped memory for tpu_custom_call.1']
    #allocation31 [shape = 'u8[512]{0}', space=vmem, size = 0x400, scoped, tag = 'input window, operand 24, single buffered']
    #allocation32 [shape = 'u8[32768]{0}', space=vmem, size = 0x8000, scoped, tag = 'input window, operand 25, single buffered']
    #allocation33 [shape = 's32[1]{0}', space=sflag, size = 0x4, scoped, tag = 'scoped memory for tpu_custom_call.1']
    #allocation34 [shape = 'u8[512]{0}', space=vmem, size = 0x400, scoped, tag = 'input window, operand 26, single buffered']
    #allocation35 [shape = 'u8[512]{0}', space=vmem, size = 0x400, scoped, tag = 'input window, operand 27, single buffered']
    #allocation36 [shape = 's32[1]{0}', space=sflag, size = 0x4, scoped, tag = 'scoped memory for tpu_custom_call.1']
    #allocation37 [shape = 'u8[32768]{0}', space=vmem, size = 0x8000, scoped, tag = 'input window, operand 28, single buffered']
    #allocation38 [shape = 'u8[512]{0}', space=vmem, size = 0x400, scoped, tag = 'input window, operand 29, single buffered']
    #allocation39 [shape = 's32[1]{0}', space=sflag, size = 0x4, scoped, tag = 'scoped memory for tpu_custom_call.1']
    #allocation40 [shape = 'u8[512]{0}', space=vmem, size = 0x400, scoped, tag = 'input window, operand 30, single buffered']
    #allocation41 [shape = 'u8[32768]{0}', space=vmem, size = 0x8000, scoped, tag = 'input window, operand 31, single buffered']
    #allocation42 [shape = 's32[1]{0}', space=sflag, size = 0x4, scoped, tag = 'scoped memory for tpu_custom_call.1']
    #allocation43 [shape = 'u8[512]{0}', space=vmem, size = 0x400, scoped, tag = 'input window, operand 32, single buffered']
    #allocation44 [shape = 'u8[512]{0}', space=vmem, size = 0x400, scoped, tag = 'input window, operand 33, single buffered']
    #allocation45 [shape = 's32[1]{0}', space=sflag, size = 0x4, scoped, tag = 'scoped memory for tpu_custom_call.1']
    #allocation46 [shape = 'u8[32768]{0}', space=vmem, size = 0x8000, scoped, tag = 'input window, operand 37, single buffered']
    #allocation47 [shape = 'u8[12288]{0}', space=vmem, size = 0x3000, scoped, tag = 'output window, operand 0, single buffered']
    %86 = vsyncpa [#allocation3], 0
    %87 = vsyncpa [#allocation6], 0
    %88 = vsyncpa [#allocation9], 0
    %89 = vsyncpa [#allocation12], 0
    %90 = vsyncpa [#allocation15], 0
    %91 = vsyncpa [#allocation18], 0
    %92 = vsyncpa [#allocation21], 0
    %93 = vsyncpa [#allocation24], 0
    %94 = vsyncpa [#allocation27], 0
    %95 = vsyncpa [#allocation30], 0
    %96 = vsyncpa [#allocation33], 0
    %97 = vsyncpa [#allocation36], 0
    %98 = vsyncpa [#allocation39], 0
    %99 = vsyncpa [#allocation42], 0
    %100 = vsyncpa [#allocation45], 0
    %101 = vsyncpa [#allocation4], 0
    // Predicated region
    $region2: #{tpu_custom_call.1} parent=1 // pred_check
      _
    $region3: #{tpu_custom_call.1} parent=1 // pred_check_branch
      %103 = sbr.rel (0) target = $region5
    $region4: #{tpu_custom_call.1} parent=1 // pred_region
      _
    $region5: #{tpu_custom_call.1} parent=1 // pred_fallthru
      _
    // Predicated region
    $region6: #{tpu_custom_call.1} parent=1 // pred_check
      _
    $region7: #{tpu_custom_call.1} parent=1 // pred_check_branch
      %105 = sbr.rel (0) target = $region9
    $region8: #{tpu_custom_call.1} parent=1 // pred_region
      _
    $region9: #{tpu_custom_call.1} parent=1 // pred_fallthru
      _
    // Predicated region
    $region10: #{tpu_custom_call.1} parent=1 // pred_check
      _
    $region11: #{tpu_custom_call.1} parent=1 // pred_check_branch
      %107 = sbr.rel (0) target = $region13
    $region12: #{tpu_custom_call.1} parent=1 // pred_region
      _
    $region13: #{tpu_custom_call.1} parent=1 // pred_fallthru
      _
    // Predicated region
    $region14: #{tpu_custom_call.1} parent=1 // pred_check
      _
    $region15: #{tpu_custom_call.1} parent=1 // pred_check_branch
      %109 = sbr.rel (0) target = $region17
    $region16: #{tpu_custom_call.1} parent=1 // pred_region
      %s111 = ssub.s32 16, 16
      %112 = vsyncadd [#allocation3], %s111
      %s114 = sshll.u32 [#allocation2], 4
      %s115 = int_to_ptr.vmem [resolvable:$true] %s114
      %117 = dma.hbm_to_vmem [thread:$0]  %s7, 16, %s115, [#allocation3]
    $region17: #{tpu_custom_call.1} parent=1 // pred_fallthru
      _
    // Predicated region
    $region18: #{tpu_custom_call.1} parent=1 // pred_check
      _
    $region19: #{tpu_custom_call.1} parent=1 // pred_check_branch
      %119 = sbr.rel (0) target = $region21
    $region20: #{tpu_custom_call.1} parent=1 // pred_region
      _
    $region21: #{tpu_custom_call.1} parent=1 // pred_fallthru
      _
    // Predicated region
    $region22: #{tpu_custom_call.1} parent=1 // pred_check
      _
    $region23: #{tpu_custom_call.1} parent=1 // pred_check_branch
      %121 = sbr.rel (0) target = $region25
    $region24: #{tpu_custom_call.1} parent=1 // pred_region
      %s123 = ssub.s32 16, 16
      %124 = vsyncadd [#allocation6], %s123
      %s126 = sshll.u32 [#allocation5], 4
      %s127 = int_to_ptr.vmem [resolvable:$true] %s126
      %129 = dma.hbm_to_vmem [thread:$0]  %s11, 16, %s127, [#allocation6]
    $region25: #{tpu_custom_call.1} parent=1 // pred_fallthru
      _
    // Predicated region
    $region26: #{tpu_custom_call.1} parent=1 // pred_check
      _
    $region27: #{tpu_custom_call.1} parent=1 // pred_check_branch
      %131 = sbr.rel (0) target = $region29
    $region28: #{tpu_custom_call.1} parent=1 // pred_region
      %s133 = ssub.s32 128, 128
      %134 = vsyncadd [#allocation6], %s133
      %s135 = sshll.u32 [#allocation7], 4
      %s136 = int_to_ptr.vmem [resolvable:$true] %s135
      %141 = dma.hbm_to_vmem [thread:$0]  %s13, 128, %s136, [#allocation6], 64, 64, 4
    $region29: #{tpu_custom_call.1} parent=1 // pred_fallthru
      _
    // Predicated region
    $region30: #{tpu_custom_call.1} parent=1 // pred_check
      _
    $region31: #{tpu_custom_call.1} parent=1 // pred_check_branch
      %143 = sbr.rel (0) target = $region33
    $region32: #{tpu_custom_call.1} parent=1 // pred_region
      %s145 = ssub.s32 64, 64
      %146 = vsyncadd [#allocation9], %s145
      %s148 = sshll.u32 [#allocation8], 4
      %s149 = int_to_ptr.vmem [resolvable:$true] %s148
      %151 = dma.hbm_to_vmem [thread:$0]  %s15, 64, %s149, [#allocation9]
    $region33: #{tpu_custom_call.1} parent=1 // pred_fallthru
      _
    // Predicated region
    $region34: #{tpu_custom_call.1} parent=1 // pred_check
      _
    $region35: #{tpu_custom_call.1} parent=1 // pred_check_branch
      %153 = sbr.rel (0) target = $region37
    $region36: #{tpu_custom_call.1} parent=1 // pred_region
      _
    $region37: #{tpu_custom_call.1} parent=1 // pred_fallthru
      _
    // Predicated region
    $region38: #{tpu_custom_call.1} parent=1 // pred_check
      _
    $region39: #{tpu_custom_call.1} parent=1 // pred_check_branch
      %155 = sbr.rel (0) target = $region41
    $region40: #{tpu_custom_call.1} parent=1 // pred_region
      %s157 = ssub.s32 16, 16
      %158 = vsyncadd [#allocation9], %s157
      %s160 = sshll.u32 [#allocation10], 4
      %s161 = int_to_ptr.vmem [resolvable:$true] %s160
      %163 = dma.hbm_to_vmem [thread:$0]  %s19, 16, %s161, [#allocation9]
    $region41: #{tpu_custom_call.1} parent=1 // pred_fallthru
      _
    // Predicated region
    $region42: #{tpu_custom_call.1} parent=1 // pred_check
      _
    $region43: #{tpu_custom_call.1} parent=1 // pred_check_branch
      %165 = sbr.rel (0) target = $region45
    $region44: #{tpu_custom_call.1} parent=1 // pred_region
      %s167 = ssub.s32 16, 16
      %168 = vsyncadd [#allocation12], %s167
      %s170 = sshll.u32 [#allocation11], 4
      %s171 = int_to_ptr.vmem [resolvable:$true] %s170
      %173 = dma.hbm_to_vmem [thread:$0]  %s21, 16, %s171, [#allocation12]
    $region45: #{tpu_custom_call.1} parent=1 // pred_fallthru
      _
    // Predicated region
    $region46: #{tpu_custom_call.1} parent=1 // pred_check
      _
    $region47: #{tpu_custom_call.1} parent=1 // pred_check_branch
      %175 = sbr.rel (0) target = $region49
    $region48: #{tpu_custom_call.1} parent=1 // pred_region
      _
    $region49: #{tpu_custom_call.1} parent=1 // pred_fallthru
      _
    // Predicated region
    $region50: #{tpu_custom_call.1} parent=1 // pred_check
      _
    $region51: #{tpu_custom_call.1} parent=1 // pred_check_branch
      %177 = sbr.rel (0) target = $region53
    $region52: #{tpu_custom_call.1} parent=1 // pred_region
      %s179 = ssub.s32 16, 16
      %180 = vsyncadd [#allocation12], %s179
      %s182 = sshll.u32 [#allocation13], 4
      %s183 = int_to_ptr.vmem [resolvable:$true] %s182
      %185 = dma.hbm_to_vmem [thread:$0]  %s25, 16, %s183, [#allocation12]
    $region53: #{tpu_custom_call.1} parent=1 // pred_fallthru
      _
    // Predicated region
    $region54: #{tpu_custom_call.1} parent=1 // pred_check
      _
    $region55: #{tpu_custom_call.1} parent=1 // pred_check_branch
      %187 = sbr.rel (0) target = $region57
    $region56: #{tpu_custom_call.1} parent=1 // pred_region
      %s189 = ssub.s32 16, 16
      %190 = vsyncadd [#allocation15], %s189
      %s192 = sshll.u32 [#allocation14], 4
      %s193 = int_to_ptr.vmem [resolvable:$true] %s192
      %195 = dma.hbm_to_vmem [thread:$0]  %s27, 16, %s193, [#allocation15]
    $region57: #{tpu_custom_call.1} parent=1 // pred_fallthru
      _
    // Predicated region
    $region58: #{tpu_custom_call.1} parent=1 // pred_check
      _
    $region59: #{tpu_custom_call.1} parent=1 // pred_check_branch
      %197 = sbr.rel (0) target = $region61
    $region60: #{tpu_custom_call.1} parent=1 // pred_region
      %s199 = ssub.s32 64, 64
      %200 = vsyncadd [#allocation15], %s199
      %s202 = sshll.u32 [#allocation16], 4
      %s203 = int_to_ptr.vmem [resolvable:$true] %s202
      %205 = dma.hbm_to_vmem [thread:$0]  %s29, 64, %s203, [#allocation15]
    $region61: #{tpu_custom_call.1} parent=1 // pred_fallthru
      _
    // Predicated region
    $region62: #{tpu_custom_call.1} parent=1 // pred_check
      _
    $region63: #{tpu_custom_call.1} parent=1 // pred_check_branch
      %207 = sbr.rel (0) target = $region65
    $region64: #{tpu_custom_call.1} parent=1 // pred_region
      %s209 = ssub.s32 1024, 1024
      %210 = vsyncadd [#allocation18], %s209
      %s211 = sshll.u32 [#allocation17], 4
      %s212 = int_to_ptr.vmem [resolvable:$true] %s211
      %217 = dma.hbm_to_vmem [thread:$0]  %s31, 1024, %s212, [#allocation18], 64, 64, 4
    $region65: #{tpu_custom_call.1} parent=1 // pred_fallthru
      _
    // Predicated region
    $region66: #{tpu_custom_call.1} parent=1 // pred_check
      _
    $region67: #{tpu_custom_call.1} parent=1 // pred_check_branch
      %219 = sbr.rel (0) target = $region69
    $region68: #{tpu_custom_call.1} parent=1 // pred_region
      %s221 = ssub.s32 16, 16
      %222 = vsyncadd [#allocation18], %s221
      %s224 = sshll.u32 [#allocation19], 4
      %s225 = int_to_ptr.vmem [resolvable:$true] %s224
      %227 = dma.hbm_to_vmem [thread:$0]  %s33, 16, %s225, [#allocation18]
    $region69: #{tpu_custom_call.1} parent=1 // pred_fallthru
      _
    // Predicated region
    $region70: #{tpu_custom_call.1} parent=1 // pred_check
      _
    $region71: #{tpu_custom_call.1} parent=1 // pred_check_branch
      %229 = sbr.rel (0) target = $region73
    $region72: #{tpu_custom_call.1} parent=1 // pred_region
      %s231 = ssub.s32 16, 16
      %232 = vsyncadd [#allocation21], %s231
      %s234 = sshll.u32 [#allocation20], 4
      %s235 = int_to_ptr.vmem [resolvable:$true] %s234
      %237 = dma.hbm_to_vmem [thread:$0]  %s35, 16, %s235, [#allocation21]
    $region73: #{tpu_custom_call.1} parent=1 // pred_fallthru
      _
    // Predicated region
    $region74: #{tpu_custom_call.1} parent=1 // pred_check
      _
    $region75: #{tpu_custom_call.1} parent=1 // pred_check_branch
      %239 = sbr.rel (0) target = $region77
    $region76: #{tpu_custom_call.1} parent=1 // pred_region
      %s241 = ssub.s32 1024, 1024
      %242 = vsyncadd [#allocation21], %s241
      %s243 = sshll.u32 [#allocation22], 4
      %s244 = int_to_ptr.vmem [resolvable:$true] %s243
      %249 = dma.hbm_to_vmem [thread:$0]  %s37, 1024, %s244, [#allocation21], 64, 64, 4
    $region77: #{tpu_custom_call.1} parent=1 // pred_fallthru
      _
    // Predicated region
    $region78: #{tpu_custom_call.1} parent=1 // pred_check
      _
    $region79: #{tpu_custom_call.1} parent=1 // pred_check_branch
      %251 = sbr.rel (0) target = $region81
    $region80: #{tpu_custom_call.1} parent=1 // pred_region
      %s253 = ssub.s32 16, 16
      %254 = vsyncadd [#allocation24], %s253
      %s256 = sshll.u32 [#allocation23], 4
      %s257 = int_to_ptr.vmem [resolvable:$true] %s256
      %259 = dma.hbm_to_vmem [thread:$0]  %s39, 16, %s257, [#allocation24]
    $region81: #{tpu_custom_call.1} parent=1 // pred_fallthru
      _
    // Predicated region
    $region82: #{tpu_custom_call.1} parent=1 // pred_check
      _
    $region83: #{tpu_custom_call.1} parent=1 // pred_check_branch
      %261 = sbr.rel (0) target = $region85
    $region84: #{tpu_custom_call.1} parent=1 // pred_region
      %s263 = ssub.s32 16, 16
      %264 = vsyncadd [#allocation24], %s263
      %s266 = sshll.u32 [#allocation25], 4
      %s267 = int_to_ptr.vmem [resolvable:$true] %s266
      %269 = dma.hbm_to_vmem [thread:$0]  %s41, 16, %s267, [#allocation24]
    $region85: #{tpu_custom_call.1} parent=1 // pred_fallthru
      _
    // Predicated region
    $region86: #{tpu_custom_call.1} parent=1 // pred_check
      _
    $region87: #{tpu_custom_call.1} parent=1 // pred_check_branch
      %271 = sbr.rel (0) target = $region89
    $region88: #{tpu_custom_call.1} parent=1 // pred_region
      %s273 = ssub.s32 64, 64
      %274 = vsyncadd [#allocation27], %s273
      %s276 = sshll.u32 [#allocation26], 4
      %s277 = int_to_ptr.vmem [resolvable:$true] %s276
      %279 = dma.hbm_to_vmem [thread:$0]  %s43, 64, %s277, [#allocation27]
    $region89: #{tpu_custom_call.1} parent=1 // pred_fallthru
      _
    // Predicated region
    $region90: #{tpu_custom_call.1} parent=1 // pred_check
      _
    $region91: #{tpu_custom_call.1} parent=1 // pred_check_branch
      %281 = sbr.rel (0) target = $region93
    $region92: #{tpu_custom_call.1} parent=1 // pred_region
      %s283 = ssub.s32 1024, 1024
      %284 = vsyncadd [#allocation27], %s283
      %s285 = sshll.u32 [#allocation28], 4
      %s286 = int_to_ptr.vmem [resolvable:$true] %s285
      %291 = dma.hbm_to_vmem [thread:$0]  %s45, 1024, %s286, [#allocation27], 64, 64, 4
    $region93: #{tpu_custom_call.1} parent=1 // pred_fallthru
      _
    // Predicated region
    $region94: #{tpu_custom_call.1} parent=1 // pred_check
      _
    $region95: #{tpu_custom_call.1} parent=1 // pred_check_branch
      %293 = sbr.rel (0) target = $region97
    $region96: #{tpu_custom_call.1} parent=1 // pred_region
      %s295 = ssub.s32 16, 16
      %296 = vsyncadd [#allocation30], %s295
      %s298 = sshll.u32 [#allocation29], 4
      %s299 = int_to_ptr.vmem [resolvable:$true] %s298
      %301 = dma.hbm_to_vmem [thread:$0]  %s47, 16, %s299, [#allocation30]
    $region97: #{tpu_custom_call.1} parent=1 // pred_fallthru
      _
    // Predicated region
    $region98: #{tpu_custom_call.1} parent=1 // pred_check
      _
    $region99: #{tpu_custom_call.1} parent=1 // pred_check_branch
      %303 = sbr.rel (0) target = $region101
    $region100: #{tpu_custom_call.1} parent=1 // pred_region
      %s305 = ssub.s32 16, 16
      %306 = vsyncadd [#allocation30], %s305
      %s308 = sshll.u32 [#allocation31], 4
      %s309 = int_to_ptr.vmem [resolvable:$true] %s308
      %311 = dma.hbm_to_vmem [thread:$0]  %s49, 16, %s309, [#allocation30]
    $region101: #{tpu_custom_call.1} parent=1 // pred_fallthru
      _
    // Predicated region
    $region102: #{tpu_custom_call.1} parent=1 // pred_check
      _
    $region103: #{tpu_custom_call.1} parent=1 // pred_check_branch
      %313 = sbr.rel (0) target = $region105
    $region104: #{tpu_custom_call.1} parent=1 // pred_region
      %s315 = ssub.s32 1024, 1024
      %316 = vsyncadd [#allocation33], %s315
      %s317 = sshll.u32 [#allocation32], 4
      %s318 = int_to_ptr.vmem [resolvable:$true] %s317
      %323 = dma.hbm_to_vmem [thread:$0]  %s51, 1024, %s318, [#allocation33], 64, 64, 4
    $region105: #{tpu_custom_call.1} parent=1 // pred_fallthru
      _
    // Predicated region
    $region106: #{tpu_custom_call.1} parent=1 // pred_check
      _
    $region107: #{tpu_custom_call.1} parent=1 // pred_check_branch
      %325 = sbr.rel (0) target = $region109
    $region108: #{tpu_custom_call.1} parent=1 // pred_region
      %s327 = ssub.s32 16, 16
      %328 = vsyncadd [#allocation33], %s327
      %s330 = sshll.u32 [#allocation34], 4
      %s331 = int_to_ptr.vmem [resolvable:$true] %s330
      %333 = dma.hbm_to_vmem [thread:$0]  %s53, 16, %s331, [#allocation33]
    $region109: #{tpu_custom_call.1} parent=1 // pred_fallthru
      _
    // Predicated region
    $region110: #{tpu_custom_call.1} parent=1 // pred_check
      _
    $region111: #{tpu_custom_call.1} parent=1 // pred_check_branch
      %335 = sbr.rel (0) target = $region113
    $region112: #{tpu_custom_call.1} parent=1 // pred_region
      %s337 = ssub.s32 16, 16
      %338 = vsyncadd [#allocation36], %s337
      %s340 = sshll.u32 [#allocation35], 4
      %s341 = int_to_ptr.vmem [resolvable:$true] %s340
      %343 = dma.hbm_to_vmem [thread:$0]  %s55, 16, %s341, [#allocation36]
    $region113: #{tpu_custom_call.1} parent=1 // pred_fallthru
      _
    // Predicated region
    $region114: #{tpu_custom_call.1} parent=1 // pred_check
      _
    $region115: #{tpu_custom_call.1} parent=1 // pred_check_branch
      %345 = sbr.rel (0) target = $region117
    $region116: #{tpu_custom_call.1} parent=1 // pred_region
      %s347 = ssub.s32 1024, 1024
      %348 = vsyncadd [#allocation36], %s347
      %s349 = sshll.u32 [#allocation37], 4
      %s350 = int_to_ptr.vmem [resolvable:$true] %s349
      %355 = dma.hbm_to_vmem [thread:$0]  %s57, 1024, %s350, [#allocation36], 64, 64, 4
    $region117: #{tpu_custom_call.1} parent=1 // pred_fallthru
      _
    // Predicated region
    $region118: #{tpu_custom_call.1} parent=1 // pred_check
      _
    $region119: #{tpu_custom_call.1} parent=1 // pred_check_branch
      %357 = sbr.rel (0) target = $region121
    $region120: #{tpu_custom_call.1} parent=1 // pred_region
      %s359 = ssub.s32 16, 16
      %360 = vsyncadd [#allocation39], %s359
      %s362 = sshll.u32 [#allocation38], 4
      %s363 = int_to_ptr.vmem [resolvable:$true] %s362
      %365 = dma.hbm_to_vmem [thread:$0]  %s59, 16, %s363, [#allocation39]
    $region121: #{tpu_custom_call.1} parent=1 // pred_fallthru
      _
    // Predicated region
    $region122: #{tpu_custom_call.1} parent=1 // pred_check
      _
    $region123: #{tpu_custom_call.1} parent=1 // pred_check_branch
      %367 = sbr.rel (0) target = $region125
    $region124: #{tpu_custom_call.1} parent=1 // pred_region
      %s369 = ssub.s32 16, 16
      %370 = vsyncadd [#allocation39], %s369
      %s372 = sshll.u32 [#allocation40], 4
      %s373 = int_to_ptr.vmem [resolvable:$true] %s372
      %375 = dma.hbm_to_vmem [thread:$0]  %s61, 16, %s373, [#allocation39]
    $region125: #{tpu_custom_call.1} parent=1 // pred_fallthru
      _
    // Predicated region
    $region126: #{tpu_custom_call.1} parent=1 // pred_check
      _
    $region127: #{tpu_custom_call.1} parent=1 // pred_check_branch
      %377 = sbr.rel (0) target = $region129
    $region128: #{tpu_custom_call.1} parent=1 // pred_region
      %s379 = ssub.s32 1024, 1024
      %380 = vsyncadd [#allocation42], %s379
      %s381 = sshll.u32 [#allocation41], 4
      %s382 = int_to_ptr.vmem [resolvable:$true] %s381
      %387 = dma.hbm_to_vmem [thread:$0]  %s63, 1024, %s382, [#allocation42], 64, 64, 4
    $region129: #{tpu_custom_call.1} parent=1 // pred_fallthru
      _
    // Predicated region
    $region130: #{tpu_custom_call.1} parent=1 // pred_check
      _
    $region131: #{tpu_custom_call.1} parent=1 // pred_check_branch
      %389 = sbr.rel (0) target = $region133
    $region132: #{tpu_custom_call.1} parent=1 // pred_region
      %s391 = ssub.s32 16, 16
      %392 = vsyncadd [#allocation42], %s391
      %s394 = sshll.u32 [#allocation43], 4
      %s395 = int_to_ptr.vmem [resolvable:$true] %s394
      %397 = dma.hbm_to_vmem [thread:$0]  %s65, 16, %s395, [#allocation42]
    $region133: #{tpu_custom_call.1} parent=1 // pred_fallthru
      _
    // Predicated region
    $region134: #{tpu_custom_call.1} parent=1 // pred_check
      _
    $region135: #{tpu_custom_call.1} parent=1 // pred_check_branch
      %399 = sbr.rel (0) target = $region137
    $region136: #{tpu_custom_call.1} parent=1 // pred_region
      %s401 = ssub.s32 16, 16
      %402 = vsyncadd [#allocation45], %s401
      %s404 = sshll.u32 [#allocation44], 4
      %s405 = int_to_ptr.vmem [resolvable:$true] %s404
      %407 = dma.hbm_to_vmem [thread:$0]  %s67, 16, %s405, [#allocation45]
    $region137: #{tpu_custom_call.1} parent=1 // pred_fallthru
      _
    // Predicated region
    $region138: #{tpu_custom_call.1} parent=1 // pred_check
      _
    $region139: #{tpu_custom_call.1} parent=1 // pred_check_branch
      %409 = sbr.rel (0) target = $region141
    $region140: #{tpu_custom_call.1} parent=1 // pred_region
      _
    $region141: #{tpu_custom_call.1} parent=1 // pred_fallthru
      _
    // Predicated region
    $region142: #{tpu_custom_call.1} parent=1 // pred_check
      _
    $region143: #{tpu_custom_call.1} parent=1 // pred_check_branch
      %411 = sbr.rel (0) target = $region145
    $region144: #{tpu_custom_call.1} parent=1 // pred_region
      _
    $region145: #{tpu_custom_call.1} parent=1 // pred_fallthru
      _
    // Predicated region
    $region146: #{tpu_custom_call.1} parent=1 // pred_check
      _
    $region147: #{tpu_custom_call.1} parent=1 // pred_check_branch
      %413 = sbr.rel (0) target = $region149
    $region148: #{tpu_custom_call.1} parent=1 // pred_region
      _
    $region149: #{tpu_custom_call.1} parent=1 // pred_fallthru
      _
    // Predicated region
    $region150: #{tpu_custom_call.1} parent=1 // pred_check
      _
    $region151: #{tpu_custom_call.1} parent=1 // pred_check_branch
      %415 = sbr.rel (0) target = $region153
    $region152: #{tpu_custom_call.1} parent=1 // pred_region
      %s417 = ssub.s32 1024, 1024
      %418 = vsyncadd [#allocation45], %s417
      %s419 = sshll.u32 [#allocation46], 4
      %s420 = int_to_ptr.vmem [resolvable:$true] %s419
      %425 = dma.hbm_to_vmem [thread:$0]  %s75, 1024, %s420, [#allocation45], 64, 64, 4
    $region153: #{tpu_custom_call.1} parent=1 // pred_fallthru
      _
    // Predicated region
    $region154: #{tpu_custom_call.1} parent=1 // pred_check
      _
    $region155: #{tpu_custom_call.1} parent=1 // pred_check_branch
      %427 = sbr.rel (0) target = $region157
    $region156: #{tpu_custom_call.1} parent=1 // pred_region
      _
    $region157: #{tpu_custom_call.1} parent=1 // pred_fallthru
      _
    // Predicated region
    $region158: #{tpu_custom_call.1} parent=1 // pred_check
      _
    $region159: #{tpu_custom_call.1} parent=1 // pred_check_branch
      %429 = sbr.rel (0) target = $region161
    $region160: #{tpu_custom_call.1} parent=1 // pred_region
      _
    $region161: #{tpu_custom_call.1} parent=1 // pred_fallthru
      _
    // Predicated region
    $region162: #{tpu_custom_call.1} parent=1 // pred_check
      _
    $region163: #{tpu_custom_call.1} parent=1 // pred_check_branch
      %431 = sbr.rel (0) target = $region165
    $region164: #{tpu_custom_call.1} parent=1 // pred_region
      %432 = dma.done [#allocation3], 16
    $region165: #{tpu_custom_call.1} parent=1 // pred_fallthru
      _
    // Predicated region
    $region166: #{tpu_custom_call.1} parent=1 // pred_check
      _
    $region167: #{tpu_custom_call.1} parent=1 // pred_check_branch
      %434 = sbr.rel (0) target = $region169
    $region168: #{tpu_custom_call.1} parent=1 // pred_region
      %435 = dma.done [#allocation6], 16
    $region169: #{tpu_custom_call.1} parent=1 // pred_fallthru
      _
    // Predicated region
    $region170: #{tpu_custom_call.1} parent=1 // pred_check
      _
    $region171: #{tpu_custom_call.1} parent=1 // pred_check_branch
      %437 = sbr.rel (0) target = $region173
    $region172: #{tpu_custom_call.1} parent=1 // pred_region
      %438 = dma.done [#allocation6], 128
    $region173: #{tpu_custom_call.1} parent=1 // pred_fallthru
      _
    // Predicated region
    $region174: #{tpu_custom_call.1} parent=1 // pred_check
      _
    $region175: #{tpu_custom_call.1} parent=1 // pred_check_branch
      %440 = sbr.rel (0) target = $region177
    $region176: #{tpu_custom_call.1} parent=1 // pred_region
      %441 = dma.done [#allocation9], 64
    $region177: #{tpu_custom_call.1} parent=1 // pred_fallthru
      _
    // Predicated region
    $region178: #{tpu_custom_call.1} parent=1 // pred_check
      _
    $region179: #{tpu_custom_call.1} parent=1 // pred_check_branch
      %443 = sbr.rel (0) target = $region181
    $region180: #{tpu_custom_call.1} parent=1 // pred_region
      %444 = dma.done [#allocation9], 16
    $region181: #{tpu_custom_call.1} parent=1 // pred_fallthru
      _
    // Predicated region
    $region182: #{tpu_custom_call.1} parent=1 // pred_check
      _
    $region183: #{tpu_custom_call.1} parent=1 // pred_check_branch
      %446 = sbr.rel (0) target = $region185
    $region184: #{tpu_custom_call.1} parent=1 // pred_region
      %447 = dma.done [#allocation12], 16
    $region185: #{tpu_custom_call.1} parent=1 // pred_fallthru
      _
    // Predicated region
    $region186: #{tpu_custom_call.1} parent=1 // pred_check
      _
    $region187: #{tpu_custom_call.1} parent=1 // pred_check_branch
      %449 = sbr.rel (0) target = $region189
    $region188: #{tpu_custom_call.1} parent=1 // pred_region
      %450 = dma.done [#allocation12], 16
    $region189: #{tpu_custom_call.1} parent=1 // pred_fallthru
      _
    // Predicated region
    $region190: #{tpu_custom_call.1} parent=1 // pred_check
      _
    $region191: #{tpu_custom_call.1} parent=1 // pred_check_branch
      %452 = sbr.rel (0) target = $region193
    $region192: #{tpu_custom_call.1} parent=1 // pred_region
      %453 = dma.done [#allocation15], 16
    $region193: #{tpu_custom_call.1} parent=1 // pred_fallthru
      _
    // Predicated region
    $region194: #{tpu_custom_call.1} parent=1 // pred_check
      _
    $region195: #{tpu_custom_call.1} parent=1 // pred_check_branch
      %455 = sbr.rel (0) target = $region197
    $region196: #{tpu_custom_call.1} parent=1 // pred_region
      %456 = dma.done [#allocation15], 64
    $region197: #{tpu_custom_call.1} parent=1 // pred_fallthru
      _
    // Predicated region
    $region198: #{tpu_custom_call.1} parent=1 // pred_check
      _
    $region199: #{tpu_custom_call.1} parent=1 // pred_check_branch
      %458 = sbr.rel (0) target = $region201
    $region200: #{tpu_custom_call.1} parent=1 // pred_region
      %459 = dma.done [#allocation18], 1024
    $region201: #{tpu_custom_call.1} parent=1 // pred_fallthru
      _
    // Predicated region
    $region202: #{tpu_custom_call.1} parent=1 // pred_check
      _
    $region203: #{tpu_custom_call.1} parent=1 // pred_check_branch
      %461 = sbr.rel (0) target = $region205
    $region204: #{tpu_custom_call.1} parent=1 // pred_region
      %462 = dma.done [#allocation18], 16
    $region205: #{tpu_custom_call.1} parent=1 // pred_fallthru
      _
    // Predicated region
    $region206: #{tpu_custom_call.1} parent=1 // pred_check
      _
    $region207: #{tpu_custom_call.1} parent=1 // pred_check_branch
      %464 = sbr.rel (0) target = $region209
    $region208: #{tpu_custom_call.1} parent=1 // pred_region
      %465 = dma.done [#allocation21], 16
    $region209: #{tpu_custom_call.1} parent=1 // pred_fallthru
      _
    // Predicated region
    $region210: #{tpu_custom_call.1} parent=1 // pred_check
      _
    $region211: #{tpu_custom_call.1} parent=1 // pred_check_branch
      %467 = sbr.rel (0) target = $region213
    $region212: #{tpu_custom_call.1} parent=1 // pred_region
      %468 = dma.done [#allocation21], 1024
    $region213: #{tpu_custom_call.1} parent=1 // pred_fallthru
      _
    // Predicated region
    $region214: #{tpu_custom_call.1} parent=1 // pred_check
      _
    $region215: #{tpu_custom_call.1} parent=1 // pred_check_branch
      %470 = sbr.rel (0) target = $region217
    $region216: #{tpu_custom_call.1} parent=1 // pred_region
      %471 = dma.done [#allocation24], 16
    $region217: #{tpu_custom_call.1} parent=1 // pred_fallthru
      _
    // Predicated region
    $region218: #{tpu_custom_call.1} parent=1 // pred_check
      _
    $region219: #{tpu_custom_call.1} parent=1 // pred_check_branch
      %473 = sbr.rel (0) target = $region221
    $region220: #{tpu_custom_call.1} parent=1 // pred_region
      %474 = dma.done [#allocation24], 16
    $region221: #{tpu_custom_call.1} parent=1 // pred_fallthru
      _
    // Predicated region
    $region222: #{tpu_custom_call.1} parent=1 // pred_check
      _
    $region223: #{tpu_custom_call.1} parent=1 // pred_check_branch
      %476 = sbr.rel (0) target = $region225
    $region224: #{tpu_custom_call.1} parent=1 // pred_region
      %477 = dma.done [#allocation27], 64
    $region225: #{tpu_custom_call.1} parent=1 // pred_fallthru
      _
    // Predicated region
    $region226: #{tpu_custom_call.1} parent=1 // pred_check
      _
    $region227: #{tpu_custom_call.1} parent=1 // pred_check_branch
      %479 = sbr.rel (0) target = $region229
    $region228: #{tpu_custom_call.1} parent=1 // pred_region
      %480 = dma.done [#allocation27], 1024
    $region229: #{tpu_custom_call.1} parent=1 // pred_fallthru
      _
    // Predicated region
    $region230: #{tpu_custom_call.1} parent=1 // pred_check
      _
    $region231: #{tpu_custom_call.1} parent=1 // pred_check_branch
      %482 = sbr.rel (0) target = $region233
    $region232: #{tpu_custom_call.1} parent=1 // pred_region
      %483 = dma.done [#allocation30], 16
    $region233: #{tpu_custom_call.1} parent=1 // pred_fallthru
      _
    // Predicated region
    $region234: #{tpu_custom_call.1} parent=1 // pred_check
      _
    $region235: #{tpu_custom_call.1} parent=1 // pred_check_branch
      %485 = sbr.rel (0) target = $region237
    $region236: #{tpu_custom_call.1} parent=1 // pred_region
      %486 = dma.done [#allocation30], 16
    $region237: #{tpu_custom_call.1} parent=1 // pred_fallthru
      _
    // Predicated region
    $region238: #{tpu_custom_call.1} parent=1 // pred_check
      _
    $region239: #{tpu_custom_call.1} parent=1 // pred_check_branch
      %488 = sbr.rel (0) target = $region241
    $region240: #{tpu_custom_call.1} parent=1 // pred_region
      %489 = dma.done [#allocation33], 1024
    $region241: #{tpu_custom_call.1} parent=1 // pred_fallthru
      _
    // Predicated region
    $region242: #{tpu_custom_call.1} parent=1 // pred_check
      _
    $region243: #{tpu_custom_call.1} parent=1 // pred_check_branch
      %491 = sbr.rel (0) target = $region245
    $region244: #{tpu_custom_call.1} parent=1 // pred_region
      %492 = dma.done [#allocation33], 16
    $region245: #{tpu_custom_call.1} parent=1 // pred_fallthru
      _
    // Predicated region
    $region246: #{tpu_custom_call.1} parent=1 // pred_check
      _
    $region247: #{tpu_custom_call.1} parent=1 // pred_check_branch
      %494 = sbr.rel (0) target = $region249
    $region248: #{tpu_custom_call.1} parent=1 // pred_region
      %495 = dma.done [#allocation36], 16
    $region249: #{tpu_custom_call.1} parent=1 // pred_fallthru
      _
    // Predicated region
    $region250: #{tpu_custom_call.1} parent=1 // pred_check
      _
    $region251: #{tpu_custom_call.1} parent=1 // pred_check_branch
      %497 = sbr.rel (0) target = $region253
    $region252: #{tpu_custom_call.1} parent=1 // pred_region
      %498 = dma.done [#allocation36], 1024
    $region253: #{tpu_custom_call.1} parent=1 // pred_fallthru
      _
    // Predicated region
    $region254: #{tpu_custom_call.1} parent=1 // pred_check
      _
    $region255: #{tpu_custom_call.1} parent=1 // pred_check_branch
      %500 = sbr.rel (0) target = $region257
    $region256: #{tpu_custom_call.1} parent=1 // pred_region
      %501 = dma.done [#allocation39], 16
    $region257: #{tpu_custom_call.1} parent=1 // pred_fallthru
      _
    // Predicated region
    $region258: #{tpu_custom_call.1} parent=1 // pred_check
      _
    $region259: #{tpu_custom_call.1} parent=1 // pred_check_branch
      %503 = sbr.rel (0) target = $region261
    $region260: #{tpu_custom_call.1} parent=1 // pred_region
      %504 = dma.done [#allocation39], 16
    $region261: #{tpu_custom_call.1} parent=1 // pred_fallthru
      _
    // Predicated region
    $region262: #{tpu_custom_call.1} parent=1 // pred_check
      _
    $region263: #{tpu_custom_call.1} parent=1 // pred_check_branch
      %506 = sbr.rel (0) target = $region265
    $region264: #{tpu_custom_call.1} parent=1 // pred_region
      %507 = dma.done [#allocation42], 1024
    $region265: #{tpu_custom_call.1} parent=1 // pred_fallthru
      _
    // Predicated region
    $region266: #{tpu_custom_call.1} parent=1 // pred_check
      _
    $region267: #{tpu_custom_call.1} parent=1 // pred_check_branch
      %509 = sbr.rel (0) target = $region269
    $region268: #{tpu_custom_call.1} parent=1 // pred_region
      %510 = dma.done [#allocation42], 16
    $region269: #{tpu_custom_call.1} parent=1 // pred_fallthru
      _
    // Predicated region
    $region270: #{tpu_custom_call.1} parent=1 // pred_check
      _
    $region271: #{tpu_custom_call.1} parent=1 // pred_check_branch
      %512 = sbr.rel (0) target = $region273
    $region272: #{tpu_custom_call.1} parent=1 // pred_region
      %513 = dma.done [#allocation45], 16
    $region273: #{tpu_custom_call.1} parent=1 // pred_fallthru
      _
    // Predicated region
    $region274: #{tpu_custom_call.1} parent=1 // pred_check
      _
    $region275: #{tpu_custom_call.1} parent=1 // pred_check_branch
      %515 = sbr.rel (0) target = $region277
    $region276: #{tpu_custom_call.1} parent=1 // pred_region
      %516 = dma.done [#allocation45], 1024
    $region277: #{tpu_custom_call.1} parent=1 // pred_fallthru
      _
    %v518 = vld [vmem:[%s1] sm:$0xff]
    %v519 = vld [vmem:[%s1 + $0x8] sm:$0xff]
    %v520 = vld [vmem:[%s1 + $0x10] sm:$0xff]
    %v521 = vlaneseq
    %v522 = vand.u32 %v521, 127
    %523 = vset.pattern.permute.xlu0 0
    %524 = vperm.xlu0 %523, %v518
    %v525 = vpop.permute.xlu0 %524
    %526 = vset.pattern.permute.xlu0 0
    %527 = vperm.xlu0 %526, %v519
    %v528 = vpop.permute.xlu0 %527
    %529 = vset.pattern.permute.xlu0 0
    %530 = vperm.xlu0 %529, %v520
    %v531 = vpop.permute.xlu0 %530
    %vm532 = vcmp.eq.s32.totalorder %v522, %v525
    %vm533 = vcmp.eq.s32.totalorder %v522, %v528
    %vm534 = vcmp.eq.s32.totalorder %v522, %v531
    %v535 = vsel %vm532, 1, 0
    %v536 = vsel %vm533, 1, 0
    %v537 = vsel %vm534, 1, 0
    %v538 = vcvt.s32.f32 %v535
    %v539 = vcvt.s32.f32 %v536
    %v540 = vcvt.s32.f32 %v537
    %v541 = vadd.f32 %v538, 0.0
    %v542 = vadd.f32 %v539, 0.0
    %v543 = vadd.f32 %v540, 0.0
    %544 = vset.pattern.permute.xlu0 1
    %545 = vperm.xlu0 %544, %v518
    %v546 = vpop.permute.xlu0 %545
    %547 = vset.pattern.permute.xlu0 1
    %548 = vperm.xlu0 %547, %v519
    %v549 = vpop.permute.xlu0 %548
    %550 = vset.pattern.permute.xlu0 1
    %551 = vperm.xlu0 %550, %v520
    %v552 = vpop.permute.xlu0 %551
    %vm553 = vcmp.eq.s32.totalorder %v522, %v546
    %vm554 = vcmp.eq.s32.totalorder %v522, %v549
    %vm555 = vcmp.eq.s32.totalorder %v522, %v552
    %v556 = vsel %vm553, 1, 0
    %v557 = vsel %vm554, 1, 0
    %v558 = vsel %vm555, 1, 0
    %v559 = vcvt.s32.f32 %v556
    %v560 = vcvt.s32.f32 %v557
    %v561 = vcvt.s32.f32 %v558
    %v562 = vadd.f32 %v541, %v559
    %v563 = vadd.f32 %v542, %v560
    %v564 = vadd.f32 %v543, %v561
    %v565 = vpack.c.bf16 %v563, %v562
    %v566 = vpack.c.bf16 %v564, %v564
    %v567 = vld [vmem:[#allocation7] sm:$0xf]
    %v568 = vld [vmem:[#allocation7 + $0x4] sm:$0xf]
    %v569 = vld [vmem:[%s5] sm:$0xff]
    %v570 = vld [vmem:[%s5 + $0x8] sm:$0xff]
    %v571 = vld [vmem:[%s5 + $0x10] sm:$0xff]
    %572 = vset.pattern.permute.xlu0 0
    %573 = vperm.xlu0 %572, %v569
    %v574 = vpop.permute.xlu0 %573
    %575 = vset.pattern.permute.xlu0 0
    %576 = vperm.xlu0 %575, %v570
    %v577 = vpop.permute.xlu0 %576
    %578 = vset.pattern.permute.xlu0 0
    %579 = vperm.xlu0 %578, %v571
    %v580 = vpop.permute.xlu0 %579
    %vm581 = vcmp.eq.s32.totalorder %v522, %v574
    %vm582 = vcmp.eq.s32.totalorder %v522, %v577
    %vm583 = vcmp.eq.s32.totalorder %v522, %v580
    %v584 = vsel %vm581, 1, 0
    %v585 = vsel %vm582, 1, 0
    %v586 = vsel %vm583, 1, 0
    %v587 = vcvt.s32.f32 %v584
    %v588 = vcvt.s32.f32 %v585
    %v589 = vcvt.s32.f32 %v586
    %v590 = vpack.c.bf16 %v588, %v587
    %v591 = vpack.c.bf16 %v589, %v589
    %v592 = vlaneseq
    %v593 = vshrl.u32 %v592, 7
    %v594 = vld [vmem:[#allocation2] sm:$0x1]
    %v595 = vlaneseq
    %v596 = vshrl.u32 %v595, 7
    %v597 = vsub.s32 0, %v596
    %v598 = vrot.slane %v594, %v597
    %vm599 = vcmp.eq.s32.totalorder %v593, %v598
    %v600 = vsel %vm599, 1, 0
    %v601 = vcvt.s32.f32 %v600
    %v602 = vpack.c.bf16 %v601, %v601
    %v603 = vld [vmem:[%s9] sm:$0xff]
    %v604 = vld [vmem:[%s9 + $0x8] sm:$0xff]
    %v605 = vld [vmem:[%s9 + $0x10] sm:$0xff]
    %v606 = vld [vmem:[%s9 + $0x18] sm:$0xff]
    %v607 = vld [vmem:[%s9 + $0x20] sm:$0xff]
    %608 = vset.pattern.permute.xlu0 0
    %609 = vperm.xlu0 %608, %v603
    %v610 = vpop.permute.xlu0 %609
    %611 = vset.pattern.permute.xlu0 0
    %612 = vperm.xlu0 %611, %v604
    %v613 = vpop.permute.xlu0 %612
    %614 = vset.pattern.permute.xlu0 0
    %615 = vperm.xlu0 %614, %v605
    %v616 = vpop.permute.xlu0 %615
    %617 = vset.pattern.permute.xlu0 0
    %618 = vperm.xlu0 %617, %v606
    %v619 = vpop.permute.xlu0 %618
    %620 = vset.pattern.permute.xlu0 0
    %621 = vperm.xlu0 %620, %v607
    %v622 = vpop.permute.xlu0 %621
    %vm623 = vcmp.eq.s32.totalorder %v522, %v610
    %vm624 = vcmp.eq.s32.totalorder %v522, %v613
    %vm625 = vcmp.eq.s32.totalorder %v522, %v616
    %vm626 = vcmp.eq.s32.totalorder %v522, %v619
    %vm627 = vcmp.eq.s32.totalorder %v522, %v622
    %v628 = vsel %vm623, 1, 0
    %v629 = vsel %vm624, 1, 0
    %v630 = vsel %vm625, 1, 0
    %v631 = vsel %vm626, 1, 0
    %v632 = vsel %vm627, 1, 0
    %v633 = vcvt.s32.f32 %v628
    %v634 = vcvt.s32.f32 %v629
    %v635 = vcvt.s32.f32 %v630
    %v636 = vcvt.s32.f32 %v631
    %v637 = vcvt.s32.f32 %v632
    %v638 = vpack.c.bf16 %v634, %v633
    %v639 = vpack.c.bf16 %v636, %v635
    %v640 = vpack.c.bf16 %v637, %v637
    %v641 = vadd.s32 %v593, 8
    %v642 = vadd.s32 %v593, 16
    %v643 = vld [vmem:[#allocation5] sm:$0x1]
    %v644 = vlaneseq
    %v645 = vshrl.u32 %v644, 7
    %v646 = vsub.s32 0, %v645
    %v647 = vrot.slane %v643, %v646
    %vm648 = vcmp.eq.s32.totalorder %v593, %v647
    %vm649 = vcmp.eq.s32.totalorder %v641, %v647
    %vm650 = vcmp.eq.s32.totalorder %v642, %v647
    %v651 = vsel %vm648, 1, 0
    %v652 = vsel %vm649, 1, 0
    %v653 = vsel %vm650, 1, 0
    %v654 = vcvt.s32.f32 %v651
    %v655 = vcvt.s32.f32 %v652
    %v656 = vcvt.s32.f32 %v653
    %v657 = vpack.c.bf16 %v655, %v654
    %v658 = vpack.c.bf16 %v656, %v656
    %v659 = vld [vmem:[%s3] sm:$0xff]
    %v660 = vld [vmem:[%s3 + $0x8] sm:$0xff]
    %v661 = vld [vmem:[%s3 + $0x10] sm:$0xff]
    %v662 = vld [vmem:[%s3 + $0x18] sm:$0xff]
    %v663 = vld [vmem:[%s3 + $0x20] sm:$0xff]
    %664 = vset.pattern.permute.xlu0 0
    %665 = vperm.xlu0 %664, %v659
    %v666 = vpop.permute.xlu0 %665
    %667 = vset.pattern.permute.xlu0 0
    %668 = vperm.xlu0 %667, %v660
    %v669 = vpop.permute.xlu0 %668
    %670 = vset.pattern.permute.xlu0 0
    %671 = vperm.xlu0 %670, %v661
    %v672 = vpop.permute.xlu0 %671
    %673 = vset.pattern.permute.xlu0 0
    %674 = vperm.xlu0 %673, %v662
    %v675 = vpop.permute.xlu0 %674
    %676 = vset.pattern.permute.xlu0 0
    %677 = vperm.xlu0 %676, %v663
    %v678 = vpop.permute.xlu0 %677
    %vm679 = vcmp.eq.s32.totalorder %v522, %v666
    %vm680 = vcmp.eq.s32.totalorder %v522, %v669
    %vm681 = vcmp.eq.s32.totalorder %v522, %v672
    %vm682 = vcmp.eq.s32.totalorder %v522, %v675
    %vm683 = vcmp.eq.s32.totalorder %v522, %v678
    %v684 = vsel %vm679, 1, 0
    %v685 = vsel %vm680, 1, 0
    %v686 = vsel %vm681, 1, 0
    %v687 = vsel %vm682, 1, 0
    %v688 = vsel %vm683, 1, 0
    %v689 = vcvt.s32.f32 %v684
    %v690 = vcvt.s32.f32 %v685
    %v691 = vcvt.s32.f32 %v686
    %v692 = vcvt.s32.f32 %v687
    %v693 = vcvt.s32.f32 %v688
    %v694 = vadd.f32 %v689, 0.0
    %v695 = vadd.f32 %v690, 0.0
    %v696 = vadd.f32 %v691, 0.0
    %v697 = vadd.f32 %v692, 0.0
    %v698 = vadd.f32 %v693, 0.0
    %699 = vset.pattern.permute.xlu0 1
    %700 = vperm.xlu0 %699, %v659
    %v701 = vpop.permute.xlu0 %700
    %702 = vset.pattern.permute.xlu0 1
    %703 = vperm.xlu0 %702, %v660
    %v704 = vpop.permute.xlu0 %703
    %705 = vset.pattern.permute.xlu0 1
    %706 = vperm.xlu0 %705, %v661
    %v707 = vpop.permute.xlu0 %706
    %708 = vset.pattern.permute.xlu0 1
    %709 = vperm.xlu0 %708, %v662
    %v710 = vpop.permute.xlu0 %709
    %711 = vset.pattern.permute.xlu0 1
    %712 = vperm.xlu0 %711, %v663
    %v713 = vpop.permute.xlu0 %712
    %vm714 = vcmp.eq.s32.totalorder %v522, %v701
    %vm715 = vcmp.eq.s32.totalorder %v522, %v704
    %vm716 = vcmp.eq.s32.totalorder %v522, %v707
    %vm717 = vcmp.eq.s32.totalorder %v522, %v710
    %vm718 = vcmp.eq.s32.totalorder %v522, %v713
    %v719 = vsel %vm714, 1, 0
    %v720 = vsel %vm715, 1, 0
    %v721 = vsel %vm716, 1, 0
    %v722 = vsel %vm717, 1, 0
    %v723 = vsel %vm718, 1, 0
    %v724 = vcvt.s32.f32 %v719
    %v725 = vcvt.s32.f32 %v720
    %v726 = vcvt.s32.f32 %v721
    %v727 = vcvt.s32.f32 %v722
    %v728 = vcvt.s32.f32 %v723
    %v729 = vadd.f32 %v694, %v724
    %v730 = vadd.f32 %v695, %v725
    %v731 = vadd.f32 %v696, %v726
    %v732 = vadd.f32 %v697, %v727
    %v733 = vadd.f32 %v698, %v728
    %v734 = vpack.c.bf16 %v730, %v729
    %v735 = vpack.c.bf16 %v732, %v731
    %v736 = vpack.c.bf16 %v733, %v733
    %vm737 = vcmask 15360
    %v739 = vsel %vm737, %v590, 0
    %v742 = vsel %vm737, %v591, 0
    %vm744 = vcmask 1040384
    %v746 = vsel %vm744, 0, 0
    %748 = vmatprep.subr.bf16.mxu0 0
    %749 = vmatpush1.bf16.msra.mxu0 0
    %750 = vmatprep.subr.bf16.mxu0 0
    %751 = vmatpush1.bf16.msra.mxu0 0
    %752 = vmatprep.subr.bf16.mxu0 0
    %753 = vmatpush1.bf16.msra.mxu0 0
    %754 = vmatprep.subr.bf16.mxu0 0
    %755 = vmatpush1.bf16.msra.mxu0 0
    %756 = vmatprep.subr.bf16.mxu0 0
    %757 = vmatpush1.bf16.msra.mxu0 0
    %758 = vmatprep.subr.bf16.mxu0 0
    %759 = vmatpush1.bf16.msra.mxu0 0
    %760 = vmatprep.subr.bf16.mxu0 0
    %761 = vmatpush1.bf16.msra.mxu0 0
    %762 = vmatprep.subr.bf16.mxu0 0
    %763 = vmatpush1.bf16.msra.mxu0 %v746
    %764 = vmatprep.subr.bf16.mxu0 0
    %765 = vmatpush2.bf16.msra.mxu0 0
    %766 = vmatprep.subr.bf16.mxu0 0
    %767 = vmatpush2.bf16.msra.mxu0 0
    %768 = vmatprep.subr.bf16.mxu0 0
    %769 = vmatpush2.bf16.msra.mxu0 0
    %770 = vmatprep.subr.bf16.mxu0 0
    %771 = vmatpush2.bf16.msra.mxu0 0
    %772 = vmatprep.subr.bf16.mxu0 0
    %773 = vmatpush2.bf16.msra.mxu0 0
    %774 = vmatprep.subr.bf16.mxu0 0
    %775 = vmatpush2.bf16.msra.mxu0 0
    %776 = vmatprep.subr.bf16.mxu0 0
    %777 = vmatpush2.bf16.msra.mxu0 0
    %778 = vmatprep.subr.bf16.mxu0 0
    %779 = vmatpush2.bf16.msra.mxu0 0
    %780 = vmatprep.mubr.bf16.mxu0 0
    %781 = vmatmul.mubr.bf16.gmra.mxu0 %v739
    %v782 = vpop.f32.mrf.mxu0
    %v783 = vadd.f32 0.0, %v782
    %v784 = vpop.f32.mrf.mxu0
    %v785 = vpop.f32.mrf.mxu0
    %v786 = vadd.f32 0.0, %v785
    %v787 = vpop.f32.mrf.mxu0
    %788 = vmatprep.mubr.bf16.mxu0 0
    %789 = vmatmul.mubr.bf16.gmra.mxu0 %v742
    %v790 = vpop.f32.mrf.mxu0
    %v791 = vadd.f32 0.0, %v790
    %v792 = vpop.f32.mrf.mxu0
    %v793 = vpop.f32.mrf.mxu0
    %v794 = vpop.f32.mrf.mxu0
    %795 = vdwg.mxu0
    %v798 = vunpack.c.l.b16 %v567
    %v799 = vunpack.c.l.b16 %v568
    %v800 = vpack.c.b16 %v799, %v798
    %vm802 = vcmask 130048
    %v804 = vsel %vm802, %v565, 0
    %v807 = vsel %vm802, %v566, 0
    %809 = vmatprep.subr.bf16.mxu0 0
    %810 = vmatpush1.bf16.msra.mxu0 0
    %811 = vmatprep.subr.bf16.mxu0 0
    %812 = vmatpush1.bf16.msra.mxu0 0
    %813 = vmatprep.subr.bf16.mxu0 0
    %814 = vmatpush1.bf16.msra.mxu0 0
    %815 = vmatprep.subr.bf16.mxu0 0
    %816 = vmatpush1.bf16.msra.mxu0 0
    %817 = vmatprep.subr.bf16.mxu0 0
    %818 = vmatpush1.bf16.msra.mxu0 0
    %819 = vmatprep.subr.bf16.mxu0 0
    %820 = vmatpush1.bf16.msra.mxu0 0
    %821 = vmatprep.subr.bf16.mxu0 0
    %822 = vmatpush1.bf16.msra.mxu0 0
    %823 = vmatprep.subr.bf16.mxu0 0
    %824 = vmatpush1.bf16.msra.mxu0 %v800
    %825 = vmatprep.subr.bf16.mxu0 0
    %826 = vmatpush2.bf16.msra.mxu0 0
    %827 = vmatprep.subr.bf16.mxu0 0
    %828 = vmatpush2.bf16.msra.mxu0 0
    %829 = vmatprep.subr.bf16.mxu0 0
    %830 = vmatpush2.bf16.msra.mxu0 0
    %831 = vmatprep.subr.bf16.mxu0 0
    %832 = vmatpush2.bf16.msra.mxu0 0
    %833 = vmatprep.subr.bf16.mxu0 0
    %834 = vmatpush2.bf16.msra.mxu0 0
    %835 = vmatprep.subr.bf16.mxu0 0
    %836 = vmatpush2.bf16.msra.mxu0 0
    %837 = vmatprep.subr.bf16.mxu0 0
    %838 = vmatpush2.bf16.msra.mxu0 0
    %839 = vmatprep.subr.bf16.mxu0 0
    %840 = vmatpush2.bf16.msra.mxu0 0
    %841 = vmatprep.mubr.bf16.mxu0 0
    %842 = vmatmul.mubr.bf16.gmra.mxu0 %v804
    %v843 = vpop.f32.mrf.mxu0
    %v844 = vadd.f32 %v783, %v843
    %v845 = vpop.f32.mrf.mxu0
    %v846 = vpop.f32.mrf.mxu0
    %v847 = vadd.f32 %v786, %v846
    %v848 = vpop.f32.mrf.mxu0
    %849 = vmatprep.mubr.bf16.mxu0 0
    %850 = vmatmul.mubr.bf16.gmra.mxu0 %v807
    %v851 = vpop.f32.mrf.mxu0
    %v852 = vadd.f32 %v791, %v851
    %v853 = vpop.f32.mrf.mxu0
    %v854 = vpop.f32.mrf.mxu0
    %v855 = vpop.f32.mrf.mxu0
    %856 = vdwg.mxu0
    %v857 = vpack.c.bf16 %v847, %v844
    %v858 = vpack.c.bf16 %v852, %v852
    %v859 = vld [vmem:[#allocation8] sm:$0xf]
    %vm860 = vcmask 64512
    %v862 = vsel %vm860, %v734, 0
    %v865 = vsel %vm860, %v735, 0
    %v868 = vsel %vm860, %v736, 0
    %vm870 = vcmask 1043456
    %v872 = vsel %vm870, %v859, 0
    %874 = vmatprep.subr.bf16.mxu0 0
    %875 = vmatpush1.bf16.msra.mxu0 0
    %876 = vmatprep.subr.bf16.mxu0 0
    %877 = vmatpush1.bf16.msra.mxu0 0
    %878 = vmatprep.subr.bf16.mxu0 0
    %879 = vmatpush1.bf16.msra.mxu0 0
    %880 = vmatprep.subr.bf16.mxu0 0
    %881 = vmatpush1.bf16.msra.mxu0 0
    %882 = vmatprep.subr.bf16.mxu0 0
    %883 = vmatpush1.bf16.msra.mxu0 0
    %884 = vmatprep.subr.bf16.mxu0 0
    %885 = vmatpush1.bf16.msra.mxu0 0
    %886 = vmatprep.subr.bf16.mxu0 0
    %887 = vmatpush1.bf16.msra.mxu0 0
    %888 = vmatprep.subr.bf16.mxu0 0
    %889 = vmatpush1.bf16.msra.mxu0 %v872
    %890 = vmatprep.subr.bf16.mxu0 0
    %891 = vmatpush2.bf16.msra.mxu0 0
    %892 = vmatprep.subr.bf16.mxu0 0
    %893 = vmatpush2.bf16.msra.mxu0 0
    %894 = vmatprep.subr.bf16.mxu0 0
    %895 = vmatpush2.bf16.msra.mxu0 0
    %896 = vmatprep.subr.bf16.mxu0 0
    %897 = vmatpush2.bf16.msra.mxu0 0
    %898 = vmatprep.subr.bf16.mxu0 0
    %899 = vmatpush2.bf16.msra.mxu0 0
    %900 = vmatprep.subr.bf16.mxu0 0
    %901 = vmatpush2.bf16.msra.mxu0 0
    %902 = vmatprep.subr.bf16.mxu0 0
    %903 = vmatpush2.bf16.msra.mxu0 0
    %904 = vmatprep.subr.bf16.mxu0 0
    %905 = vmatpush2.bf16.msra.mxu0 0
    %906 = vmatprep.mubr.bf16.mxu0 0
    %907 = vmatmul.mubr.bf16.gmra.mxu0 %v862
    %v908 = vpop.f32.mrf.mxu0
    %v909 = vadd.f32 0.0, %v908
    %v910 = vpop.f32.mrf.mxu0
    %v911 = vpop.f32.mrf.mxu0
    %v912 = vadd.f32 0.0, %v911
    %v913 = vpop.f32.mrf.mxu0
    %914 = vmatprep.mubr.bf16.mxu0 0
    %915 = vmatmul.mubr.bf16.gmra.mxu0 %v865
    %v916 = vpop.f32.mrf.mxu0
    %v917 = vadd.f32 0.0, %v916
    %v918 = vpop.f32.mrf.mxu0
    %v919 = vpop.f32.mrf.mxu0
    %v920 = vadd.f32 0.0, %v919
    %v921 = vpop.f32.mrf.mxu0
    %922 = vmatprep.mubr.bf16.mxu0 0
    %923 = vmatmul.mubr.bf16.gmra.mxu0 %v868
    %v924 = vpop.f32.mrf.mxu0
    %v925 = vadd.f32 0.0, %v924
    %v926 = vpop.f32.mrf.mxu0
    %v927 = vpop.f32.mrf.mxu0
    %v928 = vpop.f32.mrf.mxu0
    %929 = vdwg.mxu0
    %vm930 = vcmask 195584
    %v932 = vsel %vm930, %v638, 0
    %v935 = vsel %vm930, %v639, 0
    %v938 = vsel %vm930, %v640, 0
    %v941 = vsel %vm870, %v858, 0
    %943 = vmatprep.subr.bf16.mxu0 0
    %944 = vmatpush1.bf16.msra.mxu0 0
    %945 = vmatprep.subr.bf16.mxu0 0
    %946 = vmatpush1.bf16.msra.mxu0 0
    %947 = vmatprep.subr.bf16.mxu0 0
    %948 = vmatpush1.bf16.msra.mxu0 0
    %949 = vmatprep.subr.bf16.mxu0 0
    %950 = vmatpush1.bf16.msra.mxu0 0
    %951 = vmatprep.subr.bf16.mxu0 0
    %952 = vmatpush1.bf16.msra.mxu0 0
    %953 = vmatprep.subr.bf16.mxu0 0
    %954 = vmatpush1.bf16.msra.mxu0 0
    %955 = vmatprep.subr.bf16.mxu0 0
    %956 = vmatpush1.bf16.msra.mxu0 %v941
    %957 = vmatprep.subr.bf16.mxu0 0
    %958 = vmatpush1.bf16.msra.mxu0 %v857
    %959 = vmatprep.subr.bf16.mxu0 0
    %960 = vmatpush2.bf16.msra.mxu0 0
    %961 = vmatprep.subr.bf16.mxu0 0
    %962 = vmatpush2.bf16.msra.mxu0 0
    %963 = vmatprep.subr.bf16.mxu0 0
    %964 = vmatpush2.bf16.msra.mxu0 0
    %965 = vmatprep.subr.bf16.mxu0 0
    %966 = vmatpush2.bf16.msra.mxu0 0
    %967 = vmatprep.subr.bf16.mxu0 0
    %968 = vmatpush2.bf16.msra.mxu0 0
    %969 = vmatprep.subr.bf16.mxu0 0
    %970 = vmatpush2.bf16.msra.mxu0 0
    %971 = vmatprep.subr.bf16.mxu0 0
    %972 = vmatpush2.bf16.msra.mxu0 0
    %973 = vmatprep.subr.bf16.mxu0 0
    %974 = vmatpush2.bf16.msra.mxu0 0
    %975 = vmatprep.mubr.bf16.mxu0 0
    %976 = vmatmul.mubr.bf16.gmra.mxu0 %v932
    %v977 = vpop.f32.mrf.mxu0
    %v978 = vadd.f32 %v909, %v977
    %v979 = vpop.f32.mrf.mxu0
    %v980 = vpop.f32.mrf.mxu0
    %v981 = vadd.f32 %v912, %v980
    %v982 = vpop.f32.mrf.mxu0
    %983 = vmatprep.mubr.bf16.mxu0 0
    %984 = vmatmul.mubr.bf16.gmra.mxu0 %v935
    %v985 = vpop.f32.mrf.mxu0
    %v986 = vadd.f32 %v917, %v985
    %v987 = vpop.f32.mrf.mxu0
    %v988 = vpop.f32.mrf.mxu0
    %v989 = vadd.f32 %v920, %v988
    %v990 = vpop.f32.mrf.mxu0
    %991 = vmatprep.mubr.bf16.mxu0 0
    %992 = vmatmul.mubr.bf16.gmra.mxu0 %v938
    %v993 = vpop.f32.mrf.mxu0
    %v994 = vadd.f32 %v925, %v993
    %v995 = vpop.f32.mrf.mxu0
    %v996 = vpop.f32.mrf.mxu0
    %v997 = vpop.f32.mrf.mxu0
    %998 = vdwg.mxu0
    %v999 = vmax.f32 %v978, 0.0
    %v1000 = vmax.f32 %v981, 0.0
    %v1001 = vmax.f32 %v986, 0.0
    %v1002 = vmax.f32 %v989, 0.0
    %v1003 = vmax.f32 %v994, 0.0
    %v1004 = vpack.c.bf16 %v1000, %v999
    %v1005 = vpack.c.bf16 %v1002, %v1001
    %v1006 = vpack.c.bf16 %v1003, %v1003
    %vm1007 = vcmask 326656
    %v1009 = vsel %vm1007, %v657, 0
    %v1012 = vsel %vm1007, %v658, 0
    %v1015 = vsel %vm870, %v1006, 0
    %1017 = vmatprep.subr.bf16.mxu0 0
    %1018 = vmatpush1.bf16.msra.mxu0 0
    %1019 = vmatprep.subr.bf16.mxu0 0
    %1020 = vmatpush1.bf16.msra.mxu0 0
    %1021 = vmatprep.subr.bf16.mxu0 0
    %1022 = vmatpush1.bf16.msra.mxu0 0
    %1023 = vmatprep.subr.bf16.mxu0 0
    %1024 = vmatpush1.bf16.msra.mxu0 0
    %1025 = vmatprep.subr.bf16.mxu0 0
    %1026 = vmatpush1.bf16.msra.mxu0 0
    %1027 = vmatprep.subr.bf16.mxu0 0
    %1028 = vmatpush1.bf16.msra.mxu0 %v1015
    %1029 = vmatprep.subr.bf16.mxu0 0
    %1030 = vmatpush1.bf16.msra.mxu0 %v1005
    %1031 = vmatprep.subr.bf16.mxu0 0
    %1032 = vmatpush1.bf16.msra.mxu0 %v1004
    %1033 = vmatprep.subr.bf16.mxu0 0
    %1034 = vmatpush2.bf16.msra.mxu0 0
    %1035 = vmatprep.subr.bf16.mxu0 0
    %1036 = vmatpush2.bf16.msra.mxu0 0
    %1037 = vmatprep.subr.bf16.mxu0 0
    %1038 = vmatpush2.bf16.msra.mxu0 0
    %1039 = vmatprep.subr.bf16.mxu0 0
    %1040 = vmatpush2.bf16.msra.mxu0 0
    %1041 = vmatprep.subr.bf16.mxu0 0
    %1042 = vmatpush2.bf16.msra.mxu0 0
    %1043 = vmatprep.subr.bf16.mxu0 0
    %1044 = vmatpush2.bf16.msra.mxu0 0
    %1045 = vmatprep.subr.bf16.mxu0 0
    %1046 = vmatpush2.bf16.msra.mxu0 0
    %1047 = vmatprep.subr.bf16.mxu0 0
    %1048 = vmatpush2.bf16.msra.mxu0 0
    %1049 = vmatprep.mubr.bf16.mxu0 0
    %1050 = vmatmul.mubr.bf16.gmra.mxu0 %v1009
    %v1051 = vpop.f32.mrf.mxu0
    %v1052 = vadd.f32 0.0, %v1051
    %v1053 = vpop.f32.mrf.mxu0
    %v1054 = vpop.f32.mrf.mxu0
    %v1055 = vadd.f32 0.0, %v1054
    %v1056 = vpop.f32.mrf.mxu0
    %1057 = vmatprep.mubr.bf16.mxu0 0
    %1058 = vmatmul.mubr.bf16.gmra.mxu0 %v1012
    %v1059 = vpop.f32.mrf.mxu0
    %v1060 = vadd.f32 0.0, %v1059
    %v1061 = vpop.f32.mrf.mxu0
    %v1062 = vpop.f32.mrf.mxu0
    %v1063 = vpop.f32.mrf.mxu0
    %1064 = vdwg.mxu0
    %v1065 = vadd.f32 %v844, %v1052
    %v1066 = vadd.f32 %v847, %v1055
    %v1067 = vadd.f32 %v852, %v1060
    %v1068 = vpack.c.bf16 %v1066, %v1065
    %v1069 = vpack.c.bf16 %v1067, %v1067
    %v1070 = vld [vmem:[%s17] sm:$0xf]
    %v1071 = vld [vmem:[%s17 + $0x4] sm:$0xf]
    %v1072 = vld [vmem:[%s17 + $0x8] sm:$0xf]
    %v1073 = vld [vmem:[%s17 + $0xc] sm:$0xf]
    %v1074 = vld [vmem:[%s17 + $0x10] sm:$0xf]
    %v1075 = vld [vmem:[%s17 + $0x14] sm:$0xf]
    %v1076 = vld [vmem:[%s17 + $0x18] sm:$0xf]
    %v1077 = vld [vmem:[%s17 + $0x1c] sm:$0xf]
    %v1078 = vld [vmem:[%s17 + $0x20] sm:$0xf]
    %v1079 = vld [vmem:[%s17 + $0x24] sm:$0xf]
    %v1080 = vld [vmem:[%s17 + $0x28] sm:$0xf]
    %v1081 = vld [vmem:[%s17 + $0x2c] sm:$0xf]
    %v1082 = vld [vmem:[%s17 + $0x30] sm:$0xf]
    %v1083 = vld [vmem:[%s17 + $0x34] sm:$0xf]
    %v1084 = vld [vmem:[%s17 + $0x38] sm:$0xf]
    %v1085 = vld [vmem:[%s17 + $0x3c] sm:$0xf]
    %v1102 = vunpack.c.l.b16 %v1070
    %v1103 = vunpack.c.l.b16 %v1071
    %v1104 = vunpack.c.l.b16 %v1072
    %v1105 = vunpack.c.l.b16 %v1073
    %v1106 = vunpack.c.l.b16 %v1074
    %v1107 = vunpack.c.l.b16 %v1075
    %v1108 = vunpack.c.l.b16 %v1076
    %v1109 = vunpack.c.l.b16 %v1077
    %v1110 = vunpack.c.l.b16 %v1078
    %v1111 = vunpack.c.l.b16 %v1079
    %v1112 = vunpack.c.l.b16 %v1080
    %v1113 = vunpack.c.l.b16 %v1081
    %v1114 = vunpack.c.l.b16 %v1082
    %v1115 = vunpack.c.l.b16 %v1083
    %v1116 = vunpack.c.l.b16 %v1084
    %v1117 = vunpack.c.l.b16 %v1085
    %v1118 = vpack.c.b16 %v1103, %v1102
    %v1119 = vpack.c.b16 %v1105, %v1104
    %v1120 = vpack.c.b16 %v1107, %v1106
    %v1121 = vpack.c.b16 %v1109, %v1108
    %v1122 = vpack.c.b16 %v1111, %v1110
    %v1123 = vpack.c.b16 %v1113, %v1112
    %v1124 = vpack.c.b16 %v1115, %v1114
    %v1125 = vpack.c.b16 %v1117, %v1116
    %1134 = vmatprep.subr.bf16.mxu0 0
    %1135 = vmatpush1.bf16.msra.mxu0 %v1125
    %1136 = vmatprep.subr.bf16.mxu0 0
    %1137 = vmatpush1.bf16.msra.mxu0 %v1124
    %1138 = vmatprep.subr.bf16.mxu0 0
    %1139 = vmatpush1.bf16.msra.mxu0 %v1123
    %1140 = vmatprep.subr.bf16.mxu0 0
    %1141 = vmatpush1.bf16.msra.mxu0 %v1122
    %1142 = vmatprep.subr.bf16.mxu0 0
    %1143 = vmatpush1.bf16.msra.mxu0 %v1121
    %1144 = vmatprep.subr.bf16.mxu0 0
    %1145 = vmatpush1.bf16.msra.mxu0 %v1120
    %1146 = vmatprep.subr.bf16.mxu0 0
    %1147 = vmatpush1.bf16.msra.mxu0 %v1119
    %1148 = vmatprep.subr.bf16.mxu0 0
    %1149 = vmatpush1.bf16.msra.mxu0 %v1118
    %1150 = vmatprep.subr.bf16.mxu0 0
    %1151 = vmatpush2.bf16.msra.mxu0 0
    %1152 = vmatprep.subr.bf16.mxu0 0
    %1153 = vmatpush2.bf16.msra.mxu0 0
    %1154 = vmatprep.subr.bf16.mxu0 0
    %1155 = vmatpush2.bf16.msra.mxu0 0
    %1156 = vmatprep.subr.bf16.mxu0 0
    %1157 = vmatpush2.bf16.msra.mxu0 0
    %1158 = vmatprep.subr.bf16.mxu0 0
    %1159 = vmatpush2.bf16.msra.mxu0 0
    %1160 = vmatprep.subr.bf16.mxu0 0
    %1161 = vmatpush2.bf16.msra.mxu0 0
    %1162 = vmatprep.subr.bf16.mxu0 0
    %1163 = vmatpush2.bf16.msra.mxu0 0
    %1164 = vmatprep.subr.bf16.mxu0 0
    %1165 = vmatpush2.bf16.msra.mxu0 0
    %1166 = vmatprep.mubr.bf16.mxu0 0
    %1167 = vmatmul.mubr.bf16.gmra.mxu0 %v1068
    %v1168 = vpop.f32.mrf.mxu0
    %v1169 = vadd.f32 0.0, %v1168
    %v1170 = vpop.f32.mrf.mxu0
    %v1171 = vpop.f32.mrf.mxu0
    %v1172 = vadd.f32 0.0, %v1171
    %v1173 = vpop.f32.mrf.mxu0
    %1174 = vmatprep.mubr.bf16.mxu0 0
    %1175 = vmatmul.mubr.bf16.gmra.mxu0 %v1069
    %v1176 = vpop.f32.mrf.mxu0
    %v1177 = vadd.f32 0.0, %v1176
    %v1178 = vpop.f32.mrf.mxu0
    %v1179 = vpop.f32.mrf.mxu0
    %v1180 = vpop.f32.mrf.mxu0
    %1181 = vdwg.mxu0
    %v1182 = vld [vmem:[#allocation10] sm:$0x1]
    %v1184 = vlaneseq
    %v1185 = vshrl.u32 %v1184, 7
    %v1186 = vsub.s32 0, %v1185
    %v1187 = vrot.slane %v1182, %v1186
    %v1189 = vmul.f32 %v1169, %v1187
    %v1190 = vmul.f32 %v1172, %v1187
    %v1191 = vmul.f32 %v1177, %v1187
    %v1192 = vld [vmem:[#allocation11] sm:$0x1]
    %v1194 = vlaneseq
    %v1195 = vshrl.u32 %v1194, 7
    %v1196 = vsub.s32 0, %v1195
    %v1197 = vrot.slane %v1192, %v1196
    %v1199 = vadd.f32 %v1189, %v1197
    %v1200 = vadd.f32 %v1190, %v1197
    %v1201 = vadd.f32 %v1191, %v1197
    %v1202 = vmax.f32 %v1199, 0.0
    %v1203 = vmax.f32 %v1200, 0.0
    %v1204 = vmax.f32 %v1201, 0.0
    %v1205 = vpack.c.bf16 %v1203, %v1202
    %v1206 = vpack.c.bf16 %v1204, %v1204
    %v1207 = vld [vmem:[%s23] sm:$0xf]
    %v1208 = vld [vmem:[%s23 + $0x4] sm:$0xf]
    %v1209 = vld [vmem:[%s23 + $0x8] sm:$0xf]
    %v1210 = vld [vmem:[%s23 + $0xc] sm:$0xf]
    %v1211 = vld [vmem:[%s23 + $0x10] sm:$0xf]
    %v1212 = vld [vmem:[%s23 + $0x14] sm:$0xf]
    %v1213 = vld [vmem:[%s23 + $0x18] sm:$0xf]
    %v1214 = vld [vmem:[%s23 + $0x1c] sm:$0xf]
    %v1215 = vld [vmem:[%s23 + $0x20] sm:$0xf]
    %v1216 = vld [vmem:[%s23 + $0x24] sm:$0xf]
    %v1217 = vld [vmem:[%s23 + $0x28] sm:$0xf]
    %v1218 = vld [vmem:[%s23 + $0x2c] sm:$0xf]
    %v1219 = vld [vmem:[%s23 + $0x30] sm:$0xf]
    %v1220 = vld [vmem:[%s23 + $0x34] sm:$0xf]
    %v1221 = vld [vmem:[%s23 + $0x38] sm:$0xf]
    %v1222 = vld [vmem:[%s23 + $0x3c] sm:$0xf]
    %v1239 = vunpack.c.l.b16 %v1207
    %v1240 = vunpack.c.l.b16 %v1208
    %v1241 = vunpack.c.l.b16 %v1209
    %v1242 = vunpack.c.l.b16 %v1210
    %v1243 = vunpack.c.l.b16 %v1211
    %v1244 = vunpack.c.l.b16 %v1212
    %v1245 = vunpack.c.l.b16 %v1213
    %v1246 = vunpack.c.l.b16 %v1214
    %v1247 = vunpack.c.l.b16 %v1215
    %v1248 = vunpack.c.l.b16 %v1216
    %v1249 = vunpack.c.l.b16 %v1217
    %v1250 = vunpack.c.l.b16 %v1218
    %v1251 = vunpack.c.l.b16 %v1219
    %v1252 = vunpack.c.l.b16 %v1220
    %v1253 = vunpack.c.l.b16 %v1221
    %v1254 = vunpack.c.l.b16 %v1222
    %v1255 = vpack.c.b16 %v1240, %v1239
    %v1256 = vpack.c.b16 %v1242, %v1241
    %v1257 = vpack.c.b16 %v1244, %v1243
    %v1258 = vpack.c.b16 %v1246, %v1245
    %v1259 = vpack.c.b16 %v1248, %v1247
    %v1260 = vpack.c.b16 %v1250, %v1249
    %v1261 = vpack.c.b16 %v1252, %v1251
    %v1262 = vpack.c.b16 %v1254, %v1253
    %1271 = vmatprep.subr.bf16.mxu0 0
    %1272 = vmatpush1.bf16.msra.mxu0 %v1262
    %1273 = vmatprep.subr.bf16.mxu0 0
    %1274 = vmatpush1.bf16.msra.mxu0 %v1261
    %1275 = vmatprep.subr.bf16.mxu0 0
    %1276 = vmatpush1.bf16.msra.mxu0 %v1260
    %1277 = vmatprep.subr.bf16.mxu0 0
    %1278 = vmatpush1.bf16.msra.mxu0 %v1259
    %1279 = vmatprep.subr.bf16.mxu0 0
    %1280 = vmatpush1.bf16.msra.mxu0 %v1258
    %1281 = vmatprep.subr.bf16.mxu0 0
    %1282 = vmatpush1.bf16.msra.mxu0 %v1257
    %1283 = vmatprep.subr.bf16.mxu0 0
    %1284 = vmatpush1.bf16.msra.mxu0 %v1256
    %1285 = vmatprep.subr.bf16.mxu0 0
    %1286 = vmatpush1.bf16.msra.mxu0 %v1255
    %1287 = vmatprep.subr.bf16.mxu0 0
    %1288 = vmatpush2.bf16.msra.mxu0 0
    %1289 = vmatprep.subr.bf16.mxu0 0
    %1290 = vmatpush2.bf16.msra.mxu0 0
    %1291 = vmatprep.subr.bf16.mxu0 0
    %1292 = vmatpush2.bf16.msra.mxu0 0
    %1293 = vmatprep.subr.bf16.mxu0 0
    %1294 = vmatpush2.bf16.msra.mxu0 0
    %1295 = vmatprep.subr.bf16.mxu0 0
    %1296 = vmatpush2.bf16.msra.mxu0 0
    %1297 = vmatprep.subr.bf16.mxu0 0
    %1298 = vmatpush2.bf16.msra.mxu0 0
    %1299 = vmatprep.subr.bf16.mxu0 0
    %1300 = vmatpush2.bf16.msra.mxu0 0
    %1301 = vmatprep.subr.bf16.mxu0 0
    %1302 = vmatpush2.bf16.msra.mxu0 0
    %1303 = vmatprep.mubr.bf16.mxu0 0
    %1304 = vmatmul.mubr.bf16.gmra.mxu0 %v1205
    %v1305 = vpop.f32.mrf.mxu0
    %v1306 = vadd.f32 0.0, %v1305
    %v1307 = vpop.f32.mrf.mxu0
    %v1308 = vpop.f32.mrf.mxu0
    %v1309 = vadd.f32 0.0, %v1308
    %v1310 = vpop.f32.mrf.mxu0
    %1311 = vmatprep.mubr.bf16.mxu0 0
    %1312 = vmatmul.mubr.bf16.gmra.mxu0 %v1206
    %v1313 = vpop.f32.mrf.mxu0
    %v1314 = vadd.f32 0.0, %v1313
    %v1315 = vpop.f32.mrf.mxu0
    %v1316 = vpop.f32.mrf.mxu0
    %v1317 = vpop.f32.mrf.mxu0
    %1318 = vdwg.mxu0
    %v1319 = vld [vmem:[#allocation13] sm:$0x1]
    %v1321 = vlaneseq
    %v1322 = vshrl.u32 %v1321, 7
    %v1323 = vsub.s32 0, %v1322
    %v1324 = vrot.slane %v1319, %v1323
    %v1326 = vmul.f32 %v1306, %v1324
    %v1327 = vmul.f32 %v1309, %v1324
    %v1328 = vmul.f32 %v1314, %v1324
    %v1329 = vld [vmem:[#allocation14] sm:$0x1]
    %v1331 = vlaneseq
    %v1332 = vshrl.u32 %v1331, 7
    %v1333 = vsub.s32 0, %v1332
    %v1334 = vrot.slane %v1329, %v1333
    %v1336 = vadd.f32 %v1326, %v1334
    %v1337 = vadd.f32 %v1327, %v1334
    %v1338 = vadd.f32 %v1328, %v1334
    %v1339 = vmax.f32 %v1336, 0.0
    %v1340 = vmax.f32 %v1337, 0.0
    %v1341 = vmax.f32 %v1338, 0.0
    %v1343 = vsel %vm930, %v602, 0
    %1345 = vmatprep.subr.bf16.mxu0 0
    %1346 = vmatpush1.bf16.msra.mxu0 0
    %1347 = vmatprep.subr.bf16.mxu0 0
    %1348 = vmatpush1.bf16.msra.mxu0 0
    %1349 = vmatprep.subr.bf16.mxu0 0
    %1350 = vmatpush1.bf16.msra.mxu0 0
    %1351 = vmatprep.subr.bf16.mxu0 0
    %1352 = vmatpush1.bf16.msra.mxu0 0
    %1353 = vmatprep.subr.bf16.mxu0 0
    %1354 = vmatpush1.bf16.msra.mxu0 0
    %1355 = vmatprep.subr.bf16.mxu0 0
    %1356 = vmatpush1.bf16.msra.mxu0 0
    %1357 = vmatprep.subr.bf16.mxu0 0
    %1358 = vmatpush1.bf16.msra.mxu0 %v941
    %1359 = vmatprep.subr.bf16.mxu0 0
    %1360 = vmatpush1.bf16.msra.mxu0 %v857
    %1361 = vmatprep.subr.bf16.mxu0 0
    %1362 = vmatpush2.bf16.msra.mxu0 0
    %1363 = vmatprep.subr.bf16.mxu0 0
    %1364 = vmatpush2.bf16.msra.mxu0 0
    %1365 = vmatprep.subr.bf16.mxu0 0
    %1366 = vmatpush2.bf16.msra.mxu0 0
    %1367 = vmatprep.subr.bf16.mxu0 0
    %1368 = vmatpush2.bf16.msra.mxu0 0
    %1369 = vmatprep.subr.bf16.mxu0 0
    %1370 = vmatpush2.bf16.msra.mxu0 0
    %1371 = vmatprep.subr.bf16.mxu0 0
    %1372 = vmatpush2.bf16.msra.mxu0 0
    %1373 = vmatprep.subr.bf16.mxu0 0
    %1374 = vmatpush2.bf16.msra.mxu0 0
    %1375 = vmatprep.subr.bf16.mxu0 0
    %1376 = vmatpush2.bf16.msra.mxu0 0
    %1377 = vmatprep.mubr.bf16.mxu0 0
    %1378 = vmatmul.mubr.bf16.gmra.mxu0 %v1343
    %v1379 = vpop.f32.mrf.mxu0
    %v1380 = vadd.f32 0.0, %v1379
    %v1381 = vpop.f32.mrf.mxu0
    %v1382 = vpop.f32.mrf.mxu0
    %v1383 = vpop.f32.mrf.mxu0
    %1384 = vdwg.mxu0
    %v1385 = vpack.c.bf16 %v1380, %v1380
    %v1386 = vld [vmem:[#allocation37] sm:$0xf]
    %v1387 = vld [vmem:[#allocation37 + $0x4] sm:$0xf]
    %v1388 = vld [vmem:[#allocation37 + $0x8] sm:$0xf]
    %v1389 = vld [vmem:[#allocation37 + $0xc] sm:$0xf]
    %v1390 = vld [vmem:[#allocation37 + $0x10] sm:$0xf]
    %v1391 = vld [vmem:[#allocation37 + $0x14] sm:$0xf]
    %v1392 = vld [vmem:[#allocation37 + $0x18] sm:$0xf]
    %v1393 = vld [vmem:[#allocation37 + $0x1c] sm:$0xf]
    %v1394 = vld [vmem:[#allocation37 + $0x20] sm:$0xf]
    %v1395 = vld [vmem:[#allocation37 + $0x24] sm:$0xf]
    %v1396 = vld [vmem:[#allocation37 + $0x28] sm:$0xf]
    %v1397 = vld [vmem:[#allocation37 + $0x2c] sm:$0xf]
    %v1398 = vld [vmem:[#allocation37 + $0x30] sm:$0xf]
    %v1399 = vld [vmem:[#allocation37 + $0x34] sm:$0xf]
    %v1400 = vld [vmem:[#allocation37 + $0x38] sm:$0xf]
    %v1401 = vld [vmem:[#allocation37 + $0x3c] sm:$0xf]
    %v1418 = vunpack.c.l.b16 %v1386
    %v1419 = vunpack.c.l.b16 %v1387
    %v1420 = vunpack.c.l.b16 %v1388
    %v1421 = vunpack.c.l.b16 %v1389
    %v1422 = vunpack.c.l.b16 %v1390
    %v1423 = vunpack.c.l.b16 %v1391
    %v1424 = vunpack.c.l.b16 %v1392
    %v1425 = vunpack.c.l.b16 %v1393
    %v1426 = vunpack.c.l.b16 %v1394
    %v1427 = vunpack.c.l.b16 %v1395
    %v1428 = vunpack.c.l.b16 %v1396
    %v1429 = vunpack.c.l.b16 %v1397
    %v1430 = vunpack.c.l.b16 %v1398
    %v1431 = vunpack.c.l.b16 %v1399
    %v1432 = vunpack.c.l.b16 %v1400
    %v1433 = vunpack.c.l.b16 %v1401
    %v1434 = vpack.c.b16 %v1419, %v1418
    %v1435 = vpack.c.b16 %v1421, %v1420
    %v1436 = vpack.c.b16 %v1423, %v1422
    %v1437 = vpack.c.b16 %v1425, %v1424
    %v1438 = vpack.c.b16 %v1427, %v1426
    %v1439 = vpack.c.b16 %v1429, %v1428
    %v1440 = vpack.c.b16 %v1431, %v1430
    %v1441 = vpack.c.b16 %v1433, %v1432
    %1450 = vmatprep.subr.bf16.mxu0 0
    %1451 = vmatpush1.bf16.msra.mxu0 %v1441
    %1452 = vmatprep.subr.bf16.mxu0 0
    %1453 = vmatpush1.bf16.msra.mxu0 %v1440
    %1454 = vmatprep.subr.bf16.mxu0 0
    %1455 = vmatpush1.bf16.msra.mxu0 %v1439
    %1456 = vmatprep.subr.bf16.mxu0 0
    %1457 = vmatpush1.bf16.msra.mxu0 %v1438
    %1458 = vmatprep.subr.bf16.mxu0 0
    %1459 = vmatpush1.bf16.msra.mxu0 %v1437
    %1460 = vmatprep.subr.bf16.mxu0 0
    %1461 = vmatpush1.bf16.msra.mxu0 %v1436
    %1462 = vmatprep.subr.bf16.mxu0 0
    %1463 = vmatpush1.bf16.msra.mxu0 %v1435
    %1464 = vmatprep.subr.bf16.mxu0 0
    %1465 = vmatpush1.bf16.msra.mxu0 %v1434
    %1466 = vmatprep.subr.bf16.mxu0 0
    %1467 = vmatpush2.bf16.msra.mxu0 0
    %1468 = vmatprep.subr.bf16.mxu0 0
    %1469 = vmatpush2.bf16.msra.mxu0 0
    %1470 = vmatprep.subr.bf16.mxu0 0
    %1471 = vmatpush2.bf16.msra.mxu0 0
    %1472 = vmatprep.subr.bf16.mxu0 0
    %1473 = vmatpush2.bf16.msra.mxu0 0
    %1474 = vmatprep.subr.bf16.mxu0 0
    %1475 = vmatpush2.bf16.msra.mxu0 0
    %1476 = vmatprep.subr.bf16.mxu0 0
    %1477 = vmatpush2.bf16.msra.mxu0 0
    %1478 = vmatprep.subr.bf16.mxu0 0
    %1479 = vmatpush2.bf16.msra.mxu0 0
    %1480 = vmatprep.subr.bf16.mxu0 0
    %1481 = vmatpush2.bf16.msra.mxu0 0
    %1482 = vmatprep.mubr.bf16.mxu0 0
    %1483 = vmatmul.mubr.bf16.gmra.mxu0 %v1385
    %v1484 = vpop.f32.mrf.mxu0
    %v1485 = vadd.f32 0.0, %v1484
    %v1486 = vpop.f32.mrf.mxu0
    %v1487 = vpop.f32.mrf.mxu0
    %v1488 = vpop.f32.mrf.mxu0
    %1489 = vdwg.mxu0
    %v1490 = vld [vmem:[#allocation38] sm:$0x1]
    %v1492 = vlaneseq
    %v1493 = vshrl.u32 %v1492, 7
    %v1494 = vsub.s32 0, %v1493
    %v1495 = vrot.slane %v1490, %v1494
    %v1497 = vmul.f32 %v1485, %v1495
    %v1498 = vld [vmem:[#allocation40] sm:$0x1]
    %v1500 = vlaneseq
    %v1501 = vshrl.u32 %v1500, 7
    %v1502 = vsub.s32 0, %v1501
    %v1503 = vrot.slane %v1498, %v1502
    %v1505 = vadd.f32 %v1497, %v1503
    %v1506 = vmax.f32 %v1505, 0.0
    %v1507 = vpack.c.bf16 %v1506, %v1506
    %v1508 = vld [vmem:[#allocation41] sm:$0xf]
    %v1509 = vld [vmem:[#allocation41 + $0x4] sm:$0xf]
    %v1510 = vld [vmem:[#allocation41 + $0x8] sm:$0xf]
    %v1511 = vld [vmem:[#allocation41 + $0xc] sm:$0xf]
    %v1512 = vld [vmem:[#allocation41 + $0x10] sm:$0xf]
    %v1513 = vld [vmem:[#allocation41 + $0x14] sm:$0xf]
    %v1514 = vld [vmem:[#allocation41 + $0x18] sm:$0xf]
    %v1515 = vld [vmem:[#allocation41 + $0x1c] sm:$0xf]
    %v1516 = vld [vmem:[#allocation41 + $0x20] sm:$0xf]
    %v1517 = vld [vmem:[#allocation41 + $0x24] sm:$0xf]
    %v1518 = vld [vmem:[#allocation41 + $0x28] sm:$0xf]
    %v1519 = vld [vmem:[#allocation41 + $0x2c] sm:$0xf]
    %v1520 = vld [vmem:[#allocation41 + $0x30] sm:$0xf]
    %v1521 = vld [vmem:[#allocation41 + $0x34] sm:$0xf]
    %v1522 = vld [vmem:[#allocation41 + $0x38] sm:$0xf]
    %v1523 = vld [vmem:[#allocation41 + $0x3c] sm:$0xf]
    %v1540 = vunpack.c.l.b16 %v1508
    %v1541 = vunpack.c.l.b16 %v1509
    %v1542 = vunpack.c.l.b16 %v1510
    %v1543 = vunpack.c.l.b16 %v1511
    %v1544 = vunpack.c.l.b16 %v1512
    %v1545 = vunpack.c.l.b16 %v1513
    %v1546 = vunpack.c.l.b16 %v1514
    %v1547 = vunpack.c.l.b16 %v1515
    %v1548 = vunpack.c.l.b16 %v1516
    %v1549 = vunpack.c.l.b16 %v1517
    %v1550 = vunpack.c.l.b16 %v1518
    %v1551 = vunpack.c.l.b16 %v1519
    %v1552 = vunpack.c.l.b16 %v1520
    %v1553 = vunpack.c.l.b16 %v1521
    %v1554 = vunpack.c.l.b16 %v1522
    %v1555 = vunpack.c.l.b16 %v1523
    %v1556 = vpack.c.b16 %v1541, %v1540
    %v1557 = vpack.c.b16 %v1543, %v1542
    %v1558 = vpack.c.b16 %v1545, %v1544
    %v1559 = vpack.c.b16 %v1547, %v1546
    %v1560 = vpack.c.b16 %v1549, %v1548
    %v1561 = vpack.c.b16 %v1551, %v1550
    %v1562 = vpack.c.b16 %v1553, %v1552
    %v1563 = vpack.c.b16 %v1555, %v1554
    %1572 = vmatprep.subr.bf16.mxu0 0
    %1573 = vmatpush1.bf16.msra.mxu0 %v1563
    %1574 = vmatprep.subr.bf16.mxu0 0
    %1575 = vmatpush1.bf16.msra.mxu0 %v1562
    %1576 = vmatprep.subr.bf16.mxu0 0
    %1577 = vmatpush1.bf16.msra.mxu0 %v1561
    %1578 = vmatprep.subr.bf16.mxu0 0
    %1579 = vmatpush1.bf16.msra.mxu0 %v1560
    %1580 = vmatprep.subr.bf16.mxu0 0
    %1581 = vmatpush1.bf16.msra.mxu0 %v1559
    %1582 = vmatprep.subr.bf16.mxu0 0
    %1583 = vmatpush1.bf16.msra.mxu0 %v1558
    %1584 = vmatprep.subr.bf16.mxu0 0
    %1585 = vmatpush1.bf16.msra.mxu0 %v1557
    %1586 = vmatprep.subr.bf16.mxu0 0
    %1587 = vmatpush1.bf16.msra.mxu0 %v1556
    %1588 = vmatprep.subr.bf16.mxu0 0
    %1589 = vmatpush2.bf16.msra.mxu0 0
    %1590 = vmatprep.subr.bf16.mxu0 0
    %1591 = vmatpush2.bf16.msra.mxu0 0
    %1592 = vmatprep.subr.bf16.mxu0 0
    %1593 = vmatpush2.bf16.msra.mxu0 0
    %1594 = vmatprep.subr.bf16.mxu0 0
    %1595 = vmatpush2.bf16.msra.mxu0 0
    %1596 = vmatprep.subr.bf16.mxu0 0
    %1597 = vmatpush2.bf16.msra.mxu0 0
    %1598 = vmatprep.subr.bf16.mxu0 0
    %1599 = vmatpush2.bf16.msra.mxu0 0
    %1600 = vmatprep.subr.bf16.mxu0 0
    %1601 = vmatpush2.bf16.msra.mxu0 0
    %1602 = vmatprep.subr.bf16.mxu0 0
    %1603 = vmatpush2.bf16.msra.mxu0 0
    %1604 = vmatprep.mubr.bf16.mxu0 0
    %1605 = vmatmul.mubr.bf16.gmra.mxu0 %v1507
    %v1606 = vpop.f32.mrf.mxu0
    %v1607 = vadd.f32 0.0, %v1606
    %v1608 = vpop.f32.mrf.mxu0
    %v1609 = vpop.f32.mrf.mxu0
    %v1610 = vpop.f32.mrf.mxu0
    %1611 = vdwg.mxu0
    %v1612 = vld [vmem:[#allocation43] sm:$0x1]
    %v1614 = vlaneseq
    %v1615 = vshrl.u32 %v1614, 7
    %v1616 = vsub.s32 0, %v1615
    %v1617 = vrot.slane %v1612, %v1616
    %v1619 = vmul.f32 %v1607, %v1617
    %v1620 = vld [vmem:[#allocation44] sm:$0x1]
    %v1622 = vlaneseq
    %v1623 = vshrl.u32 %v1622, 7
    %v1624 = vsub.s32 0, %v1623
    %v1625 = vrot.slane %v1620, %v1624
    %v1627 = vadd.f32 %v1619, %v1625
    %v1628 = vmax.f32 %v1627, 0.0
    %v1629 = vpack.c.bf16 %v1628, %v1628
    %v1631 = vsel %vm744, %v1629, 0
    %1633 = vmatprep.subr.bf16.mxu0 0
    %1634 = vmatpush1.bf16.msra.mxu0 0
    %1635 = vmatprep.subr.bf16.mxu0 0
    %1636 = vmatpush1.bf16.msra.mxu0 0
    %1637 = vmatprep.subr.bf16.mxu0 0
    %1638 = vmatpush1.bf16.msra.mxu0 0
    %1639 = vmatprep.subr.bf16.mxu0 0
    %1640 = vmatpush1.bf16.msra.mxu0 0
    %1641 = vmatprep.subr.bf16.mxu0 0
    %1642 = vmatpush1.bf16.msra.mxu0 0
    %1643 = vmatprep.subr.bf16.mxu0 0
    %1644 = vmatpush1.bf16.msra.mxu0 0
    %1645 = vmatprep.subr.bf16.mxu0 0
    %1646 = vmatpush1.bf16.msra.mxu0 0
    %1647 = vmatprep.subr.bf16.mxu0 0
    %1648 = vmatpush1.bf16.msra.mxu0 %v1631
    %1649 = vmatprep.subr.bf16.mxu0 0
    %1650 = vmatpush2.bf16.msra.mxu0 0
    %1651 = vmatprep.subr.bf16.mxu0 0
    %1652 = vmatpush2.bf16.msra.mxu0 0
    %1653 = vmatprep.subr.bf16.mxu0 0
    %1654 = vmatpush2.bf16.msra.mxu0 0
    %1655 = vmatprep.subr.bf16.mxu0 0
    %1656 = vmatpush2.bf16.msra.mxu0 0
    %1657 = vmatprep.subr.bf16.mxu0 0
    %1658 = vmatpush2.bf16.msra.mxu0 0
    %1659 = vmatprep.subr.bf16.mxu0 0
    %1660 = vmatpush2.bf16.msra.mxu0 0
    %1661 = vmatprep.subr.bf16.mxu0 0
    %1662 = vmatpush2.bf16.msra.mxu0 0
    %1663 = vmatprep.subr.bf16.mxu0 0
    %1664 = vmatpush2.bf16.msra.mxu0 0
    %1665 = vmatprep.mubr.bf16.mxu0 0
    %1666 = vmatmul.mubr.bf16.gmra.mxu0 %v739
    %v1667 = vpop.f32.mrf.mxu0
    %v1668 = vadd.f32 0.0, %v1667
    %v1669 = vpop.f32.mrf.mxu0
    %v1670 = vpop.f32.mrf.mxu0
    %v1671 = vadd.f32 0.0, %v1670
    %v1672 = vpop.f32.mrf.mxu0
    %1673 = vmatprep.mubr.bf16.mxu0 0
    %1674 = vmatmul.mubr.bf16.gmra.mxu0 %v742
    %v1675 = vpop.f32.mrf.mxu0
    %v1676 = vadd.f32 0.0, %v1675
    %v1677 = vpop.f32.mrf.mxu0
    %v1678 = vpop.f32.mrf.mxu0
    %v1679 = vpop.f32.mrf.mxu0
    %1680 = vdwg.mxu0
    %v1681 = vadd.f32 %v1339, %v1668
    %v1682 = vadd.f32 %v1340, %v1671
    %v1683 = vadd.f32 %v1341, %v1676
    %v1684 = vpack.c.bf16 %v1682, %v1681
    %v1685 = vpack.c.bf16 %v1683, %v1683
    %v1686 = vld [vmem:[#allocation16] sm:$0xf]
    %v1688 = vsel %vm870, %v1686, 0
    %1690 = vmatprep.subr.bf16.mxu0 0
    %1691 = vmatpush1.bf16.msra.mxu0 0
    %1692 = vmatprep.subr.bf16.mxu0 0
    %1693 = vmatpush1.bf16.msra.mxu0 0
    %1694 = vmatprep.subr.bf16.mxu0 0
    %1695 = vmatpush1.bf16.msra.mxu0 0
    %1696 = vmatprep.subr.bf16.mxu0 0
    %1697 = vmatpush1.bf16.msra.mxu0 0
    %1698 = vmatprep.subr.bf16.mxu0 0
    %1699 = vmatpush1.bf16.msra.mxu0 0
    %1700 = vmatprep.subr.bf16.mxu0 0
    %1701 = vmatpush1.bf16.msra.mxu0 0
    %1702 = vmatprep.subr.bf16.mxu0 0
    %1703 = vmatpush1.bf16.msra.mxu0 0
    %1704 = vmatprep.subr.bf16.mxu0 0
    %1705 = vmatpush1.bf16.msra.mxu0 %v1688
    %1706 = vmatprep.subr.bf16.mxu0 0
    %1707 = vmatpush2.bf16.msra.mxu0 0
    %1708 = vmatprep.subr.bf16.mxu0 0
    %1709 = vmatpush2.bf16.msra.mxu0 0
    %1710 = vmatprep.subr.bf16.mxu0 0
    %1711 = vmatpush2.bf16.msra.mxu0 0
    %1712 = vmatprep.subr.bf16.mxu0 0
    %1713 = vmatpush2.bf16.msra.mxu0 0
    %1714 = vmatprep.subr.bf16.mxu0 0
    %1715 = vmatpush2.bf16.msra.mxu0 0
    %1716 = vmatprep.subr.bf16.mxu0 0
    %1717 = vmatpush2.bf16.msra.mxu0 0
    %1718 = vmatprep.subr.bf16.mxu0 0
    %1719 = vmatpush2.bf16.msra.mxu0 0
    %1720 = vmatprep.subr.bf16.mxu0 0
    %1721 = vmatpush2.bf16.msra.mxu0 0
    %1722 = vmatprep.mubr.bf16.mxu0 0
    %1723 = vmatmul.mubr.bf16.gmra.mxu0 %v862
    %v1724 = vpop.f32.mrf.mxu0
    %v1725 = vadd.f32 0.0, %v1724
    %v1726 = vpop.f32.mrf.mxu0
    %v1727 = vpop.f32.mrf.mxu0
    %v1728 = vadd.f32 0.0, %v1727
    %v1729 = vpop.f32.mrf.mxu0
    %1730 = vmatprep.mubr.bf16.mxu0 0
    %1731 = vmatmul.mubr.bf16.gmra.mxu0 %v865
    %v1732 = vpop.f32.mrf.mxu0
    %v1733 = vadd.f32 0.0, %v1732
    %v1734 = vpop.f32.mrf.mxu0
    %v1735 = vpop.f32.mrf.mxu0
    %v1736 = vadd.f32 0.0, %v1735
    %v1737 = vpop.f32.mrf.mxu0
    %1738 = vmatprep.mubr.bf16.mxu0 0
    %1739 = vmatmul.mubr.bf16.gmra.mxu0 %v868
    %v1740 = vpop.f32.mrf.mxu0
    %v1741 = vadd.f32 0.0, %v1740
    %v1742 = vpop.f32.mrf.mxu0
    %v1743 = vpop.f32.mrf.mxu0
    %v1744 = vpop.f32.mrf.mxu0
    %1745 = vdwg.mxu0
    %v1747 = vsel %vm870, %v1685, 0
    %1749 = vmatprep.subr.bf16.mxu0 0
    %1750 = vmatpush1.bf16.msra.mxu0 0
    %1751 = vmatprep.subr.bf16.mxu0 0
    %1752 = vmatpush1.bf16.msra.mxu0 0
    %1753 = vmatprep.subr.bf16.mxu0 0
    %1754 = vmatpush1.bf16.msra.mxu0 0
    %1755 = vmatprep.subr.bf16.mxu0 0
    %1756 = vmatpush1.bf16.msra.mxu0 0
    %1757 = vmatprep.subr.bf16.mxu0 0
    %1758 = vmatpush1.bf16.msra.mxu0 0
    %1759 = vmatprep.subr.bf16.mxu0 0
    %1760 = vmatpush1.bf16.msra.mxu0 0
    %1761 = vmatprep.subr.bf16.mxu0 0
    %1762 = vmatpush1.bf16.msra.mxu0 %v1747
    %1763 = vmatprep.subr.bf16.mxu0 0
    %1764 = vmatpush1.bf16.msra.mxu0 %v1684
    %1765 = vmatprep.subr.bf16.mxu0 0
    %1766 = vmatpush2.bf16.msra.mxu0 0
    %1767 = vmatprep.subr.bf16.mxu0 0
    %1768 = vmatpush2.bf16.msra.mxu0 0
    %1769 = vmatprep.subr.bf16.mxu0 0
    %1770 = vmatpush2.bf16.msra.mxu0 0
    %1771 = vmatprep.subr.bf16.mxu0 0
    %1772 = vmatpush2.bf16.msra.mxu0 0
    %1773 = vmatprep.subr.bf16.mxu0 0
    %1774 = vmatpush2.bf16.msra.mxu0 0
    %1775 = vmatprep.subr.bf16.mxu0 0
    %1776 = vmatpush2.bf16.msra.mxu0 0
    %1777 = vmatprep.subr.bf16.mxu0 0
    %1778 = vmatpush2.bf16.msra.mxu0 0
    %1779 = vmatprep.subr.bf16.mxu0 0
    %1780 = vmatpush2.bf16.msra.mxu0 0
    %1781 = vmatprep.mubr.bf16.mxu0 0
    %1782 = vmatmul.mubr.bf16.gmra.mxu0 %v932
    %v1783 = vpop.f32.mrf.mxu0
    %v1784 = vadd.f32 %v1725, %v1783
    %v1785 = vpop.f32.mrf.mxu0
    %v1786 = vpop.f32.mrf.mxu0
    %v1787 = vadd.f32 %v1728, %v1786
    %v1788 = vpop.f32.mrf.mxu0
    %1789 = vmatprep.mubr.bf16.mxu0 0
    %1790 = vmatmul.mubr.bf16.gmra.mxu0 %v935
    %v1791 = vpop.f32.mrf.mxu0
    %v1792 = vadd.f32 %v1733, %v1791
    %v1793 = vpop.f32.mrf.mxu0
    %v1794 = vpop.f32.mrf.mxu0
    %v1795 = vadd.f32 %v1736, %v1794
    %v1796 = vpop.f32.mrf.mxu0
    %1797 = vmatprep.mubr.bf16.mxu0 0
    %1798 = vmatmul.mubr.bf16.gmra.mxu0 %v938
    %v1799 = vpop.f32.mrf.mxu0
    %v1800 = vadd.f32 %v1741, %v1799
    %v1801 = vpop.f32.mrf.mxu0
    %v1802 = vpop.f32.mrf.mxu0
    %v1803 = vpop.f32.mrf.mxu0
    %1804 = vdwg.mxu0
    %v1805 = vmax.f32 %v1784, 0.0
    %v1806 = vmax.f32 %v1787, 0.0
    %v1807 = vmax.f32 %v1792, 0.0
    %v1808 = vmax.f32 %v1795, 0.0
    %v1809 = vmax.f32 %v1800, 0.0
    %v1810 = vpack.c.bf16 %v1806, %v1805
    %v1811 = vpack.c.bf16 %v1808, %v1807
    %v1812 = vpack.c.bf16 %v1809, %v1809
    %v1814 = vsel %vm870, %v1812, 0
    %1816 = vmatprep.subr.bf16.mxu0 0
    %1817 = vmatpush1.bf16.msra.mxu0 0
    %1818 = vmatprep.subr.bf16.mxu0 0
    %1819 = vmatpush1.bf16.msra.mxu0 0
    %1820 = vmatprep.subr.bf16.mxu0 0
    %1821 = vmatpush1.bf16.msra.mxu0 0
    %1822 = vmatprep.subr.bf16.mxu0 0
    %1823 = vmatpush1.bf16.msra.mxu0 0
    %1824 = vmatprep.subr.bf16.mxu0 0
    %1825 = vmatpush1.bf16.msra.mxu0 0
    %1826 = vmatprep.subr.bf16.mxu0 0
    %1827 = vmatpush1.bf16.msra.mxu0 %v1814
    %1828 = vmatprep.subr.bf16.mxu0 0
    %1829 = vmatpush1.bf16.msra.mxu0 %v1811
    %1830 = vmatprep.subr.bf16.mxu0 0
    %1831 = vmatpush1.bf16.msra.mxu0 %v1810
    %1832 = vmatprep.subr.bf16.mxu0 0
    %1833 = vmatpush2.bf16.msra.mxu0 0
    %1834 = vmatprep.subr.bf16.mxu0 0
    %1835 = vmatpush2.bf16.msra.mxu0 0
    %1836 = vmatprep.subr.bf16.mxu0 0
    %1837 = vmatpush2.bf16.msra.mxu0 0
    %1838 = vmatprep.subr.bf16.mxu0 0
    %1839 = vmatpush2.bf16.msra.mxu0 0
    %1840 = vmatprep.subr.bf16.mxu0 0
    %1841 = vmatpush2.bf16.msra.mxu0 0
    %1842 = vmatprep.subr.bf16.mxu0 0
    %1843 = vmatpush2.bf16.msra.mxu0 0
    %1844 = vmatprep.subr.bf16.mxu0 0
    %1845 = vmatpush2.bf16.msra.mxu0 0
    %1846 = vmatprep.subr.bf16.mxu0 0
    %1847 = vmatpush2.bf16.msra.mxu0 0
    %1848 = vmatprep.mubr.bf16.mxu0 0
    %1849 = vmatmul.mubr.bf16.gmra.mxu0 %v1009
    %v1850 = vpop.f32.mrf.mxu0
    %v1851 = vadd.f32 0.0, %v1850
    %v1852 = vpop.f32.mrf.mxu0
    %v1853 = vpop.f32.mrf.mxu0
    %v1854 = vadd.f32 0.0, %v1853
    %v1855 = vpop.f32.mrf.mxu0
    %1856 = vmatprep.mubr.bf16.mxu0 0
    %1857 = vmatmul.mubr.bf16.gmra.mxu0 %v1012
    %v1858 = vpop.f32.mrf.mxu0
    %v1859 = vadd.f32 0.0, %v1858
    %v1860 = vpop.f32.mrf.mxu0
    %v1861 = vpop.f32.mrf.mxu0
    %v1862 = vpop.f32.mrf.mxu0
    %1863 = vdwg.mxu0
    %v1864 = vadd.f32 %v1681, %v1851
    %v1865 = vadd.f32 %v1682, %v1854
    %v1866 = vadd.f32 %v1683, %v1859
    %v1867 = vpack.c.bf16 %v1865, %v1864
    %v1868 = vpack.c.bf16 %v1866, %v1866
    %v1869 = vld [vmem:[#allocation17] sm:$0xf]
    %v1870 = vld [vmem:[#allocation17 + $0x4] sm:$0xf]
    %v1871 = vld [vmem:[#allocation17 + $0x8] sm:$0xf]
    %v1872 = vld [vmem:[#allocation17 + $0xc] sm:$0xf]
    %v1873 = vld [vmem:[#allocation17 + $0x10] sm:$0xf]
    %v1874 = vld [vmem:[#allocation17 + $0x14] sm:$0xf]
    %v1875 = vld [vmem:[#allocation17 + $0x18] sm:$0xf]
    %v1876 = vld [vmem:[#allocation17 + $0x1c] sm:$0xf]
    %v1877 = vld [vmem:[#allocation17 + $0x20] sm:$0xf]
    %v1878 = vld [vmem:[#allocation17 + $0x24] sm:$0xf]
    %v1879 = vld [vmem:[#allocation17 + $0x28] sm:$0xf]
    %v1880 = vld [vmem:[#allocation17 + $0x2c] sm:$0xf]
    %v1881 = vld [vmem:[#allocation17 + $0x30] sm:$0xf]
    %v1882 = vld [vmem:[#allocation17 + $0x34] sm:$0xf]
    %v1883 = vld [vmem:[#allocation17 + $0x38] sm:$0xf]
    %v1884 = vld [vmem:[#allocation17 + $0x3c] sm:$0xf]
    %v1901 = vunpack.c.l.b16 %v1869
    %v1902 = vunpack.c.l.b16 %v1870
    %v1903 = vunpack.c.l.b16 %v1871
    %v1904 = vunpack.c.l.b16 %v1872
    %v1905 = vunpack.c.l.b16 %v1873
    %v1906 = vunpack.c.l.b16 %v1874
    %v1907 = vunpack.c.l.b16 %v1875
    %v1908 = vunpack.c.l.b16 %v1876
    %v1909 = vunpack.c.l.b16 %v1877
    %v1910 = vunpack.c.l.b16 %v1878
    %v1911 = vunpack.c.l.b16 %v1879
    %v1912 = vunpack.c.l.b16 %v1880
    %v1913 = vunpack.c.l.b16 %v1881
    %v1914 = vunpack.c.l.b16 %v1882
    %v1915 = vunpack.c.l.b16 %v1883
    %v1916 = vunpack.c.l.b16 %v1884
    %v1917 = vpack.c.b16 %v1902, %v1901
    %v1918 = vpack.c.b16 %v1904, %v1903
    %v1919 = vpack.c.b16 %v1906, %v1905
    %v1920 = vpack.c.b16 %v1908, %v1907
    %v1921 = vpack.c.b16 %v1910, %v1909
    %v1922 = vpack.c.b16 %v1912, %v1911
    %v1923 = vpack.c.b16 %v1914, %v1913
    %v1924 = vpack.c.b16 %v1916, %v1915
    %1933 = vmatprep.subr.bf16.mxu0 0
    %1934 = vmatpush1.bf16.msra.mxu0 %v1924
    %1935 = vmatprep.subr.bf16.mxu0 0
    %1936 = vmatpush1.bf16.msra.mxu0 %v1923
    %1937 = vmatprep.subr.bf16.mxu0 0
    %1938 = vmatpush1.bf16.msra.mxu0 %v1922
    %1939 = vmatprep.subr.bf16.mxu0 0
    %1940 = vmatpush1.bf16.msra.mxu0 %v1921
    %1941 = vmatprep.subr.bf16.mxu0 0
    %1942 = vmatpush1.bf16.msra.mxu0 %v1920
    %1943 = vmatprep.subr.bf16.mxu0 0
    %1944 = vmatpush1.bf16.msra.mxu0 %v1919
    %1945 = vmatprep.subr.bf16.mxu0 0
    %1946 = vmatpush1.bf16.msra.mxu0 %v1918
    %1947 = vmatprep.subr.bf16.mxu0 0
    %1948 = vmatpush1.bf16.msra.mxu0 %v1917
    %1949 = vmatprep.subr.bf16.mxu0 0
    %1950 = vmatpush2.bf16.msra.mxu0 0
    %1951 = vmatprep.subr.bf16.mxu0 0
    %1952 = vmatpush2.bf16.msra.mxu0 0
    %1953 = vmatprep.subr.bf16.mxu0 0
    %1954 = vmatpush2.bf16.msra.mxu0 0
    %1955 = vmatprep.subr.bf16.mxu0 0
    %1956 = vmatpush2.bf16.msra.mxu0 0
    %1957 = vmatprep.subr.bf16.mxu0 0
    %1958 = vmatpush2.bf16.msra.mxu0 0
    %1959 = vmatprep.subr.bf16.mxu0 0
    %1960 = vmatpush2.bf16.msra.mxu0 0
    %1961 = vmatprep.subr.bf16.mxu0 0
    %1962 = vmatpush2.bf16.msra.mxu0 0
    %1963 = vmatprep.subr.bf16.mxu0 0
    %1964 = vmatpush2.bf16.msra.mxu0 0
    %1965 = vmatprep.mubr.bf16.mxu0 0
    %1966 = vmatmul.mubr.bf16.gmra.mxu0 %v1867
    %v1967 = vpop.f32.mrf.mxu0
    %v1968 = vadd.f32 0.0, %v1967
    %v1969 = vpop.f32.mrf.mxu0
    %v1970 = vpop.f32.mrf.mxu0
    %v1971 = vadd.f32 0.0, %v1970
    %v1972 = vpop.f32.mrf.mxu0
    %1973 = vmatprep.mubr.bf16.mxu0 0
    %1974 = vmatmul.mubr.bf16.gmra.mxu0 %v1868
    %v1975 = vpop.f32.mrf.mxu0
    %v1976 = vadd.f32 0.0, %v1975
    %v1977 = vpop.f32.mrf.mxu0
    %v1978 = vpop.f32.mrf.mxu0
    %v1979 = vpop.f32.mrf.mxu0
    %1980 = vdwg.mxu0
    %v1981 = vld [vmem:[#allocation19] sm:$0x1]
    %v1983 = vlaneseq
    %v1984 = vshrl.u32 %v1983, 7
    %v1985 = vsub.s32 0, %v1984
    %v1986 = vrot.slane %v1981, %v1985
    %v1988 = vmul.f32 %v1968, %v1986
    %v1989 = vmul.f32 %v1971, %v1986
    %v1990 = vmul.f32 %v1976, %v1986
    %v1991 = vld [vmem:[#allocation20] sm:$0x1]
    %v1993 = vlaneseq
    %v1994 = vshrl.u32 %v1993, 7
    %v1995 = vsub.s32 0, %v1994
    %v1996 = vrot.slane %v1991, %v1995
    %v1998 = vadd.f32 %v1988, %v1996
    %v1999 = vadd.f32 %v1989, %v1996
    %v2000 = vadd.f32 %v1990, %v1996
    %v2001 = vmax.f32 %v1998, 0.0
    %v2002 = vmax.f32 %v1999, 0.0
    %v2003 = vmax.f32 %v2000, 0.0
    %v2004 = vpack.c.bf16 %v2002, %v2001
    %v2005 = vpack.c.bf16 %v2003, %v2003
    %v2006 = vld [vmem:[#allocation22] sm:$0xf]
    %v2007 = vld [vmem:[#allocation22 + $0x4] sm:$0xf]
    %v2008 = vld [vmem:[#allocation22 + $0x8] sm:$0xf]
    %v2009 = vld [vmem:[#allocation22 + $0xc] sm:$0xf]
    %v2010 = vld [vmem:[#allocation22 + $0x10] sm:$0xf]
    %v2011 = vld [vmem:[#allocation22 + $0x14] sm:$0xf]
    %v2012 = vld [vmem:[#allocation22 + $0x18] sm:$0xf]
    %v2013 = vld [vmem:[#allocation22 + $0x1c] sm:$0xf]
    %v2014 = vld [vmem:[#allocation22 + $0x20] sm:$0xf]
    %v2015 = vld [vmem:[#allocation22 + $0x24] sm:$0xf]
    %v2016 = vld [vmem:[#allocation22 + $0x28] sm:$0xf]
    %v2017 = vld [vmem:[#allocation22 + $0x2c] sm:$0xf]
    %v2018 = vld [vmem:[#allocation22 + $0x30] sm:$0xf]
    %v2019 = vld [vmem:[#allocation22 + $0x34] sm:$0xf]
    %v2020 = vld [vmem:[#allocation22 + $0x38] sm:$0xf]
    %v2021 = vld [vmem:[#allocation22 + $0x3c] sm:$0xf]
    %v2038 = vunpack.c.l.b16 %v2006
    %v2039 = vunpack.c.l.b16 %v2007
    %v2040 = vunpack.c.l.b16 %v2008
    %v2041 = vunpack.c.l.b16 %v2009
    %v2042 = vunpack.c.l.b16 %v2010
    %v2043 = vunpack.c.l.b16 %v2011
    %v2044 = vunpack.c.l.b16 %v2012
    %v2045 = vunpack.c.l.b16 %v2013
    %v2046 = vunpack.c.l.b16 %v2014
    %v2047 = vunpack.c.l.b16 %v2015
    %v2048 = vunpack.c.l.b16 %v2016
    %v2049 = vunpack.c.l.b16 %v2017
    %v2050 = vunpack.c.l.b16 %v2018
    %v2051 = vunpack.c.l.b16 %v2019
    %v2052 = vunpack.c.l.b16 %v2020
    %v2053 = vunpack.c.l.b16 %v2021
    %v2054 = vpack.c.b16 %v2039, %v2038
    %v2055 = vpack.c.b16 %v2041, %v2040
    %v2056 = vpack.c.b16 %v2043, %v2042
    %v2057 = vpack.c.b16 %v2045, %v2044
    %v2058 = vpack.c.b16 %v2047, %v2046
    %v2059 = vpack.c.b16 %v2049, %v2048
    %v2060 = vpack.c.b16 %v2051, %v2050
    %v2061 = vpack.c.b16 %v2053, %v2052
    %2070 = vmatprep.subr.bf16.mxu0 0
    %2071 = vmatpush1.bf16.msra.mxu0 %v2061
    %2072 = vmatprep.subr.bf16.mxu0 0
    %2073 = vmatpush1.bf16.msra.mxu0 %v2060
    %2074 = vmatprep.subr.bf16.mxu0 0
    %2075 = vmatpush1.bf16.msra.mxu0 %v2059
    %2076 = vmatprep.subr.bf16.mxu0 0
    %2077 = vmatpush1.bf16.msra.mxu0 %v2058
    %2078 = vmatprep.subr.bf16.mxu0 0
    %2079 = vmatpush1.bf16.msra.mxu0 %v2057
    %2080 = vmatprep.subr.bf16.mxu0 0
    %2081 = vmatpush1.bf16.msra.mxu0 %v2056
    %2082 = vmatprep.subr.bf16.mxu0 0
    %2083 = vmatpush1.bf16.msra.mxu0 %v2055
    %2084 = vmatprep.subr.bf16.mxu0 0
    %2085 = vmatpush1.bf16.msra.mxu0 %v2054
    %2086 = vmatprep.subr.bf16.mxu0 0
    %2087 = vmatpush2.bf16.msra.mxu0 0
    %2088 = vmatprep.subr.bf16.mxu0 0
    %2089 = vmatpush2.bf16.msra.mxu0 0
    %2090 = vmatprep.subr.bf16.mxu0 0
    %2091 = vmatpush2.bf16.msra.mxu0 0
    %2092 = vmatprep.subr.bf16.mxu0 0
    %2093 = vmatpush2.bf16.msra.mxu0 0
    %2094 = vmatprep.subr.bf16.mxu0 0
    %2095 = vmatpush2.bf16.msra.mxu0 0
    %2096 = vmatprep.subr.bf16.mxu0 0
    %2097 = vmatpush2.bf16.msra.mxu0 0
    %2098 = vmatprep.subr.bf16.mxu0 0
    %2099 = vmatpush2.bf16.msra.mxu0 0
    %2100 = vmatprep.subr.bf16.mxu0 0
    %2101 = vmatpush2.bf16.msra.mxu0 0
    %2102 = vmatprep.mubr.bf16.mxu0 0
    %2103 = vmatmul.mubr.bf16.gmra.mxu0 %v2004
    %v2104 = vpop.f32.mrf.mxu0
    %v2105 = vadd.f32 0.0, %v2104
    %v2106 = vpop.f32.mrf.mxu0
    %v2107 = vpop.f32.mrf.mxu0
    %v2108 = vadd.f32 0.0, %v2107
    %v2109 = vpop.f32.mrf.mxu0
    %2110 = vmatprep.mubr.bf16.mxu0 0
    %2111 = vmatmul.mubr.bf16.gmra.mxu0 %v2005
    %v2112 = vpop.f32.mrf.mxu0
    %v2113 = vadd.f32 0.0, %v2112
    %v2114 = vpop.f32.mrf.mxu0
    %v2115 = vpop.f32.mrf.mxu0
    %v2116 = vpop.f32.mrf.mxu0
    %2117 = vdwg.mxu0
    %v2118 = vld [vmem:[#allocation23] sm:$0x1]
    %v2120 = vlaneseq
    %v2121 = vshrl.u32 %v2120, 7
    %v2122 = vsub.s32 0, %v2121
    %v2123 = vrot.slane %v2118, %v2122
    %v2125 = vmul.f32 %v2105, %v2123
    %v2126 = vmul.f32 %v2108, %v2123
    %v2127 = vmul.f32 %v2113, %v2123
    %v2128 = vld [vmem:[#allocation25] sm:$0x1]
    %v2130 = vlaneseq
    %v2131 = vshrl.u32 %v2130, 7
    %v2132 = vsub.s32 0, %v2131
    %v2133 = vrot.slane %v2128, %v2132
    %v2135 = vadd.f32 %v2125, %v2133
    %v2136 = vadd.f32 %v2126, %v2133
    %v2137 = vadd.f32 %v2127, %v2133
    %v2138 = vmax.f32 %v2135, 0.0
    %v2139 = vmax.f32 %v2136, 0.0
    %v2140 = vmax.f32 %v2137, 0.0
    %2141 = vmatprep.subr.bf16.mxu0 0
    %2142 = vmatpush1.bf16.msra.mxu0 0
    %2143 = vmatprep.subr.bf16.mxu0 0
    %2144 = vmatpush1.bf16.msra.mxu0 0
    %2145 = vmatprep.subr.bf16.mxu0 0
    %2146 = vmatpush1.bf16.msra.mxu0 0
    %2147 = vmatprep.subr.bf16.mxu0 0
    %2148 = vmatpush1.bf16.msra.mxu0 0
    %2149 = vmatprep.subr.bf16.mxu0 0
    %2150 = vmatpush1.bf16.msra.mxu0 0
    %2151 = vmatprep.subr.bf16.mxu0 0
    %2152 = vmatpush1.bf16.msra.mxu0 0
    %2153 = vmatprep.subr.bf16.mxu0 0
    %2154 = vmatpush1.bf16.msra.mxu0 %v1747
    %2155 = vmatprep.subr.bf16.mxu0 0
    %2156 = vmatpush1.bf16.msra.mxu0 %v1684
    %2157 = vmatprep.subr.bf16.mxu0 0
    %2158 = vmatpush2.bf16.msra.mxu0 0
    %2159 = vmatprep.subr.bf16.mxu0 0
    %2160 = vmatpush2.bf16.msra.mxu0 0
    %2161 = vmatprep.subr.bf16.mxu0 0
    %2162 = vmatpush2.bf16.msra.mxu0 0
    %2163 = vmatprep.subr.bf16.mxu0 0
    %2164 = vmatpush2.bf16.msra.mxu0 0
    %2165 = vmatprep.subr.bf16.mxu0 0
    %2166 = vmatpush2.bf16.msra.mxu0 0
    %2167 = vmatprep.subr.bf16.mxu0 0
    %2168 = vmatpush2.bf16.msra.mxu0 0
    %2169 = vmatprep.subr.bf16.mxu0 0
    %2170 = vmatpush2.bf16.msra.mxu0 0
    %2171 = vmatprep.subr.bf16.mxu0 0
    %2172 = vmatpush2.bf16.msra.mxu0 0
    %2173 = vmatprep.mubr.bf16.mxu0 0
    %2174 = vmatmul.mubr.bf16.gmra.mxu0 %v1343
    %v2175 = vpop.f32.mrf.mxu0
    %v2176 = vadd.f32 %v1628, %v2175
    %v2177 = vpop.f32.mrf.mxu0
    %v2178 = vpop.f32.mrf.mxu0
    %v2179 = vpop.f32.mrf.mxu0
    %2180 = vdwg.mxu0
    %v2181 = vpack.c.bf16 %v2176, %v2176
    %v2182 = vld [vmem:[%s69] sm:$0xf]
    %v2183 = vld [vmem:[%s69 + $0x4] sm:$0xf]
    %v2184 = vld [vmem:[%s69 + $0x8] sm:$0xf]
    %v2185 = vld [vmem:[%s69 + $0xc] sm:$0xf]
    %v2186 = vld [vmem:[%s69 + $0x10] sm:$0xf]
    %v2187 = vld [vmem:[%s69 + $0x14] sm:$0xf]
    %v2188 = vld [vmem:[%s69 + $0x18] sm:$0xf]
    %v2189 = vld [vmem:[%s69 + $0x1c] sm:$0xf]
    %v2190 = vld [vmem:[%s69 + $0x20] sm:$0xf]
    %v2191 = vld [vmem:[%s69 + $0x24] sm:$0xf]
    %v2192 = vld [vmem:[%s69 + $0x28] sm:$0xf]
    %v2193 = vld [vmem:[%s69 + $0x2c] sm:$0xf]
    %v2194 = vld [vmem:[%s69 + $0x30] sm:$0xf]
    %v2195 = vld [vmem:[%s69 + $0x34] sm:$0xf]
    %v2196 = vld [vmem:[%s69 + $0x38] sm:$0xf]
    %v2197 = vld [vmem:[%s69 + $0x3c] sm:$0xf]
    %v2214 = vunpack.c.l.b16 %v2182
    %v2215 = vunpack.c.l.b16 %v2183
    %v2216 = vunpack.c.l.b16 %v2184
    %v2217 = vunpack.c.l.b16 %v2185
    %v2218 = vunpack.c.l.b16 %v2186
    %v2219 = vunpack.c.l.b16 %v2187
    %v2220 = vunpack.c.l.b16 %v2188
    %v2221 = vunpack.c.l.b16 %v2189
    %v2222 = vunpack.c.l.b16 %v2190
    %v2223 = vunpack.c.l.b16 %v2191
    %v2224 = vunpack.c.l.b16 %v2192
    %v2225 = vunpack.c.l.b16 %v2193
    %v2226 = vunpack.c.l.b16 %v2194
    %v2227 = vunpack.c.l.b16 %v2195
    %v2228 = vunpack.c.l.b16 %v2196
    %v2229 = vunpack.c.l.b16 %v2197
    %v2230 = vpack.c.b16 %v2215, %v2214
    %v2231 = vpack.c.b16 %v2217, %v2216
    %v2232 = vpack.c.b16 %v2219, %v2218
    %v2233 = vpack.c.b16 %v2221, %v2220
    %v2234 = vpack.c.b16 %v2223, %v2222
    %v2235 = vpack.c.b16 %v2225, %v2224
    %v2236 = vpack.c.b16 %v2227, %v2226
    %v2237 = vpack.c.b16 %v2229, %v2228
    %2246 = vmatprep.subr.bf16.mxu0 0
    %2247 = vmatpush1.bf16.msra.mxu0 %v2237
    %2248 = vmatprep.subr.bf16.mxu0 0
    %2249 = vmatpush1.bf16.msra.mxu0 %v2236
    %2250 = vmatprep.subr.bf16.mxu0 0
    %2251 = vmatpush1.bf16.msra.mxu0 %v2235
    %2252 = vmatprep.subr.bf16.mxu0 0
    %2253 = vmatpush1.bf16.msra.mxu0 %v2234
    %2254 = vmatprep.subr.bf16.mxu0 0
    %2255 = vmatpush1.bf16.msra.mxu0 %v2233
    %2256 = vmatprep.subr.bf16.mxu0 0
    %2257 = vmatpush1.bf16.msra.mxu0 %v2232
    %2258 = vmatprep.subr.bf16.mxu0 0
    %2259 = vmatpush1.bf16.msra.mxu0 %v2231
    %2260 = vmatprep.subr.bf16.mxu0 0
    %2261 = vmatpush1.bf16.msra.mxu0 %v2230
    %2262 = vmatprep.subr.bf16.mxu0 0
    %2263 = vmatpush2.bf16.msra.mxu0 0
    %2264 = vmatprep.subr.bf16.mxu0 0
    %2265 = vmatpush2.bf16.msra.mxu0 0
    %2266 = vmatprep.subr.bf16.mxu0 0
    %2267 = vmatpush2.bf16.msra.mxu0 0
    %2268 = vmatprep.subr.bf16.mxu0 0
    %2269 = vmatpush2.bf16.msra.mxu0 0
    %2270 = vmatprep.subr.bf16.mxu0 0
    %2271 = vmatpush2.bf16.msra.mxu0 0
    %2272 = vmatprep.subr.bf16.mxu0 0
    %2273 = vmatpush2.bf16.msra.mxu0 0
    %2274 = vmatprep.subr.bf16.mxu0 0
    %2275 = vmatpush2.bf16.msra.mxu0 0
    %2276 = vmatprep.subr.bf16.mxu0 0
    %2277 = vmatpush2.bf16.msra.mxu0 0
    %2278 = vmatprep.mubr.bf16.mxu0 0
    %2279 = vmatmul.mubr.bf16.gmra.mxu0 %v2181
    %v2280 = vpop.f32.mrf.mxu0
    %v2281 = vadd.f32 0.0, %v2280
    %v2282 = vpop.f32.mrf.mxu0
    %v2283 = vpop.f32.mrf.mxu0
    %v2284 = vpop.f32.mrf.mxu0
    %2285 = vdwg.mxu0
    %v2286 = vld [vmem:[%s71] sm:$0x1]
    %v2288 = vlaneseq
    %v2289 = vshrl.u32 %v2288, 7
    %v2290 = vsub.s32 0, %v2289
    %v2291 = vrot.slane %v2286, %v2290
    %v2293 = vmul.f32 %v2281, %v2291
    %v2294 = vld [vmem:[%s73] sm:$0x1]
    %v2296 = vlaneseq
    %v2297 = vshrl.u32 %v2296, 7
    %v2298 = vsub.s32 0, %v2297
    %v2299 = vrot.slane %v2294, %v2298
    %v2301 = vadd.f32 %v2293, %v2299
    %v2302 = vmax.f32 %v2301, 0.0
    %v2303 = vpack.c.bf16 %v2302, %v2302
    %v2304 = vld [vmem:[#allocation46] sm:$0xf]
    %v2305 = vld [vmem:[#allocation46 + $0x4] sm:$0xf]
    %v2306 = vld [vmem:[#allocation46 + $0x8] sm:$0xf]
    %v2307 = vld [vmem:[#allocation46 + $0xc] sm:$0xf]
    %v2308 = vld [vmem:[#allocation46 + $0x10] sm:$0xf]
    %v2309 = vld [vmem:[#allocation46 + $0x14] sm:$0xf]
    %v2310 = vld [vmem:[#allocation46 + $0x18] sm:$0xf]
    %v2311 = vld [vmem:[#allocation46 + $0x1c] sm:$0xf]
    %v2312 = vld [vmem:[#allocation46 + $0x20] sm:$0xf]
    %v2313 = vld [vmem:[#allocation46 + $0x24] sm:$0xf]
    %v2314 = vld [vmem:[#allocation46 + $0x28] sm:$0xf]
    %v2315 = vld [vmem:[#allocation46 + $0x2c] sm:$0xf]
    %v2316 = vld [vmem:[#allocation46 + $0x30] sm:$0xf]
    %v2317 = vld [vmem:[#allocation46 + $0x34] sm:$0xf]
    %v2318 = vld [vmem:[#allocation46 + $0x38] sm:$0xf]
    %v2319 = vld [vmem:[#allocation46 + $0x3c] sm:$0xf]
    %v2336 = vunpack.c.l.b16 %v2304
    %v2337 = vunpack.c.l.b16 %v2305
    %v2338 = vunpack.c.l.b16 %v2306
    %v2339 = vunpack.c.l.b16 %v2307
    %v2340 = vunpack.c.l.b16 %v2308
    %v2341 = vunpack.c.l.b16 %v2309
    %v2342 = vunpack.c.l.b16 %v2310
    %v2343 = vunpack.c.l.b16 %v2311
    %v2344 = vunpack.c.l.b16 %v2312
    %v2345 = vunpack.c.l.b16 %v2313
    %v2346 = vunpack.c.l.b16 %v2314
    %v2347 = vunpack.c.l.b16 %v2315
    %v2348 = vunpack.c.l.b16 %v2316
    %v2349 = vunpack.c.l.b16 %v2317
    %v2350 = vunpack.c.l.b16 %v2318
    %v2351 = vunpack.c.l.b16 %v2319
    %v2352 = vpack.c.b16 %v2337, %v2336
    %v2353 = vpack.c.b16 %v2339, %v2338
    %v2354 = vpack.c.b16 %v2341, %v2340
    %v2355 = vpack.c.b16 %v2343, %v2342
    %v2356 = vpack.c.b16 %v2345, %v2344
    %v2357 = vpack.c.b16 %v2347, %v2346
    %v2358 = vpack.c.b16 %v2349, %v2348
    %v2359 = vpack.c.b16 %v2351, %v2350
    %2368 = vmatprep.subr.bf16.mxu0 0
    %2369 = vmatpush1.bf16.msra.mxu0 %v2359
    %2370 = vmatprep.subr.bf16.mxu0 0
    %2371 = vmatpush1.bf16.msra.mxu0 %v2358
    %2372 = vmatprep.subr.bf16.mxu0 0
    %2373 = vmatpush1.bf16.msra.mxu0 %v2357
    %2374 = vmatprep.subr.bf16.mxu0 0
    %2375 = vmatpush1.bf16.msra.mxu0 %v2356
    %2376 = vmatprep.subr.bf16.mxu0 0
    %2377 = vmatpush1.bf16.msra.mxu0 %v2355
    %2378 = vmatprep.subr.bf16.mxu0 0
    %2379 = vmatpush1.bf16.msra.mxu0 %v2354
    %2380 = vmatprep.subr.bf16.mxu0 0
    %2381 = vmatpush1.bf16.msra.mxu0 %v2353
    %2382 = vmatprep.subr.bf16.mxu0 0
    %2383 = vmatpush1.bf16.msra.mxu0 %v2352
    %2384 = vmatprep.subr.bf16.mxu0 0
    %2385 = vmatpush2.bf16.msra.mxu0 0
    %2386 = vmatprep.subr.bf16.mxu0 0
    %2387 = vmatpush2.bf16.msra.mxu0 0
    %2388 = vmatprep.subr.bf16.mxu0 0
    %2389 = vmatpush2.bf16.msra.mxu0 0
    %2390 = vmatprep.subr.bf16.mxu0 0
    %2391 = vmatpush2.bf16.msra.mxu0 0
    %2392 = vmatprep.subr.bf16.mxu0 0
    %2393 = vmatpush2.bf16.msra.mxu0 0
    %2394 = vmatprep.subr.bf16.mxu0 0
    %2395 = vmatpush2.bf16.msra.mxu0 0
    %2396 = vmatprep.subr.bf16.mxu0 0
    %2397 = vmatpush2.bf16.msra.mxu0 0
    %2398 = vmatprep.subr.bf16.mxu0 0
    %2399 = vmatpush2.bf16.msra.mxu0 0
    %2400 = vmatprep.mubr.bf16.mxu0 0
    %2401 = vmatmul.mubr.bf16.gmra.mxu0 %v2303
    %v2402 = vpop.f32.mrf.mxu0
    %v2403 = vadd.f32 0.0, %v2402
    %v2404 = vpop.f32.mrf.mxu0
    %v2405 = vpop.f32.mrf.mxu0
    %v2406 = vpop.f32.mrf.mxu0
    %2407 = vdwg.mxu0
    %v2408 = vld [vmem:[%s77] sm:$0x1]
    %v2410 = vlaneseq
    %v2411 = vshrl.u32 %v2410, 7
    %v2412 = vsub.s32 0, %v2411
    %v2413 = vrot.slane %v2408, %v2412
    %v2415 = vmul.f32 %v2403, %v2413
    %v2416 = vld [vmem:[%s79] sm:$0x1]
    %v2418 = vlaneseq
    %v2419 = vshrl.u32 %v2418, 7
    %v2420 = vsub.s32 0, %v2419
    %v2421 = vrot.slane %v2416, %v2420
    %v2423 = vadd.f32 %v2415, %v2421
    %v2424 = vmax.f32 %v2423, 0.0
    %v2425 = vpack.c.bf16 %v2424, %v2424
    %v2427 = vsel %vm744, %v2425, 0
    %2429 = vmatprep.subr.bf16.mxu0 0
    %2430 = vmatpush1.bf16.msra.mxu0 0
    %2431 = vmatprep.subr.bf16.mxu0 0
    %2432 = vmatpush1.bf16.msra.mxu0 0
    %2433 = vmatprep.subr.bf16.mxu0 0
    %2434 = vmatpush1.bf16.msra.mxu0 0
    %2435 = vmatprep.subr.bf16.mxu0 0
    %2436 = vmatpush1.bf16.msra.mxu0 0
    %2437 = vmatprep.subr.bf16.mxu0 0
    %2438 = vmatpush1.bf16.msra.mxu0 0
    %2439 = vmatprep.subr.bf16.mxu0 0
    %2440 = vmatpush1.bf16.msra.mxu0 0
    %2441 = vmatprep.subr.bf16.mxu0 0
    %2442 = vmatpush1.bf16.msra.mxu0 0
    %2443 = vmatprep.subr.bf16.mxu0 0
    %2444 = vmatpush1.bf16.msra.mxu0 %v2427
    %2445 = vmatprep.subr.bf16.mxu0 0
    %2446 = vmatpush2.bf16.msra.mxu0 0
    %2447 = vmatprep.subr.bf16.mxu0 0
    %2448 = vmatpush2.bf16.msra.mxu0 0
    %2449 = vmatprep.subr.bf16.mxu0 0
    %2450 = vmatpush2.bf16.msra.mxu0 0
    %2451 = vmatprep.subr.bf16.mxu0 0
    %2452 = vmatpush2.bf16.msra.mxu0 0
    %2453 = vmatprep.subr.bf16.mxu0 0
    %2454 = vmatpush2.bf16.msra.mxu0 0
    %2455 = vmatprep.subr.bf16.mxu0 0
    %2456 = vmatpush2.bf16.msra.mxu0 0
    %2457 = vmatprep.subr.bf16.mxu0 0
    %2458 = vmatpush2.bf16.msra.mxu0 0
    %2459 = vmatprep.subr.bf16.mxu0 0
    %2460 = vmatpush2.bf16.msra.mxu0 0
    %2461 = vmatprep.mubr.bf16.mxu0 0
    %2462 = vmatmul.mubr.bf16.gmra.mxu0 %v739
    %v2463 = vpop.f32.mrf.mxu0
    %v2464 = vadd.f32 0.0, %v2463
    %v2465 = vpop.f32.mrf.mxu0
    %v2466 = vpop.f32.mrf.mxu0
    %v2467 = vadd.f32 0.0, %v2466
    %v2468 = vpop.f32.mrf.mxu0
    %2469 = vmatprep.mubr.bf16.mxu0 0
    %2470 = vmatmul.mubr.bf16.gmra.mxu0 %v742
    %v2471 = vpop.f32.mrf.mxu0
    %v2472 = vadd.f32 0.0, %v2471
    %v2473 = vpop.f32.mrf.mxu0
    %v2474 = vpop.f32.mrf.mxu0
    %v2475 = vpop.f32.mrf.mxu0
    %2476 = vdwg.mxu0
    %v2477 = vadd.f32 %v2138, %v2464
    %v2478 = vadd.f32 %v2139, %v2467
    %v2479 = vadd.f32 %v2140, %v2472
    %v2480 = vpack.c.bf16 %v2478, %v2477
    %v2481 = vpack.c.bf16 %v2479, %v2479
    %v2482 = vld [vmem:[#allocation26] sm:$0xf]
    %v2484 = vsel %vm870, %v2482, 0
    %2486 = vmatprep.subr.bf16.mxu0 0
    %2487 = vmatpush1.bf16.msra.mxu0 0
    %2488 = vmatprep.subr.bf16.mxu0 0
    %2489 = vmatpush1.bf16.msra.mxu0 0
    %2490 = vmatprep.subr.bf16.mxu0 0
    %2491 = vmatpush1.bf16.msra.mxu0 0
    %2492 = vmatprep.subr.bf16.mxu0 0
    %2493 = vmatpush1.bf16.msra.mxu0 0
    %2494 = vmatprep.subr.bf16.mxu0 0
    %2495 = vmatpush1.bf16.msra.mxu0 0
    %2496 = vmatprep.subr.bf16.mxu0 0
    %2497 = vmatpush1.bf16.msra.mxu0 0
    %2498 = vmatprep.subr.bf16.mxu0 0
    %2499 = vmatpush1.bf16.msra.mxu0 0
    %2500 = vmatprep.subr.bf16.mxu0 0
    %2501 = vmatpush1.bf16.msra.mxu0 %v2484
    %2502 = vmatprep.subr.bf16.mxu0 0
    %2503 = vmatpush2.bf16.msra.mxu0 0
    %2504 = vmatprep.subr.bf16.mxu0 0
    %2505 = vmatpush2.bf16.msra.mxu0 0
    %2506 = vmatprep.subr.bf16.mxu0 0
    %2507 = vmatpush2.bf16.msra.mxu0 0
    %2508 = vmatprep.subr.bf16.mxu0 0
    %2509 = vmatpush2.bf16.msra.mxu0 0
    %2510 = vmatprep.subr.bf16.mxu0 0
    %2511 = vmatpush2.bf16.msra.mxu0 0
    %2512 = vmatprep.subr.bf16.mxu0 0
    %2513 = vmatpush2.bf16.msra.mxu0 0
    %2514 = vmatprep.subr.bf16.mxu0 0
    %2515 = vmatpush2.bf16.msra.mxu0 0
    %2516 = vmatprep.subr.bf16.mxu0 0
    %2517 = vmatpush2.bf16.msra.mxu0 0
    %2518 = vmatprep.mubr.bf16.mxu0 0
    %2519 = vmatmul.mubr.bf16.gmra.mxu0 %v862
    %v2520 = vpop.f32.mrf.mxu0
    %v2521 = vadd.f32 0.0, %v2520
    %v2522 = vpop.f32.mrf.mxu0
    %v2523 = vpop.f32.mrf.mxu0
    %v2524 = vadd.f32 0.0, %v2523
    %v2525 = vpop.f32.mrf.mxu0
    %2526 = vmatprep.mubr.bf16.mxu0 0
    %2527 = vmatmul.mubr.bf16.gmra.mxu0 %v865
    %v2528 = vpop.f32.mrf.mxu0
    %v2529 = vadd.f32 0.0, %v2528
    %v2530 = vpop.f32.mrf.mxu0
    %v2531 = vpop.f32.mrf.mxu0
    %v2532 = vadd.f32 0.0, %v2531
    %v2533 = vpop.f32.mrf.mxu0
    %2534 = vmatprep.mubr.bf16.mxu0 0
    %2535 = vmatmul.mubr.bf16.gmra.mxu0 %v868
    %v2536 = vpop.f32.mrf.mxu0
    %v2537 = vadd.f32 0.0, %v2536
    %v2538 = vpop.f32.mrf.mxu0
    %v2539 = vpop.f32.mrf.mxu0
    %v2540 = vpop.f32.mrf.mxu0
    %2541 = vdwg.mxu0
    %v2543 = vsel %vm870, %v2481, 0
    %2545 = vmatprep.subr.bf16.mxu0 0
    %2546 = vmatpush1.bf16.msra.mxu0 0
    %2547 = vmatprep.subr.bf16.mxu0 0
    %2548 = vmatpush1.bf16.msra.mxu0 0
    %2549 = vmatprep.subr.bf16.mxu0 0
    %2550 = vmatpush1.bf16.msra.mxu0 0
    %2551 = vmatprep.subr.bf16.mxu0 0
    %2552 = vmatpush1.bf16.msra.mxu0 0
    %2553 = vmatprep.subr.bf16.mxu0 0
    %2554 = vmatpush1.bf16.msra.mxu0 0
    %2555 = vmatprep.subr.bf16.mxu0 0
    %2556 = vmatpush1.bf16.msra.mxu0 0
    %2557 = vmatprep.subr.bf16.mxu0 0
    %2558 = vmatpush1.bf16.msra.mxu0 %v2543
    %2559 = vmatprep.subr.bf16.mxu0 0
    %2560 = vmatpush1.bf16.msra.mxu0 %v2480
    %2561 = vmatprep.subr.bf16.mxu0 0
    %2562 = vmatpush2.bf16.msra.mxu0 0
    %2563 = vmatprep.subr.bf16.mxu0 0
    %2564 = vmatpush2.bf16.msra.mxu0 0
    %2565 = vmatprep.subr.bf16.mxu0 0
    %2566 = vmatpush2.bf16.msra.mxu0 0
    %2567 = vmatprep.subr.bf16.mxu0 0
    %2568 = vmatpush2.bf16.msra.mxu0 0
    %2569 = vmatprep.subr.bf16.mxu0 0
    %2570 = vmatpush2.bf16.msra.mxu0 0
    %2571 = vmatprep.subr.bf16.mxu0 0
    %2572 = vmatpush2.bf16.msra.mxu0 0
    %2573 = vmatprep.subr.bf16.mxu0 0
    %2574 = vmatpush2.bf16.msra.mxu0 0
    %2575 = vmatprep.subr.bf16.mxu0 0
    %2576 = vmatpush2.bf16.msra.mxu0 0
    %2577 = vmatprep.mubr.bf16.mxu0 0
    %2578 = vmatmul.mubr.bf16.gmra.mxu0 %v932
    %v2579 = vpop.f32.mrf.mxu0
    %v2580 = vadd.f32 %v2521, %v2579
    %v2581 = vpop.f32.mrf.mxu0
    %v2582 = vpop.f32.mrf.mxu0
    %v2583 = vadd.f32 %v2524, %v2582
    %v2584 = vpop.f32.mrf.mxu0
    %2585 = vmatprep.mubr.bf16.mxu0 0
    %2586 = vmatmul.mubr.bf16.gmra.mxu0 %v935
    %v2587 = vpop.f32.mrf.mxu0
    %v2588 = vadd.f32 %v2529, %v2587
    %v2589 = vpop.f32.mrf.mxu0
    %v2590 = vpop.f32.mrf.mxu0
    %v2591 = vadd.f32 %v2532, %v2590
    %v2592 = vpop.f32.mrf.mxu0
    %2593 = vmatprep.mubr.bf16.mxu0 0
    %2594 = vmatmul.mubr.bf16.gmra.mxu0 %v938
    %v2595 = vpop.f32.mrf.mxu0
    %v2596 = vadd.f32 %v2537, %v2595
    %v2597 = vpop.f32.mrf.mxu0
    %v2598 = vpop.f32.mrf.mxu0
    %v2599 = vpop.f32.mrf.mxu0
    %2600 = vdwg.mxu0
    %v2601 = vmax.f32 %v2580, 0.0
    %v2602 = vmax.f32 %v2583, 0.0
    %v2603 = vmax.f32 %v2588, 0.0
    %v2604 = vmax.f32 %v2591, 0.0
    %v2605 = vmax.f32 %v2596, 0.0
    %v2606 = vpack.c.bf16 %v2602, %v2601
    %v2607 = vpack.c.bf16 %v2604, %v2603
    %v2608 = vpack.c.bf16 %v2605, %v2605
    %v2610 = vsel %vm870, %v2608, 0
    %2612 = vmatprep.subr.bf16.mxu0 0
    %2613 = vmatpush1.bf16.msra.mxu0 0
    %2614 = vmatprep.subr.bf16.mxu0 0
    %2615 = vmatpush1.bf16.msra.mxu0 0
    %2616 = vmatprep.subr.bf16.mxu0 0
    %2617 = vmatpush1.bf16.msra.mxu0 0
    %2618 = vmatprep.subr.bf16.mxu0 0
    %2619 = vmatpush1.bf16.msra.mxu0 0
    %2620 = vmatprep.subr.bf16.mxu0 0
    %2621 = vmatpush1.bf16.msra.mxu0 0
    %2622 = vmatprep.subr.bf16.mxu0 0
    %2623 = vmatpush1.bf16.msra.mxu0 %v2610
    %2624 = vmatprep.subr.bf16.mxu0 0
    %2625 = vmatpush1.bf16.msra.mxu0 %v2607
    %2626 = vmatprep.subr.bf16.mxu0 0
    %2627 = vmatpush1.bf16.msra.mxu0 %v2606
    %2628 = vmatprep.subr.bf16.mxu0 0
    %2629 = vmatpush2.bf16.msra.mxu0 0
    %2630 = vmatprep.subr.bf16.mxu0 0
    %2631 = vmatpush2.bf16.msra.mxu0 0
    %2632 = vmatprep.subr.bf16.mxu0 0
    %2633 = vmatpush2.bf16.msra.mxu0 0
    %2634 = vmatprep.subr.bf16.mxu0 0
    %2635 = vmatpush2.bf16.msra.mxu0 0
    %2636 = vmatprep.subr.bf16.mxu0 0
    %2637 = vmatpush2.bf16.msra.mxu0 0
    %2638 = vmatprep.subr.bf16.mxu0 0
    %2639 = vmatpush2.bf16.msra.mxu0 0
    %2640 = vmatprep.subr.bf16.mxu0 0
    %2641 = vmatpush2.bf16.msra.mxu0 0
    %2642 = vmatprep.subr.bf16.mxu0 0
    %2643 = vmatpush2.bf16.msra.mxu0 0
    %2644 = vmatprep.mubr.bf16.mxu0 0
    %2645 = vmatmul.mubr.bf16.gmra.mxu0 %v1009
    %v2646 = vpop.f32.mrf.mxu0
    %v2647 = vadd.f32 0.0, %v2646
    %v2648 = vpop.f32.mrf.mxu0
    %v2649 = vpop.f32.mrf.mxu0
    %v2650 = vadd.f32 0.0, %v2649
    %v2651 = vpop.f32.mrf.mxu0
    %2652 = vmatprep.mubr.bf16.mxu0 0
    %2653 = vmatmul.mubr.bf16.gmra.mxu0 %v1012
    %v2654 = vpop.f32.mrf.mxu0
    %v2655 = vadd.f32 0.0, %v2654
    %v2656 = vpop.f32.mrf.mxu0
    %v2657 = vpop.f32.mrf.mxu0
    %v2658 = vpop.f32.mrf.mxu0
    %2659 = vdwg.mxu0
    %v2660 = vadd.f32 %v2477, %v2647
    %v2661 = vadd.f32 %v2478, %v2650
    %v2662 = vadd.f32 %v2479, %v2655
    %v2663 = vpack.c.bf16 %v2661, %v2660
    %v2664 = vpack.c.bf16 %v2662, %v2662
    %v2665 = vld [vmem:[#allocation28] sm:$0xf]
    %v2666 = vld [vmem:[#allocation28 + $0x4] sm:$0xf]
    %v2667 = vld [vmem:[#allocation28 + $0x8] sm:$0xf]
    %v2668 = vld [vmem:[#allocation28 + $0xc] sm:$0xf]
    %v2669 = vld [vmem:[#allocation28 + $0x10] sm:$0xf]
    %v2670 = vld [vmem:[#allocation28 + $0x14] sm:$0xf]
    %v2671 = vld [vmem:[#allocation28 + $0x18] sm:$0xf]
    %v2672 = vld [vmem:[#allocation28 + $0x1c] sm:$0xf]
    %v2673 = vld [vmem:[#allocation28 + $0x20] sm:$0xf]
    %v2674 = vld [vmem:[#allocation28 + $0x24] sm:$0xf]
    %v2675 = vld [vmem:[#allocation28 + $0x28] sm:$0xf]
    %v2676 = vld [vmem:[#allocation28 + $0x2c] sm:$0xf]
    %v2677 = vld [vmem:[#allocation28 + $0x30] sm:$0xf]
    %v2678 = vld [vmem:[#allocation28 + $0x34] sm:$0xf]
    %v2679 = vld [vmem:[#allocation28 + $0x38] sm:$0xf]
    %v2680 = vld [vmem:[#allocation28 + $0x3c] sm:$0xf]
    %v2697 = vunpack.c.l.b16 %v2665
    %v2698 = vunpack.c.l.b16 %v2666
    %v2699 = vunpack.c.l.b16 %v2667
    %v2700 = vunpack.c.l.b16 %v2668
    %v2701 = vunpack.c.l.b16 %v2669
    %v2702 = vunpack.c.l.b16 %v2670
    %v2703 = vunpack.c.l.b16 %v2671
    %v2704 = vunpack.c.l.b16 %v2672
    %v2705 = vunpack.c.l.b16 %v2673
    %v2706 = vunpack.c.l.b16 %v2674
    %v2707 = vunpack.c.l.b16 %v2675
    %v2708 = vunpack.c.l.b16 %v2676
    %v2709 = vunpack.c.l.b16 %v2677
    %v2710 = vunpack.c.l.b16 %v2678
    %v2711 = vunpack.c.l.b16 %v2679
    %v2712 = vunpack.c.l.b16 %v2680
    %v2713 = vpack.c.b16 %v2698, %v2697
    %v2714 = vpack.c.b16 %v2700, %v2699
    %v2715 = vpack.c.b16 %v2702, %v2701
    %v2716 = vpack.c.b16 %v2704, %v2703
    %v2717 = vpack.c.b16 %v2706, %v2705
    %v2718 = vpack.c.b16 %v2708, %v2707
    %v2719 = vpack.c.b16 %v2710, %v2709
    %v2720 = vpack.c.b16 %v2712, %v2711
    %2729 = vmatprep.subr.bf16.mxu0 0
    %2730 = vmatpush1.bf16.msra.mxu0 %v2720
    %2731 = vmatprep.subr.bf16.mxu0 0
    %2732 = vmatpush1.bf16.msra.mxu0 %v2719
    %2733 = vmatprep.subr.bf16.mxu0 0
    %2734 = vmatpush1.bf16.msra.mxu0 %v2718
    %2735 = vmatprep.subr.bf16.mxu0 0
    %2736 = vmatpush1.bf16.msra.mxu0 %v2717
    %2737 = vmatprep.subr.bf16.mxu0 0
    %2738 = vmatpush1.bf16.msra.mxu0 %v2716
    %2739 = vmatprep.subr.bf16.mxu0 0
    %2740 = vmatpush1.bf16.msra.mxu0 %v2715
    %2741 = vmatprep.subr.bf16.mxu0 0
    %2742 = vmatpush1.bf16.msra.mxu0 %v2714
    %2743 = vmatprep.subr.bf16.mxu0 0
    %2744 = vmatpush1.bf16.msra.mxu0 %v2713
    %2745 = vmatprep.subr.bf16.mxu0 0
    %2746 = vmatpush2.bf16.msra.mxu0 0
    %2747 = vmatprep.subr.bf16.mxu0 0
    %2748 = vmatpush2.bf16.msra.mxu0 0
    %2749 = vmatprep.subr.bf16.mxu0 0
    %2750 = vmatpush2.bf16.msra.mxu0 0
    %2751 = vmatprep.subr.bf16.mxu0 0
    %2752 = vmatpush2.bf16.msra.mxu0 0
    %2753 = vmatprep.subr.bf16.mxu0 0
    %2754 = vmatpush2.bf16.msra.mxu0 0
    %2755 = vmatprep.subr.bf16.mxu0 0
    %2756 = vmatpush2.bf16.msra.mxu0 0
    %2757 = vmatprep.subr.bf16.mxu0 0
    %2758 = vmatpush2.bf16.msra.mxu0 0
    %2759 = vmatprep.subr.bf16.mxu0 0
    %2760 = vmatpush2.bf16.msra.mxu0 0
    %2761 = vmatprep.mubr.bf16.mxu0 0
    %2762 = vmatmul.mubr.bf16.gmra.mxu0 %v2663
    %v2763 = vpop.f32.mrf.mxu0
    %v2764 = vadd.f32 0.0, %v2763
    %v2765 = vpop.f32.mrf.mxu0
    %v2766 = vpop.f32.mrf.mxu0
    %v2767 = vadd.f32 0.0, %v2766
    %v2768 = vpop.f32.mrf.mxu0
    %2769 = vmatprep.mubr.bf16.mxu0 0
    %2770 = vmatmul.mubr.bf16.gmra.mxu0 %v2664
    %v2771 = vpop.f32.mrf.mxu0
    %v2772 = vadd.f32 0.0, %v2771
    %v2773 = vpop.f32.mrf.mxu0
    %v2774 = vpop.f32.mrf.mxu0
    %v2775 = vpop.f32.mrf.mxu0
    %2776 = vdwg.mxu0
    %v2777 = vld [vmem:[#allocation29] sm:$0x1]
    %v2779 = vlaneseq
    %v2780 = vshrl.u32 %v2779, 7
    %v2781 = vsub.s32 0, %v2780
    %v2782 = vrot.slane %v2777, %v2781
    %v2784 = vmul.f32 %v2764, %v2782
    %v2785 = vmul.f32 %v2767, %v2782
    %v2786 = vmul.f32 %v2772, %v2782
    %v2787 = vld [vmem:[#allocation31] sm:$0x1]
    %v2789 = vlaneseq
    %v2790 = vshrl.u32 %v2789, 7
    %v2791 = vsub.s32 0, %v2790
    %v2792 = vrot.slane %v2787, %v2791
    %v2794 = vadd.f32 %v2784, %v2792
    %v2795 = vadd.f32 %v2785, %v2792
    %v2796 = vadd.f32 %v2786, %v2792
    %v2797 = vmax.f32 %v2794, 0.0
    %v2798 = vmax.f32 %v2795, 0.0
    %v2799 = vmax.f32 %v2796, 0.0
    %v2800 = vpack.c.bf16 %v2798, %v2797
    %v2801 = vpack.c.bf16 %v2799, %v2799
    %v2802 = vld [vmem:[#allocation32] sm:$0xf]
    %v2803 = vld [vmem:[#allocation32 + $0x4] sm:$0xf]
    %v2804 = vld [vmem:[#allocation32 + $0x8] sm:$0xf]
    %v2805 = vld [vmem:[#allocation32 + $0xc] sm:$0xf]
    %v2806 = vld [vmem:[#allocation32 + $0x10] sm:$0xf]
    %v2807 = vld [vmem:[#allocation32 + $0x14] sm:$0xf]
    %v2808 = vld [vmem:[#allocation32 + $0x18] sm:$0xf]
    %v2809 = vld [vmem:[#allocation32 + $0x1c] sm:$0xf]
    %v2810 = vld [vmem:[#allocation32 + $0x20] sm:$0xf]
    %v2811 = vld [vmem:[#allocation32 + $0x24] sm:$0xf]
    %v2812 = vld [vmem:[#allocation32 + $0x28] sm:$0xf]
    %v2813 = vld [vmem:[#allocation32 + $0x2c] sm:$0xf]
    %v2814 = vld [vmem:[#allocation32 + $0x30] sm:$0xf]
    %v2815 = vld [vmem:[#allocation32 + $0x34] sm:$0xf]
    %v2816 = vld [vmem:[#allocation32 + $0x38] sm:$0xf]
    %v2817 = vld [vmem:[#allocation32 + $0x3c] sm:$0xf]
    %v2834 = vunpack.c.l.b16 %v2802
    %v2835 = vunpack.c.l.b16 %v2803
    %v2836 = vunpack.c.l.b16 %v2804
    %v2837 = vunpack.c.l.b16 %v2805
    %v2838 = vunpack.c.l.b16 %v2806
    %v2839 = vunpack.c.l.b16 %v2807
    %v2840 = vunpack.c.l.b16 %v2808
    %v2841 = vunpack.c.l.b16 %v2809
    %v2842 = vunpack.c.l.b16 %v2810
    %v2843 = vunpack.c.l.b16 %v2811
    %v2844 = vunpack.c.l.b16 %v2812
    %v2845 = vunpack.c.l.b16 %v2813
    %v2846 = vunpack.c.l.b16 %v2814
    %v2847 = vunpack.c.l.b16 %v2815
    %v2848 = vunpack.c.l.b16 %v2816
    %v2849 = vunpack.c.l.b16 %v2817
    %v2850 = vpack.c.b16 %v2835, %v2834
    %v2851 = vpack.c.b16 %v2837, %v2836
    %v2852 = vpack.c.b16 %v2839, %v2838
    %v2853 = vpack.c.b16 %v2841, %v2840
    %v2854 = vpack.c.b16 %v2843, %v2842
    %v2855 = vpack.c.b16 %v2845, %v2844
    %v2856 = vpack.c.b16 %v2847, %v2846
    %v2857 = vpack.c.b16 %v2849, %v2848
    %2866 = vmatprep.subr.bf16.mxu0 0
    %2867 = vmatpush1.bf16.msra.mxu0 %v2857
    %2868 = vmatprep.subr.bf16.mxu0 0
    %2869 = vmatpush1.bf16.msra.mxu0 %v2856
    %2870 = vmatprep.subr.bf16.mxu0 0
    %2871 = vmatpush1.bf16.msra.mxu0 %v2855
    %2872 = vmatprep.subr.bf16.mxu0 0
    %2873 = vmatpush1.bf16.msra.mxu0 %v2854
    %2874 = vmatprep.subr.bf16.mxu0 0
    %2875 = vmatpush1.bf16.msra.mxu0 %v2853
    %2876 = vmatprep.subr.bf16.mxu0 0
    %2877 = vmatpush1.bf16.msra.mxu0 %v2852
    %2878 = vmatprep.subr.bf16.mxu0 0
    %2879 = vmatpush1.bf16.msra.mxu0 %v2851
    %2880 = vmatprep.subr.bf16.mxu0 0
    %2881 = vmatpush1.bf16.msra.mxu0 %v2850
    %2882 = vmatprep.subr.bf16.mxu0 0
    %2883 = vmatpush2.bf16.msra.mxu0 0
    %2884 = vmatprep.subr.bf16.mxu0 0
    %2885 = vmatpush2.bf16.msra.mxu0 0
    %2886 = vmatprep.subr.bf16.mxu0 0
    %2887 = vmatpush2.bf16.msra.mxu0 0
    %2888 = vmatprep.subr.bf16.mxu0 0
    %2889 = vmatpush2.bf16.msra.mxu0 0
    %2890 = vmatprep.subr.bf16.mxu0 0
    %2891 = vmatpush2.bf16.msra.mxu0 0
    %2892 = vmatprep.subr.bf16.mxu0 0
    %2893 = vmatpush2.bf16.msra.mxu0 0
    %2894 = vmatprep.subr.bf16.mxu0 0
    %2895 = vmatpush2.bf16.msra.mxu0 0
    %2896 = vmatprep.subr.bf16.mxu0 0
    %2897 = vmatpush2.bf16.msra.mxu0 0
    %2898 = vmatprep.mubr.bf16.mxu0 0
    %2899 = vmatmul.mubr.bf16.gmra.mxu0 %v2800
    %v2900 = vpop.f32.mrf.mxu0
    %v2901 = vadd.f32 0.0, %v2900
    %v2902 = vpop.f32.mrf.mxu0
    %v2903 = vpop.f32.mrf.mxu0
    %v2904 = vadd.f32 0.0, %v2903
    %v2905 = vpop.f32.mrf.mxu0
    %2906 = vmatprep.mubr.bf16.mxu0 0
    %2907 = vmatmul.mubr.bf16.gmra.mxu0 %v2801
    %v2908 = vpop.f32.mrf.mxu0
    %v2909 = vadd.f32 0.0, %v2908
    %v2910 = vpop.f32.mrf.mxu0
    %v2911 = vpop.f32.mrf.mxu0
    %v2912 = vpop.f32.mrf.mxu0
    %2913 = vdwg.mxu0
    %v2914 = vld [vmem:[#allocation34] sm:$0x1]
    %v2916 = vlaneseq
    %v2917 = vshrl.u32 %v2916, 7
    %v2918 = vsub.s32 0, %v2917
    %v2919 = vrot.slane %v2914, %v2918
    %v2921 = vmul.f32 %v2901, %v2919
    %v2922 = vmul.f32 %v2904, %v2919
    %v2923 = vmul.f32 %v2909, %v2919
    %v2924 = vld [vmem:[#allocation35] sm:$0x1]
    %v2926 = vlaneseq
    %v2927 = vshrl.u32 %v2926, 7
    %v2928 = vsub.s32 0, %v2927
    %v2929 = vrot.slane %v2924, %v2928
    %v2931 = vadd.f32 %v2921, %v2929
    %v2932 = vadd.f32 %v2922, %v2929
    %v2933 = vadd.f32 %v2923, %v2929
    %2934 = vst [vmem:[#allocation47] sm:$0xff] %v2931
    %2935 = vst [vmem:[#allocation47 + $0x8] sm:$0xff] %v2932
    %2936 = vst [vmem:[#allocation47 + $0x10] sm:$0xff] %v2933
    // Predicated region
    $region278: #{tpu_custom_call.1} parent=1 // pred_check
      _
    $region279: #{tpu_custom_call.1} parent=1 // pred_check_branch
      %2938 = sbr.rel (0) target = $region281
    $region280: #{tpu_custom_call.1} parent=1 // pred_region
      %s2940 = ssub.s32 384, 384
      %2941 = vsyncadd [#allocation4], %s2940
      %s2942 = sshll.u32 [#allocation47], 4
      %s2943 = int_to_ptr.vmem [resolvable:$true] %s2942
      %2948 = dma.vmem_to_hbm [thread:$0]  %s2943, 384, %s81, [#allocation4], 128, 128, 8
    $region281: #{tpu_custom_call.1} parent=1 // pred_fallthru
      _
    // Predicated region
    $region282: #{tpu_custom_call.1} parent=1 // pred_check
      _
    $region283: #{tpu_custom_call.1} parent=1 // pred_check_branch
      %2950 = sbr.rel (0) target = $region285
    $region284: #{tpu_custom_call.1} parent=1 // pred_region
      %2951 = dma.done [#allocation4], 384
    $region285: #{tpu_custom_call.1} parent=1 // pred_fallthru
      _
    %2952 = vsyncpa [#allocation3], 1
    %2953 = vsyncpa [#allocation6], 1
    %2954 = vsyncpa [#allocation9], 1
    %2955 = vsyncpa [#allocation12], 1
    %2956 = vsyncpa [#allocation15], 1
    %2957 = vsyncpa [#allocation18], 1
    %2958 = vsyncpa [#allocation21], 1
    %2959 = vsyncpa [#allocation24], 1
    %2960 = vsyncpa [#allocation27], 1
    %2961 = vsyncpa [#allocation30], 1
    %2962 = vsyncpa [#allocation33], 1
    %2963 = vsyncpa [#allocation36], 1
    %2964 = vsyncpa [#allocation39], 1
    %2965 = vsyncpa [#allocation42], 1
    %2966 = vsyncpa [#allocation45], 1
    %2967 = vsyncpa [#allocation4], 1

</llo_original>
